<compile_context>
chip_gen: v7x
topology: tpu7x:2x2x1
jax: 0.10.0
libtpu: 0.0.40
codegen_flags: <defaults>
</compile_context>

<pallas_src>
import jax
import jax.numpy as jnp
from jax.experimental import pallas as pl
from jax.experimental.pallas import tpu as pltpu


def _rope_kernel(x_ref, pos_ref, theta_ref, o_ref):
    tt, hd = x_ref.shape
    dw = theta_ref.shape[-1]
    reps = hd // dw

    # Angles / cos / sin computed only at (tt, dw); replicate across heads with
    # a lane concat so the single EUP port does not become the bottleneck.
    ang = pos_ref[...] * theta_ref[...]                  # (tt, dw) f32
    cos = jnp.cos(ang)
    sin = jnp.sin(ang)
    if reps > 1:
        cos = jnp.concatenate([cos] * reps, axis=-1)     # (tt, hd)
        sin = jnp.concatenate([sin] * reps, axis=-1)

    x = x_ref[...].astype(jnp.float32)                   # (tt, hd)

    # partner[l] = x[l ^ 1]  (swap the two elements of each interleaved pair).
    # Built from two lane rotations; the rotated iota tells us, per lane, which
    # rotation actually carries the partner element, so this does not depend on
    # the rotate-direction convention and handles the circular wrap lanes.
    lane = jax.lax.broadcasted_iota(jnp.int32, (tt, hd), 1)
    x_a = pltpu.roll(x, 1, axis=1)
    x_b = pltpu.roll(x, hd - 1, axis=1)
    lane_a = pltpu.roll(lane, 1, axis=1)
    partner = jnp.where(lane_a == (lane ^ 1), x_a, x_b)

    # even lanes: x0*cos - x1*sin ; odd lanes: x1*cos + x0*sin
    rot = jnp.where((lane & 1) == 0, -partner, partner)
    o_ref[...] = (x * cos + rot * sin).astype(o_ref.dtype)


def eager_rope_pallas(x, position_idcs, base=10000, token_tile=256):
    """Interleaved RoPE. x: (T, H, D) packed tokens; position_idcs: (T,) int."""
    T, H, D = x.shape
    assert D % 2 == 0, "dim must be divisible by 2"
    HD = H * D
    dtype = x.dtype

    # Row quantum: 8 sublane rows for 4-byte dtypes, 16 for 2-byte (bf16) packing.
    rowq = 8 if dtype.itemsize >= 4 else 16
    token_tile = max(rowq, (int(token_tile) // rowq) * rowq)
    t_ceil = ((T + rowq - 1) // rowq) * rowq
    token_tile = min(token_tile, t_ceil)

    n_blocks = pl.cdiv(T, token_tile)
    T_pad = n_blocks * token_tile

    # theta = 1 / base**(arange(0, D, 2)/D), expanded to one value per lane
    # (pair-duplicated). If D is lane-aligned we pass one head's worth and
    # replicate across heads inside the kernel; otherwise pass full H*D width.
    theta = 1.0 / (base ** (jnp.arange(0, D, 2, dtype=jnp.float32) / D))   # (D/2,)
    theta_lane = jnp.repeat(theta, 2)                                      # (D,)
    if H > 1 and D % 128 != 0:
        theta_lane = jnp.tile(theta_lane, H)                               # (H*D,)
    theta_vec = theta_lane.reshape(1, -1)
    Dw = theta_vec.shape[-1]

    x2 = x.reshape(T, HD)                        # free reshape (row-major)
    pos = position_idcs.astype(jnp.float32).reshape(T, 1)
    if T_pad != T:                               # ragged token count: pad last tile
        x2 = jnp.pad(x2, ((0, T_pad - T), (0, 0)))
        pos = jnp.pad(pos, ((0, T_pad - T), (0, 0)))

    # VMEM budget: in + out blocks, double-buffered (+ tiny pos / theta blocks).
    block_bytes = token_tile * HD * dtype.itemsize
    vmem_need = 4 * block_bytes + 4 * token_tile * 4 + 4 * Dw * 4
    vmem_limit = int(min(max(2 * vmem_need, 32 * 1024 * 1024),
                         56 * 1024 * 1024))      # stay inside v7x's 64 MiB VMEM

    out2 = pl.pallas_call(
        _rope_kernel,
        out_shape=jax.ShapeDtypeStruct((T_pad, HD), dtype),
        grid_spec=pltpu.PrefetchScalarGridSpec(
            num_scalar_prefetch=0,
            grid=(n_blocks,),
            in_specs=[
                pl.BlockSpec((token_tile, HD), lambda i: (i, 0)),
                pl.BlockSpec((token_tile, 1), lambda i: (i, 0)),
                pl.BlockSpec((1, Dw), lambda i: (0, 0)),
            ],
            out_specs=pl.BlockSpec((token_tile, HD), lambda i: (i, 0)),
        ),
        compiler_params=pltpu.CompilerParams(
            dimension_semantics=("parallel",),
            vmem_limit_bytes=vmem_limit),
    )(x2, pos, theta_vec)

    if T_pad != T:
        out2 = out2[:T]
    return out2.reshape(T, H, D)


def eager_rope_ref(x, position_idcs, base=10000):
    """Pure-JAX reference replicating the torch forward exactly."""
    T, H, D = x.shape
    D2 = D // 2
    theta = 1.0 / (base ** (jnp.arange(0, D, 2, dtype=jnp.float32) / D))
    idx_theta = position_idcs.astype(jnp.float32)[:, None] * theta[None, :]
    cos = jnp.cos(idx_theta)[:, None, :]
    sin = jnp.sin(idx_theta)[:, None, :]
    xr = x.reshape(T, H, D2, 2).astype(jnp.float32)
    o0 = xr[..., 0] * cos - xr[..., 1] * sin
    o1 = xr[..., 1] * cos + xr[..., 0] * sin
    return jnp.stack([o0, o1], axis=-1).reshape(T, H, D).astype(x.dtype)


if __name__ == "__main__":
    key = jax.random.PRNGKey(0)
    T, H, D = 256, 4, 128          # packed tokens, heads, head_dim
    kx, kp = jax.random.split(key)
    x = jax.random.normal(kx, (T, H, D), dtype=jnp.float32)
    position_idcs = jax.random.randint(kp, (T,), 0, 1024, dtype=jnp.int32)

    out = eager_rope_pallas(x, position_idcs, token_tile=128)   # grid = 2 steps
    out = jax.block_until_ready(out)

    ref = eager_rope_ref(x, position_idcs)
    assert out.shape == x.shape and out.dtype == x.dtype
    assert jnp.allclose(out, ref, atol=2e-5, rtol=2e-5), "mismatch vs reference"
    print("KERNEL_OK")
</pallas_src>

<mosaic_0001>
module attributes {stable_mosaic.version = 11 : i64} {
  func.func @_rope_kernel(%arg0: i32, %arg1: memref<128x512xf32, #tpu.memory_space<vmem>>, %arg2: memref<128x1xf32, #tpu.memory_space<vmem>>, %arg3: memref<1x128xf32, #tpu.memory_space<vmem>>, %arg4: memref<128x512xf32, #tpu.memory_space<vmem>>) attributes {dimension_semantics = [#tpu.dimension_semantics<parallel>], iteration_bounds = array<i64: 2>, scalar_prefetch = 0 : i64, scratch_operands = 0 : i64, tpu.core_type = #tpu.core_type<tc>, window_params = [{transform_indices = @transform_0, window_bounds = array<i64: 128, 512>}, {transform_indices = @transform_1, window_bounds = array<i64: 128, 1>}, {pipeline_mode = #tpu.pipeline_mode<synchronous>, transform_indices = @transform_2, window_bounds = array<i64: 1, 128>}, {transform_indices = @transform_3, window_bounds = array<i64: 128, 512>}]} {
    %c0 = arith.constant 0 : index
    %c0_0 = arith.constant 0 : index
    %0 = vector.load %arg2[%c0, %c0_0] : memref<128x1xf32, #tpu.memory_space<vmem>>, vector<128x1xf32>
    %c0_1 = arith.constant 0 : index
    %c0_2 = arith.constant 0 : index
    %1 = vector.load %arg3[%c0_1, %c0_2] : memref<1x128xf32, #tpu.memory_space<vmem>>, vector<1x128xf32>
    %2 = vector.broadcast %0 : vector<128x1xf32> to vector<128x128xf32>
    %3 = vector.broadcast %1 : vector<1x128xf32> to vector<128x128xf32>
    %4 = arith.mulf %2, %3 : vector<128x128xf32>
    %5 = math.cos %4 : vector<128x128xf32>
    %6 = math.sin %4 : vector<128x128xf32>
    %7 = tpu.concatenate %5, %5, %5, %5 in 1 : vector<128x128xf32>, vector<128x128xf32>, vector<128x128xf32>, vector<128x128xf32> -> vector<128x512xf32>
    %8 = tpu.concatenate %6, %6, %6, %6 in 1 : vector<128x128xf32>, vector<128x128xf32>, vector<128x128xf32>, vector<128x128xf32> -> vector<128x512xf32>
    %c0_3 = arith.constant 0 : index
    %c0_4 = arith.constant 0 : index
    %9 = vector.load %arg1[%c0_3, %c0_4] : memref<128x512xf32, #tpu.memory_space<vmem>>, vector<128x512xf32>
    %10 = tpu.iota {dimensions = array<i32: 1>} : vector<128x512xi32>
    %c1_i32 = arith.constant 1 : i32
    %11 = tpu.dynamic_rotate %9 by %c1_i32 dim 1 : vector<128x512xf32>, i32 -> vector<128x512xf32>
    %c511_i32 = arith.constant 511 : i32
    %12 = tpu.dynamic_rotate %9 by %c511_i32 dim 1 : vector<128x512xf32>, i32 -> vector<128x512xf32>
    %c1_i32_5 = arith.constant 1 : i32
    %13 = tpu.dynamic_rotate %10 by %c1_i32_5 dim 1 : vector<128x512xi32>, i32 -> vector<128x512xi32>
    %c1_i32_6 = arith.constant 1 : i32
    %14 = vector.broadcast %c1_i32_6 : i32 to vector<128x512xi32>
    %15 = arith.xori %10, %14 : vector<128x512xi32>
    %16 = arith.cmpi eq, %13, %15 : vector<128x512xi32>
    %17 = arith.select %16, %11, %12 : vector<128x512xi1>, vector<128x512xf32>
    %c1_i32_7 = arith.constant 1 : i32
    %18 = vector.broadcast %c1_i32_7 : i32 to vector<128x512xi32>
    %19 = arith.andi %10, %18 : vector<128x512xi32>
    %c0_i32 = arith.constant 0 : i32
    %20 = vector.broadcast %c0_i32 : i32 to vector<128x512xi32>
    %21 = arith.cmpi eq, %19, %20 : vector<128x512xi32>
    %cst = arith.constant 0.000000e+00 : f32
    %22 = vector.broadcast %cst : f32 to vector<128x512xf32>
    %23 = arith.subf %22, %17 : vector<128x512xf32>
    %24 = arith.select %21, %23, %17 : vector<128x512xi1>, vector<128x512xf32>
    %25 = arith.mulf %9, %7 : vector<128x512xf32>
    %26 = arith.mulf %24, %8 : vector<128x512xf32>
    %27 = arith.addf %25, %26 : vector<128x512xf32>
    %c0_8 = arith.constant 0 : index
    %c0_9 = arith.constant 0 : index
    %28 = vector.load %arg4[%c0_8, %c0_9] : memref<128x512xf32, #tpu.memory_space<vmem>>, vector<128x512xf32>
    tpu.vector_store %arg4[%c0_8, %c0_9], %27 {strides = array<i32>} : memref<128x512xf32, #tpu.memory_space<vmem>>, vector<128x512xf32>,
    return
  }
  func.func @transform_0(%arg0: i32) -> (i32, i32) {
    %c0_i32 = arith.constant 0 : i32
    %c0_i32_0 = arith.constant 0 : i32
    return %arg0, %c0_i32 : i32, i32
  }
  func.func @transform_1(%arg0: i32) -> (i32, i32) {
    %c0_i32 = arith.constant 0 : i32
    %c0_i32_0 = arith.constant 0 : i32
    return %arg0, %c0_i32 : i32, i32
  }
  func.func @transform_2(%arg0: i32) -> (i32, i32) {
    %c0_i32 = arith.constant 0 : i32
    %c0_i32_0 = arith.constant 0 : i32
    %c0_i32_1 = arith.constant 0 : i32
    return %c0_i32, %c0_i32_0 : i32, i32
  }
  func.func @transform_3(%arg0: i32) -> (i32, i32) {
    %c0_i32 = arith.constant 0 : i32
    %c0_i32_0 = arith.constant 0 : i32
    return %arg0, %c0_i32 : i32, i32
  }
}

</mosaic_0001>

<llo_original>
// kernel: tpu_custom_call.1
$region0: #{tpu_custom_call.1}
  #allocation0 [shape = 'u32[]', space=smem, size = 0x4, offset = 0x4, fixed_abs, tag = 'smem constant byte address 0x4 - core index']
  #allocation1 [shape = 'u32[144,128]{1,0:T(1,128)}', space=vmem, size = 0x12000, scoped, tag = 'internal scratch']
  %s0 = inlined_call_operand.hbm [shape: f32[256,512], index: 0, kind: input, shape index: {}]
  %s1 = inlined_call_operand.vmem [shape: f32[256,1], index: 1, kind: input, shape index: {}]
  %s2 = inlined_call_operand.vmem [shape: f32[1,128], index: 2, kind: input, shape index: {}]
  %s3 = inlined_call_operand.hbm [shape: f32[256,512], index: 3, kind: output, shape index: {}]
  %s4 = sld [smem:[#allocation0]]
  $region49: #{tpu_custom_call.1} parent=0
    _
  %s6 = ssub.s32 1, %s4
  %s7 = scalar_select 0, %s6, %s4
  $region1: #{tpu_custom_call.1} parent=0
    #allocation2 [shape = 'u8[524288]{0}', space=vmem, size = 0x80000, scoped, tag = 'input window, operand 0']
    #allocation3 [shape = 's32[2]{0}', space=sflag, size = 0x8, scoped, tag = 'scoped memory for tpu_custom_call.1']
    #allocation4 [shape = 's32[2]{0}', space=sflag, size = 0x8, scoped, tag = 'scoped memory for tpu_custom_call.1']
    #allocation5 [shape = 'u8[524288]{0}', space=vmem, size = 0x80000, scoped, tag = 'output window, operand 0']
    %8 = vsyncpa [#allocation3], 0
    %s9 = scalar_lea.sflag [#allocation3], 1
    %10 = vsyncpa %s9, 0
    %11 = vsyncpa [#allocation4], 0
    %s12 = scalar_lea.sflag [#allocation4], 1
    %13 = vsyncpa %s12, 0
    loop: start=0, step=1, limit=4
    $region2: #{tpu_custom_call.1} parent=1 // loop_pre_header
      _
    $region3: #{tpu_custom_call.1} parent=1 // loop_header
      %s15 = sphi 0, %s19
      %p16 = scmp.ge.s32.totalorder %s15, 4
      %s25 = sphi 0, %s27
      %s28 = sphi 0, %s25
      %s29 = sphi 0, %s28
      %s45 = sphi 0, %s29
      %s51 = sphi 0, %s53
      %s54 = sphi 0, %s51
      %s55 = sphi 0, %s54
      %s71 = sphi 0, %s55
      %s75 = sphi 0, %s75
      %s77 = sphi 0, %s75
      %s78 = sphi 0, %s77
      %s92 = sphi 0, %s78
      %s98 = sphi 0, %s100
      %s101 = sphi 0, %s98
      %s102 = sphi 0, %s101
      %s118 = sphi 0, %s102
    $region4: #{tpu_custom_call.1} parent=1 // loop_header_branch
      %18 = sbr.rel (%p16) target = $region8
    $region5: #{tpu_custom_call.1} parent=1 // loop_body
      %s20 = ssub.s32 %s15, 1
      %s21 = ssub.s32 %s15, 2
      %s22 = sadd.s32 %s15, 1
      %s23 = ssub.s32 %s15, %s22
      %p24 = scmp.eq.s32.totalorder %s23, 0
      %s26 = sadd.s32 %s25, 1
      %s27 = scalar_select %p24, %s25, %s26
      %p30 = pneg %p24
      %p31 = scmp.eq.s32.totalorder %s15, 1
      %p32 = por %p30, %p31
      %p33 = scmp.ne.s32.totalorder %s25, %s28
      %p34 = scmp.eq.s32.totalorder %s15, 0
      %p35 = por %p33, %p34
      %p36 = scmp.ne.s32.totalorder %s25, %s28
      %p37 = scmp.eq.s32.totalorder %s20, 1
      %p38 = por %p36, %p37
      %p39 = scmp.ne.s32.totalorder %s28, %s29
      %p40 = scmp.eq.s32.totalorder %s20, 0
      %p41 = por %p39, %p40
      %p42 = scmp.ne.s32.totalorder %s28, %s29
      %p43 = scmp.eq.s32.totalorder %s21, 1
      %p44 = por %p42, %p43
      %p46 = scmp.ne.s32.totalorder %s29, %s45
      %p47 = scmp.eq.s32.totalorder %s21, 0
      %p48 = por %p46, %p47
      %s49 = ssub.s32 %s15, %s22
      %p50 = scmp.eq.s32.totalorder %s49, 0
      %s52 = sadd.s32 %s51, 1
      %s53 = scalar_select %p50, %s51, %s52
      %p56 = pneg %p50
      %p57 = scmp.eq.s32.totalorder %s15, 1
      %p58 = por %p56, %p57
      %p59 = scmp.ne.s32.totalorder %s51, %s54
      %p60 = scmp.eq.s32.totalorder %s15, 0
      %p61 = por %p59, %p60
      %p62 = scmp.ne.s32.totalorder %s51, %s54
      %p63 = scmp.eq.s32.totalorder %s20, 1
      %p64 = por %p62, %p63
      %p65 = scmp.ne.s32.totalorder %s54, %s55
      %p66 = scmp.eq.s32.totalorder %s20, 0
      %p67 = por %p65, %p66
      %p68 = scmp.ne.s32.totalorder %s54, %s55
      %p69 = scmp.eq.s32.totalorder %s21, 1
      %p70 = por %p68, %p69
      %p72 = scmp.ne.s32.totalorder %s55, %s71
      %p73 = scmp.eq.s32.totalorder %s21, 0
      %p74 = por %p72, %p73
      %s76 = sadd.s32 %s75, 1
      %p79 = scmp.eq.s32.totalorder %s15, 1
      %p80 = scmp.ne.s32.totalorder %s75, %s77
      %p81 = scmp.eq.s32.totalorder %s15, 0
      %p82 = por %p80, %p81
      %p83 = scmp.ne.s32.totalorder %s75, %s77
      %p84 = scmp.eq.s32.totalorder %s20, 1
      %p85 = por %p83, %p84
      %p86 = scmp.ne.s32.totalorder %s77, %s78
      %p87 = scmp.eq.s32.totalorder %s20, 0
      %p88 = por %p86, %p87
      %p89 = scmp.ne.s32.totalorder %s77, %s78
      %p90 = scmp.eq.s32.totalorder %s21, 1
      %p91 = por %p89, %p90
      %p93 = scmp.ne.s32.totalorder %s78, %s92
      %p94 = scmp.eq.s32.totalorder %s21, 0
      %p95 = por %p93, %p94
      %s96 = ssub.s32 %s15, %s22
      %p97 = scmp.eq.s32.totalorder %s96, 0
      %s99 = sadd.s32 %s98, 1
      %s100 = scalar_select %p97, %s98, %s99
      %p103 = pneg %p97
      %p104 = scmp.eq.s32.totalorder %s15, 1
      %p105 = por %p103, %p104
      %p106 = scmp.ne.s32.totalorder %s98, %s101
      %p107 = scmp.eq.s32.totalorder %s15, 0
      %p108 = por %p106, %p107
      %p109 = scmp.ne.s32.totalorder %s98, %s101
      %p110 = scmp.eq.s32.totalorder %s20, 1
      %p111 = por %p109, %p110
      %p112 = scmp.ne.s32.totalorder %s101, %s102
      %p113 = scmp.eq.s32.totalorder %s20, 0
      %p114 = por %p112, %p113
      %p115 = scmp.ne.s32.totalorder %s101, %s102
      %p116 = scmp.eq.s32.totalorder %s21, 1
      %p117 = por %p115, %p116
      %p119 = scmp.ne.s32.totalorder %s102, %s118
      %p120 = scmp.eq.s32.totalorder %s21, 0
      %p121 = por %p119, %p120
      %p122 = scmp.le.s32.totalorder 1, %s15
      %p123 = scmp.lt.s32.totalorder %s15, 3
      %p124 = pnand %p122, %p123
      %p125 = pneg %p124
      // Predicated region
      $region9: #{tpu_custom_call.1} parent=5 // pred_check
        _
      $region10: #{tpu_custom_call.1} parent=5 // pred_check_branch
        %127 = sbr.rel (%p124) target = $region12
      $region11: #{tpu_custom_call.1} parent=5 // pred_region
        %s128 = ssub.s32 %s15, 1
        // Predicated region
        $region13: #{tpu_custom_call.1} parent=11 // pred_check
          %p129 = pneg %p88
        $region14: #{tpu_custom_call.1} parent=11 // pred_check_branch
          %131 = sbr.rel (%p129) target = $region16
        $region15: #{tpu_custom_call.1} parent=11 // pred_region
          _
        $region16: #{tpu_custom_call.1} parent=11 // pred_fallthru
          _
      $region12: #{tpu_custom_call.1} parent=5 // pred_fallthru
        _
      %p132 = scmp.lt.s32.totalorder %s15, 2
      // Predicated region
      $region17: #{tpu_custom_call.1} parent=5 // pred_check
        %p133 = pneg %p132
      $region18: #{tpu_custom_call.1} parent=5 // pred_check_branch
        %135 = sbr.rel (%p133) target = $region20
      $region19: #{tpu_custom_call.1} parent=5 // pred_region
        // Predicated region
        $region21: #{tpu_custom_call.1} parent=19 // pred_check
          %p136 = pneg %p35
        $region22: #{tpu_custom_call.1} parent=19 // pred_check_branch
          %138 = sbr.rel (%p136) target = $region24
        $region23: #{tpu_custom_call.1} parent=19 // pred_region
          %s139 = sand.u32 %s25, 1
          %s140 = scalar_lea.sflag [#allocation3], %s139
          %s141 = sand.u32 %s25, 1
          %s142 = smul.addr %s141, 512
          %s143 = scalar_lea.vmem [#allocation2], %s142
          %s144 = smul.u32 16, %s15
          %s146 = ssub.s32 8192, 8192
          %147 = vsyncadd %s140, %s146
          %s148 = smul.addr %s144, 4
          %s149 = smul.addr %s148, 128
          %s150 = scalar_lea.hbm %s0, %s149
          %s151 = sshll.u32 %s143, 4
          %s152 = int_to_ptr.vmem [resolvable:$true] %s151
          %157 = dma.hbm_to_vmem [thread:$0]  %s150, 8192, %s152, %s140, 512, 512, 32
        $region24: #{tpu_custom_call.1} parent=19 // pred_fallthru
          _
        // Predicated region
        $region25: #{tpu_custom_call.1} parent=19 // pred_check
          %p158 = pneg %p61
        $region26: #{tpu_custom_call.1} parent=19 // pred_check_branch
          %160 = sbr.rel (%p158) target = $region28
        $region27: #{tpu_custom_call.1} parent=19 // pred_region
          %s161 = smul.u32 16, %s15
          %p162 = scmp.lt.s32.totalorder %s161, 31
          %s163 = scalar_select %p162, %s161, 31
          %s164 = smul.addr %s163, 8
          %s165 = scalar_lea.vmem %s1, %s164
          %s166 = smul.u32 16, %s15
        $region28: #{tpu_custom_call.1} parent=19 // pred_fallthru
          _
      $region20: #{tpu_custom_call.1} parent=5 // pred_fallthru
        _
      %p167 = scmp.le.s32.totalorder 1, %s15
      %p168 = scmp.lt.s32.totalorder %s15, 3
      %p169 = pnand %p167, %p168
      %p170 = pneg %p169
      // Predicated region
      $region29: #{tpu_custom_call.1} parent=5 // pred_check
        _
      $region30: #{tpu_custom_call.1} parent=5 // pred_check_branch
        %172 = sbr.rel (%p169) target = $region32
      $region31: #{tpu_custom_call.1} parent=5 // pred_region
        %s173 = ssub.s32 %s15, 1
        %s174 = sand.u32 %s28, 1
        %s175 = scalar_lea.sflag [#allocation3], %s174
        %s176 = sand.u32 %s28, 1
        %s177 = smul.addr %s176, 512
        %s178 = scalar_lea.vmem [#allocation2], %s177
        // Predicated region
        $region33: #{tpu_custom_call.1} parent=31 // pred_check
          %p179 = pneg %p41
        $region34: #{tpu_custom_call.1} parent=31 // pred_check_branch
          %181 = sbr.rel (%p179) target = $region36
        $region35: #{tpu_custom_call.1} parent=31 // pred_region
          %182 = dma.done %s175, 8192
        $region36: #{tpu_custom_call.1} parent=31 // pred_fallthru
          _
        %s183 = sand.u32 %s28, 1
        %s184 = scalar_lea.sflag [#allocation3], %s183
        %s185 = sand.u32 %s28, 1
        %s186 = smul.addr %s185, 512
        %s187 = scalar_lea.vmem [#allocation2], %s186
        %p188 = pneg %p41
        %p189 = pneg %p38
        %s190 = smul.u32 16, %s20
        %p191 = scmp.lt.s32.totalorder %s190, 31
        %s192 = scalar_select %p191, %s190, 31
        %s193 = smul.addr %s192, 8
        %s194 = scalar_lea.vmem %s1, %s193
        %p195 = pneg %p67
        %p196 = pneg %p64
        %p197 = pneg %p88
        %p198 = pneg %p85
        %p199 = pneg %p114
        %p200 = pneg %p111
        %s201 = sand.u32 %s101, 1
        %s202 = scalar_lea.sflag [#allocation4], %s201
        %s203 = sand.u32 %s101, 1
        %s204 = smul.addr %s203, 512
        %s205 = scalar_lea.vmem [#allocation5], %s204
        %s206 = smul.u32 16, %s20
        %s207 = smul.u32 16, %s20
        %p208 = scmp.lt.s32.totalorder %s207, 31
        %s209 = scalar_select %p208, %s207, 31
        %s210 = smul.addr %s209, 8
        %s211 = scalar_lea.vmem %s1, %s210
        %s212 = smul.u32 16, %s20
        %s213 = smul.u32 16, %s20
        %v214 = vld [vmem:[%s211] sm:$0xff]
        %v215 = vld [vmem:[%s211 + $0x8] sm:$0xff]
        %v216 = vld [vmem:[%s211 + $0x10] sm:$0xff]
        %v217 = vld [vmem:[%s211 + $0x18] sm:$0xff]
        %v218 = vld [vmem:[%s211 + $0x20] sm:$0xff]
        %v219 = vld [vmem:[%s211 + $0x28] sm:$0xff]
        %v220 = vld [vmem:[%s211 + $0x30] sm:$0xff]
        %v221 = vld [vmem:[%s211 + $0x38] sm:$0xff]
        %v222 = vld [vmem:[%s211 + $0x40] sm:$0xff]
        %v223 = vld [vmem:[%s211 + $0x48] sm:$0xff]
        %v224 = vld [vmem:[%s211 + $0x50] sm:$0xff]
        %v225 = vld [vmem:[%s211 + $0x58] sm:$0xff]
        %v226 = vld [vmem:[%s211 + $0x60] sm:$0xff]
        %v227 = vld [vmem:[%s211 + $0x68] sm:$0xff]
        %v228 = vld [vmem:[%s211 + $0x70] sm:$0xff]
        %v229 = vld [vmem:[%s211 + $0x78] sm:$0xff]
        %v230 = vld [vmem:[%s2] sm:$0x1]
        %232 = vset.pattern.permute.xlu0 0
        %233 = vperm.xlu0 %232, %v214
        %v234 = vpop.permute.xlu0 %233
        %237 = vset.pattern.permute.xlu0 0
        %238 = vperm.xlu0 %237, %v215
        %v239 = vpop.permute.xlu0 %238
        %242 = vset.pattern.permute.xlu0 0
        %243 = vperm.xlu0 %242, %v216
        %v244 = vpop.permute.xlu0 %243
        %247 = vset.pattern.permute.xlu0 0
        %248 = vperm.xlu0 %247, %v217
        %v249 = vpop.permute.xlu0 %248
        %252 = vset.pattern.permute.xlu0 0
        %253 = vperm.xlu0 %252, %v218
        %v254 = vpop.permute.xlu0 %253
        %257 = vset.pattern.permute.xlu0 0
        %258 = vperm.xlu0 %257, %v219
        %v259 = vpop.permute.xlu0 %258
        %262 = vset.pattern.permute.xlu0 0
        %263 = vperm.xlu0 %262, %v220
        %v264 = vpop.permute.xlu0 %263
        %267 = vset.pattern.permute.xlu0 0
        %268 = vperm.xlu0 %267, %v221
        %v269 = vpop.permute.xlu0 %268
        %272 = vset.pattern.permute.xlu0 0
        %273 = vperm.xlu0 %272, %v222
        %v274 = vpop.permute.xlu0 %273
        %277 = vset.pattern.permute.xlu0 0
        %278 = vperm.xlu0 %277, %v223
        %v279 = vpop.permute.xlu0 %278
        %282 = vset.pattern.permute.xlu0 0
        %283 = vperm.xlu0 %282, %v224
        %v284 = vpop.permute.xlu0 %283
        %287 = vset.pattern.permute.xlu0 0
        %288 = vperm.xlu0 %287, %v225
        %v289 = vpop.permute.xlu0 %288
        %292 = vset.pattern.permute.xlu0 0
        %293 = vperm.xlu0 %292, %v226
        %v294 = vpop.permute.xlu0 %293
        %297 = vset.pattern.permute.xlu0 0
        %298 = vperm.xlu0 %297, %v227
        %v299 = vpop.permute.xlu0 %298
        %302 = vset.pattern.permute.xlu0 0
        %303 = vperm.xlu0 %302, %v228
        %v304 = vpop.permute.xlu0 %303
        %307 = vset.pattern.permute.xlu0 0
        %308 = vperm.xlu0 %307, %v229
        %v309 = vpop.permute.xlu0 %308
        %v312 = vlaneseq
        %v313 = vshrl.u32 %v312, 7
        %v314 = vsub.s32 0, %v313
        %v315 = vrot.slane %v230, %v314
        %v317 = vmul.f32 %v234, %v315
        %v318 = vmul.f32 %v239, %v315
        %v319 = vmul.f32 %v244, %v315
        %v320 = vmul.f32 %v249, %v315
        %v321 = vmul.f32 %v254, %v315
        %v322 = vmul.f32 %v259, %v315
        %v323 = vmul.f32 %v264, %v315
        %v324 = vmul.f32 %v269, %v315
        %v325 = vmul.f32 %v274, %v315
        %v326 = vmul.f32 %v279, %v315
        %v327 = vmul.f32 %v284, %v315
        %v328 = vmul.f32 %v289, %v315
        %v329 = vmul.f32 %v294, %v315
        %v330 = vmul.f32 %v299, %v315
        %v331 = vmul.f32 %v304, %v315
        %v332 = vmul.f32 %v309, %v315
        %v333 = vand.u32 2147483647, %v317
        %vm334 = vcmp.le.f32.partialorder %v333, 0.7853982
        %vm335 = vcmp.lt.s32.totalorder %v317, 0
        %v336 = vand.u32 %v317, 2139095040
        %v337 = vshrl.u32 %v336, 23
        %v338 = vsub.s32 %v337, 127
        %v339 = vand.u32 2147483647, %v317
        %v340 = vand.u32 %v339, 8388607
        %v341 = vor.u32 %v340, 8388608
        %v342 = vsub.s32 0, %v341
        %v343 = vadd.s32 %v338, 1
        %vm344 = vcmp.gt.s32.totalorder %v343, 0
        %v345 = vsel %vm344, %v343, 0
        %v346 = vshrl.u32 %v345, 5
        %v347 = vand.u32 %v345, 31
        %v348 = vsub.s32 32, %v347
        %v349 = vshrl.u32 683565275, %v348
        %v350 = vshll.u32 683565275, %v347
        %v351 = vshrl.u32 2475754826, %v348
        %v352 = vor.u32 %v350, %v351
        %v353 = vshll.u32 2475754826, %v347
        %v354 = vshrl.u32 2131351028, %v348
        %v355 = vor.u32 %v353, %v354
        %v356 = vshll.u32 2131351028, %v347
        %v357 = vshrl.u32 2102212464, %v348
        %v358 = vor.u32 %v356, %v357
        %v359 = vshll.u32 2102212464, %v347
        %v360 = vshrl.u32 920167782, %v348
        %v361 = vor.u32 %v359, %v360
        %v362 = vshll.u32 920167782, %v347
        %v363 = vshrl.u32 1326507024, %v348
        %v364 = vor.u32 %v362, %v363
        %vm365 = vcmp.lt.s32.totalorder %v346, 1
        %vm366 = vcmp.lt.s32.totalorder %v346, 2
        %vm367 = vcmp.lt.s32.totalorder %v346, 3
        %vm368 = vcmp.lt.s32.totalorder %v346, 4
        %v369 = vsel %vm365, %v349, %v352
        %v370 = vsel %vm368, %v358, 2102212464
        %v371 = vsel %vm367, %v355, %v370
        %v372 = vsel %vm366, %v369, %v371
        %v373 = vsel %vm365, %v352, %v355
        %v374 = vsel %vm368, %v361, 920167782
        %v375 = vsel %vm367, %v358, %v374
        %v376 = vsel %vm366, %v373, %v375
        %v377 = vsel %vm365, %v355, %v358
        %v378 = vsel %vm368, %v364, 1326507024
        %v379 = vsel %vm367, %v361, %v378
        %v380 = vsel %vm366, %v377, %v379
        %v381 = vshll.u32 %v341, 8
        %v382 = vmul.u32.u64.compose %v381, %v380
        %v383 = vextract.low.u32 %v382
        %v384 = vextract.high.u32 %v382
        %v385 = vmul.u32.u64.compose %v381, %v376
        %v386 = vextract.low.u32 %v385
        %v387 = vextract.high.u32 %v385
        %v388 = vmul.u32 %v381, %v372
        %v389 = vadd.s32 %v384, %v386
        %vm390 = vc.u32 %v384, %v386
        %v391 = vadd.s32 %v387, 1
        %v392 = vsel %vm390, %v391, %v387
        %v393 = vadd.s32 %v388, %v392
        %v394 = vadd.s32 %v393, 536870912
        %v395 = vshrl.u32 %v394, 30
        %v396 = vshll.u32 %v395, 30
        %v397 = vsub.s32 %v393, %v396
        %vm398 = vcmp.lt.s32.totalorder %v397, 0
        %v399 = vsub.s32 0, %v397
        %v400 = vsel %vm398, %v399, %v397
        %v401 = vclz %v400
        %v402 = vsub.s32 %v401, 2
        %vm403 = vcmp.gt.s32.totalorder 0, %v402
        %v404 = vsel %vm403, 0, %v402
        %v405 = vsub.s32 32, %v404
        %v406 = vshll.u32 %v397, %v404
        %v407 = vshrl.u32 %v389, %v405
        %v408 = vor.u32 %v406, %v407
        %v409 = vsub.s32 4294967266, %v404
        %v410 = vadd.s32 %v409, 127
        %v411 = vshll.u32 %v410, 23
        %v412 = vor.u32 4788187, %v411
        %v413 = vand.u32 2147483647, %v412
        %v415 = vcvt.s32.f32 %v408
        %v416 = vmul.f32 %v415, %v413
        %v417 = vxor.u32 %v416, 2147483648
        %v418 = vsel %vm335, %v417, %v416
        %v419 = vsub.s32 4, %v395
        %v420 = vsel %vm335, %v419, %v395
        %v421 = vsel %vm334, %v317, %v418
        %v422 = vsel %vm334, 0, %v420
        %v423 = vcosq.f32.pop %v421
        %v424 = vsinq.f32.pop %v421
        %vm425 = vweird.f32 %v317
        %v426 = vand.u32 %v422, 3
        %vm427 = vcmp.lt.s32.totalorder %v426, 2
        %vm428 = vcmp.eq.s32.totalorder %v426, 0
        %v429 = vxor.u32 %v424, 2147483648
        %v430 = vsel %vm428, %v423, %v429
        %vm431 = vcmp.eq.s32.totalorder %v426, 2
        %v432 = vxor.u32 %v423, 2147483648
        %v433 = vsel %vm431, %v432, %v424
        %v434 = vsel %vm427, %v430, %v433
        %v435 = vsel %vm425, nan, %v434
        %v436 = vand.u32 2147483647, %v318
        %vm437 = vcmp.le.f32.partialorder %v436, 0.7853982
        %vm438 = vcmp.lt.s32.totalorder %v318, 0
        %v439 = vand.u32 %v318, 2139095040
        %v440 = vshrl.u32 %v439, 23
        %v441 = vsub.s32 %v440, 127
        %v442 = vand.u32 2147483647, %v318
        %v443 = vand.u32 %v442, 8388607
        %v444 = vor.u32 %v443, 8388608
        %v445 = vsub.s32 0, %v444
        %v446 = vadd.s32 %v441, 1
        %vm447 = vcmp.gt.s32.totalorder %v446, 0
        %v448 = vsel %vm447, %v446, 0
        %v449 = vshrl.u32 %v448, 5
        %v450 = vand.u32 %v448, 31
        %v451 = vsub.s32 32, %v450
        %v452 = vshrl.u32 683565275, %v451
        %v453 = vshll.u32 683565275, %v450
        %v454 = vshrl.u32 2475754826, %v451
        %v455 = vor.u32 %v453, %v454
        %v456 = vshll.u32 2475754826, %v450
        %v457 = vshrl.u32 2131351028, %v451
        %v458 = vor.u32 %v456, %v457
        %v459 = vshll.u32 2131351028, %v450
        %v460 = vshrl.u32 2102212464, %v451
        %v461 = vor.u32 %v459, %v460
        %v462 = vshll.u32 2102212464, %v450
        %v463 = vshrl.u32 920167782, %v451
        %v464 = vor.u32 %v462, %v463
        %v465 = vshll.u32 920167782, %v450
        %v466 = vshrl.u32 1326507024, %v451
        %v467 = vor.u32 %v465, %v466
        %vm468 = vcmp.lt.s32.totalorder %v449, 1
        %vm469 = vcmp.lt.s32.totalorder %v449, 2
        %vm470 = vcmp.lt.s32.totalorder %v449, 3
        %vm471 = vcmp.lt.s32.totalorder %v449, 4
        %v472 = vsel %vm468, %v452, %v455
        %v473 = vsel %vm471, %v461, 2102212464
        %v474 = vsel %vm470, %v458, %v473
        %v475 = vsel %vm469, %v472, %v474
        %v476 = vsel %vm468, %v455, %v458
        %v477 = vsel %vm471, %v464, 920167782
        %v478 = vsel %vm470, %v461, %v477
        %v479 = vsel %vm469, %v476, %v478
        %v480 = vsel %vm468, %v458, %v461
        %v481 = vsel %vm471, %v467, 1326507024
        %v482 = vsel %vm470, %v464, %v481
        %v483 = vsel %vm469, %v480, %v482
        %v484 = vshll.u32 %v444, 8
        %v485 = vmul.u32.u64.compose %v484, %v483
        %v486 = vextract.low.u32 %v485
        %v487 = vextract.high.u32 %v485
        %v488 = vmul.u32.u64.compose %v484, %v479
        %v489 = vextract.low.u32 %v488
        %v490 = vextract.high.u32 %v488
        %v491 = vmul.u32 %v484, %v475
        %v492 = vadd.s32 %v487, %v489
        %vm493 = vc.u32 %v487, %v489
        %v494 = vadd.s32 %v490, 1
        %v495 = vsel %vm493, %v494, %v490
        %v496 = vadd.s32 %v491, %v495
        %v497 = vadd.s32 %v496, 536870912
        %v498 = vshrl.u32 %v497, 30
        %v499 = vshll.u32 %v498, 30
        %v500 = vsub.s32 %v496, %v499
        %vm501 = vcmp.lt.s32.totalorder %v500, 0
        %v502 = vsub.s32 0, %v500
        %v503 = vsel %vm501, %v502, %v500
        %v504 = vclz %v503
        %v505 = vsub.s32 %v504, 2
        %vm506 = vcmp.gt.s32.totalorder 0, %v505
        %v507 = vsel %vm506, 0, %v505
        %v508 = vsub.s32 32, %v507
        %v509 = vshll.u32 %v500, %v507
        %v510 = vshrl.u32 %v492, %v508
        %v511 = vor.u32 %v509, %v510
        %v512 = vsub.s32 4294967266, %v507
        %v513 = vadd.s32 %v512, 127
        %v514 = vshll.u32 %v513, 23
        %v515 = vor.u32 4788187, %v514
        %v516 = vand.u32 2147483647, %v515
        %v518 = vcvt.s32.f32 %v511
        %v519 = vmul.f32 %v518, %v516
        %v520 = vxor.u32 %v519, 2147483648
        %v521 = vsel %vm438, %v520, %v519
        %v522 = vsub.s32 4, %v498
        %v523 = vsel %vm438, %v522, %v498
        %v524 = vsel %vm437, %v318, %v521
        %v525 = vsel %vm437, 0, %v523
        %v526 = vcosq.f32.pop %v524
        %v527 = vsinq.f32.pop %v524
        %vm528 = vweird.f32 %v318
        %v529 = vand.u32 %v525, 3
        %vm530 = vcmp.lt.s32.totalorder %v529, 2
        %vm531 = vcmp.eq.s32.totalorder %v529, 0
        %v532 = vxor.u32 %v527, 2147483648
        %v533 = vsel %vm531, %v526, %v532
        %vm534 = vcmp.eq.s32.totalorder %v529, 2
        %v535 = vxor.u32 %v526, 2147483648
        %v536 = vsel %vm534, %v535, %v527
        %v537 = vsel %vm530, %v533, %v536
        %v538 = vsel %vm528, nan, %v537
        %v539 = vand.u32 2147483647, %v319
        %vm540 = vcmp.le.f32.partialorder %v539, 0.7853982
        %vm541 = vcmp.lt.s32.totalorder %v319, 0
        %v542 = vand.u32 %v319, 2139095040
        %v543 = vshrl.u32 %v542, 23
        %v544 = vsub.s32 %v543, 127
        %v545 = vand.u32 2147483647, %v319
        %v546 = vand.u32 %v545, 8388607
        %v547 = vor.u32 %v546, 8388608
        %v548 = vsub.s32 0, %v547
        %v549 = vadd.s32 %v544, 1
        %vm550 = vcmp.gt.s32.totalorder %v549, 0
        %v551 = vsel %vm550, %v549, 0
        %v552 = vshrl.u32 %v551, 5
        %v553 = vand.u32 %v551, 31
        %v554 = vsub.s32 32, %v553
        %v555 = vshrl.u32 683565275, %v554
        %v556 = vshll.u32 683565275, %v553
        %v557 = vshrl.u32 2475754826, %v554
        %v558 = vor.u32 %v556, %v557
        %v559 = vshll.u32 2475754826, %v553
        %v560 = vshrl.u32 2131351028, %v554
        %v561 = vor.u32 %v559, %v560
        %v562 = vshll.u32 2131351028, %v553
        %v563 = vshrl.u32 2102212464, %v554
        %v564 = vor.u32 %v562, %v563
        %v565 = vshll.u32 2102212464, %v553
        %v566 = vshrl.u32 920167782, %v554
        %v567 = vor.u32 %v565, %v566
        %v568 = vshll.u32 920167782, %v553
        %v569 = vshrl.u32 1326507024, %v554
        %v570 = vor.u32 %v568, %v569
        %vm571 = vcmp.lt.s32.totalorder %v552, 1
        %vm572 = vcmp.lt.s32.totalorder %v552, 2
        %vm573 = vcmp.lt.s32.totalorder %v552, 3
        %vm574 = vcmp.lt.s32.totalorder %v552, 4
        %v575 = vsel %vm571, %v555, %v558
        %v576 = vsel %vm574, %v564, 2102212464
        %v577 = vsel %vm573, %v561, %v576
        %v578 = vsel %vm572, %v575, %v577
        %v579 = vsel %vm571, %v558, %v561
        %v580 = vsel %vm574, %v567, 920167782
        %v581 = vsel %vm573, %v564, %v580
        %v582 = vsel %vm572, %v579, %v581
        %v583 = vsel %vm571, %v561, %v564
        %v584 = vsel %vm574, %v570, 1326507024
        %v585 = vsel %vm573, %v567, %v584
        %v586 = vsel %vm572, %v583, %v585
        %v587 = vshll.u32 %v547, 8
        %v588 = vmul.u32.u64.compose %v587, %v586
        %v589 = vextract.low.u32 %v588
        %v590 = vextract.high.u32 %v588
        %v591 = vmul.u32.u64.compose %v587, %v582
        %v592 = vextract.low.u32 %v591
        %v593 = vextract.high.u32 %v591
        %v594 = vmul.u32 %v587, %v578
        %v595 = vadd.s32 %v590, %v592
        %vm596 = vc.u32 %v590, %v592
        %v597 = vadd.s32 %v593, 1
        %v598 = vsel %vm596, %v597, %v593
        %v599 = vadd.s32 %v594, %v598
        %v600 = vadd.s32 %v599, 536870912
        %v601 = vshrl.u32 %v600, 30
        %v602 = vshll.u32 %v601, 30
        %v603 = vsub.s32 %v599, %v602
        %vm604 = vcmp.lt.s32.totalorder %v603, 0
        %v605 = vsub.s32 0, %v603
        %v606 = vsel %vm604, %v605, %v603
        %v607 = vclz %v606
        %v608 = vsub.s32 %v607, 2
        %vm609 = vcmp.gt.s32.totalorder 0, %v608
        %v610 = vsel %vm609, 0, %v608
        %v611 = vsub.s32 32, %v610
        %v612 = vshll.u32 %v603, %v610
        %v613 = vshrl.u32 %v595, %v611
        %v614 = vor.u32 %v612, %v613
        %v615 = vsub.s32 4294967266, %v610
        %v616 = vadd.s32 %v615, 127
        %v617 = vshll.u32 %v616, 23
        %v618 = vor.u32 4788187, %v617
        %v619 = vand.u32 2147483647, %v618
        %v621 = vcvt.s32.f32 %v614
        %v622 = vmul.f32 %v621, %v619
        %v623 = vxor.u32 %v622, 2147483648
        %v624 = vsel %vm541, %v623, %v622
        %v625 = vsub.s32 4, %v601
        %v626 = vsel %vm541, %v625, %v601
        %v627 = vsel %vm540, %v319, %v624
        %v628 = vsel %vm540, 0, %v626
        %v629 = vcosq.f32.pop %v627
        %v630 = vsinq.f32.pop %v627
        %vm631 = vweird.f32 %v319
        %v632 = vand.u32 %v628, 3
        %vm633 = vcmp.lt.s32.totalorder %v632, 2
        %vm634 = vcmp.eq.s32.totalorder %v632, 0
        %v635 = vxor.u32 %v630, 2147483648
        %v636 = vsel %vm634, %v629, %v635
        %vm637 = vcmp.eq.s32.totalorder %v632, 2
        %v638 = vxor.u32 %v629, 2147483648
        %v639 = vsel %vm637, %v638, %v630
        %v640 = vsel %vm633, %v636, %v639
        %v641 = vsel %vm631, nan, %v640
        %v642 = vand.u32 2147483647, %v320
        %vm643 = vcmp.le.f32.partialorder %v642, 0.7853982
        %vm644 = vcmp.lt.s32.totalorder %v320, 0
        %v645 = vand.u32 %v320, 2139095040
        %v646 = vshrl.u32 %v645, 23
        %v647 = vsub.s32 %v646, 127
        %v648 = vand.u32 2147483647, %v320
        %v649 = vand.u32 %v648, 8388607
        %v650 = vor.u32 %v649, 8388608
        %v651 = vsub.s32 0, %v650
        %v652 = vadd.s32 %v647, 1
        %vm653 = vcmp.gt.s32.totalorder %v652, 0
        %v654 = vsel %vm653, %v652, 0
        %v655 = vshrl.u32 %v654, 5
        %v656 = vand.u32 %v654, 31
        %v657 = vsub.s32 32, %v656
        %v658 = vshrl.u32 683565275, %v657
        %v659 = vshll.u32 683565275, %v656
        %v660 = vshrl.u32 2475754826, %v657
        %v661 = vor.u32 %v659, %v660
        %v662 = vshll.u32 2475754826, %v656
        %v663 = vshrl.u32 2131351028, %v657
        %v664 = vor.u32 %v662, %v663
        %v665 = vshll.u32 2131351028, %v656
        %v666 = vshrl.u32 2102212464, %v657
        %v667 = vor.u32 %v665, %v666
        %v668 = vshll.u32 2102212464, %v656
        %v669 = vshrl.u32 920167782, %v657
        %v670 = vor.u32 %v668, %v669
        %v671 = vshll.u32 920167782, %v656
        %v672 = vshrl.u32 1326507024, %v657
        %v673 = vor.u32 %v671, %v672
        %vm674 = vcmp.lt.s32.totalorder %v655, 1
        %vm675 = vcmp.lt.s32.totalorder %v655, 2
        %vm676 = vcmp.lt.s32.totalorder %v655, 3
        %vm677 = vcmp.lt.s32.totalorder %v655, 4
        %v678 = vsel %vm674, %v658, %v661
        %v679 = vsel %vm677, %v667, 2102212464
        %v680 = vsel %vm676, %v664, %v679
        %v681 = vsel %vm675, %v678, %v680
        %v682 = vsel %vm674, %v661, %v664
        %v683 = vsel %vm677, %v670, 920167782
        %v684 = vsel %vm676, %v667, %v683
        %v685 = vsel %vm675, %v682, %v684
        %v686 = vsel %vm674, %v664, %v667
        %v687 = vsel %vm677, %v673, 1326507024
        %v688 = vsel %vm676, %v670, %v687
        %v689 = vsel %vm675, %v686, %v688
        %v690 = vshll.u32 %v650, 8
        %v691 = vmul.u32.u64.compose %v690, %v689
        %v692 = vextract.low.u32 %v691
        %v693 = vextract.high.u32 %v691
        %v694 = vmul.u32.u64.compose %v690, %v685
        %v695 = vextract.low.u32 %v694
        %v696 = vextract.high.u32 %v694
        %v697 = vmul.u32 %v690, %v681
        %v698 = vadd.s32 %v693, %v695
        %vm699 = vc.u32 %v693, %v695
        %v700 = vadd.s32 %v696, 1
        %v701 = vsel %vm699, %v700, %v696
        %v702 = vadd.s32 %v697, %v701
        %v703 = vadd.s32 %v702, 536870912
        %v704 = vshrl.u32 %v703, 30
        %v705 = vshll.u32 %v704, 30
        %v706 = vsub.s32 %v702, %v705
        %vm707 = vcmp.lt.s32.totalorder %v706, 0
        %v708 = vsub.s32 0, %v706
        %v709 = vsel %vm707, %v708, %v706
        %v710 = vclz %v709
        %v711 = vsub.s32 %v710, 2
        %vm712 = vcmp.gt.s32.totalorder 0, %v711
        %v713 = vsel %vm712, 0, %v711
        %v714 = vsub.s32 32, %v713
        %v715 = vshll.u32 %v706, %v713
        %v716 = vshrl.u32 %v698, %v714
        %v717 = vor.u32 %v715, %v716
        %v718 = vsub.s32 4294967266, %v713
        %v719 = vadd.s32 %v718, 127
        %v720 = vshll.u32 %v719, 23
        %v721 = vor.u32 4788187, %v720
        %v722 = vand.u32 2147483647, %v721
        %v724 = vcvt.s32.f32 %v717
        %v725 = vmul.f32 %v724, %v722
        %v726 = vxor.u32 %v725, 2147483648
        %v727 = vsel %vm644, %v726, %v725
        %v728 = vsub.s32 4, %v704
        %v729 = vsel %vm644, %v728, %v704
        %v730 = vsel %vm643, %v320, %v727
        %v731 = vsel %vm643, 0, %v729
        %v732 = vcosq.f32.pop %v730
        %v733 = vsinq.f32.pop %v730
        %vm734 = vweird.f32 %v320
        %v735 = vand.u32 %v731, 3
        %vm736 = vcmp.lt.s32.totalorder %v735, 2
        %vm737 = vcmp.eq.s32.totalorder %v735, 0
        %v738 = vxor.u32 %v733, 2147483648
        %v739 = vsel %vm737, %v732, %v738
        %vm740 = vcmp.eq.s32.totalorder %v735, 2
        %v741 = vxor.u32 %v732, 2147483648
        %v742 = vsel %vm740, %v741, %v733
        %v743 = vsel %vm736, %v739, %v742
        %v744 = vsel %vm734, nan, %v743
        %v745 = vand.u32 2147483647, %v321
        %vm746 = vcmp.le.f32.partialorder %v745, 0.7853982
        %vm747 = vcmp.lt.s32.totalorder %v321, 0
        %v748 = vand.u32 %v321, 2139095040
        %v749 = vshrl.u32 %v748, 23
        %v750 = vsub.s32 %v749, 127
        %v751 = vand.u32 2147483647, %v321
        %v752 = vand.u32 %v751, 8388607
        %v753 = vor.u32 %v752, 8388608
        %v754 = vsub.s32 0, %v753
        %v755 = vadd.s32 %v750, 1
        %vm756 = vcmp.gt.s32.totalorder %v755, 0
        %v757 = vsel %vm756, %v755, 0
        %v758 = vshrl.u32 %v757, 5
        %v759 = vand.u32 %v757, 31
        %v760 = vsub.s32 32, %v759
        %v761 = vshrl.u32 683565275, %v760
        %v762 = vshll.u32 683565275, %v759
        %v763 = vshrl.u32 2475754826, %v760
        %v764 = vor.u32 %v762, %v763
        %v765 = vshll.u32 2475754826, %v759
        %v766 = vshrl.u32 2131351028, %v760
        %v767 = vor.u32 %v765, %v766
        %v768 = vshll.u32 2131351028, %v759
        %v769 = vshrl.u32 2102212464, %v760
        %v770 = vor.u32 %v768, %v769
        %v771 = vshll.u32 2102212464, %v759
        %v772 = vshrl.u32 920167782, %v760
        %v773 = vor.u32 %v771, %v772
        %v774 = vshll.u32 920167782, %v759
        %v775 = vshrl.u32 1326507024, %v760
        %v776 = vor.u32 %v774, %v775
        %vm777 = vcmp.lt.s32.totalorder %v758, 1
        %vm778 = vcmp.lt.s32.totalorder %v758, 2
        %vm779 = vcmp.lt.s32.totalorder %v758, 3
        %vm780 = vcmp.lt.s32.totalorder %v758, 4
        %v781 = vsel %vm777, %v761, %v764
        %v782 = vsel %vm780, %v770, 2102212464
        %v783 = vsel %vm779, %v767, %v782
        %v784 = vsel %vm778, %v781, %v783
        %v785 = vsel %vm777, %v764, %v767
        %v786 = vsel %vm780, %v773, 920167782
        %v787 = vsel %vm779, %v770, %v786
        %v788 = vsel %vm778, %v785, %v787
        %v789 = vsel %vm777, %v767, %v770
        %v790 = vsel %vm780, %v776, 1326507024
        %v791 = vsel %vm779, %v773, %v790
        %v792 = vsel %vm778, %v789, %v791
        %v793 = vshll.u32 %v753, 8
        %v794 = vmul.u32.u64.compose %v793, %v792
        %v795 = vextract.low.u32 %v794
        %v796 = vextract.high.u32 %v794
        %v797 = vmul.u32.u64.compose %v793, %v788
        %v798 = vextract.low.u32 %v797
        %v799 = vextract.high.u32 %v797
        %v800 = vmul.u32 %v793, %v784
        %v801 = vadd.s32 %v796, %v798
        %vm802 = vc.u32 %v796, %v798
        %v803 = vadd.s32 %v799, 1
        %v804 = vsel %vm802, %v803, %v799
        %v805 = vadd.s32 %v800, %v804
        %v806 = vadd.s32 %v805, 536870912
        %v807 = vshrl.u32 %v806, 30
        %v808 = vshll.u32 %v807, 30
        %v809 = vsub.s32 %v805, %v808
        %vm810 = vcmp.lt.s32.totalorder %v809, 0
        %v811 = vsub.s32 0, %v809
        %v812 = vsel %vm810, %v811, %v809
        %v813 = vclz %v812
        %v814 = vsub.s32 %v813, 2
        %vm815 = vcmp.gt.s32.totalorder 0, %v814
        %v816 = vsel %vm815, 0, %v814
        %v817 = vsub.s32 32, %v816
        %v818 = vshll.u32 %v809, %v816
        %v819 = vshrl.u32 %v801, %v817
        %v820 = vor.u32 %v818, %v819
        %v821 = vsub.s32 4294967266, %v816
        %v822 = vadd.s32 %v821, 127
        %v823 = vshll.u32 %v822, 23
        %v824 = vor.u32 4788187, %v823
        %v825 = vand.u32 2147483647, %v824
        %v827 = vcvt.s32.f32 %v820
        %v828 = vmul.f32 %v827, %v825
        %v829 = vxor.u32 %v828, 2147483648
        %v830 = vsel %vm747, %v829, %v828
        %v831 = vsub.s32 4, %v807
        %v832 = vsel %vm747, %v831, %v807
        %v833 = vsel %vm746, %v321, %v830
        %v834 = vsel %vm746, 0, %v832
        %v835 = vcosq.f32.pop %v833
        %v836 = vsinq.f32.pop %v833
        %vm837 = vweird.f32 %v321
        %v838 = vand.u32 %v834, 3
        %vm839 = vcmp.lt.s32.totalorder %v838, 2
        %vm840 = vcmp.eq.s32.totalorder %v838, 0
        %v841 = vxor.u32 %v836, 2147483648
        %v842 = vsel %vm840, %v835, %v841
        %vm843 = vcmp.eq.s32.totalorder %v838, 2
        %v844 = vxor.u32 %v835, 2147483648
        %v845 = vsel %vm843, %v844, %v836
        %v846 = vsel %vm839, %v842, %v845
        %v847 = vsel %vm837, nan, %v846
        %v848 = vand.u32 2147483647, %v322
        %vm849 = vcmp.le.f32.partialorder %v848, 0.7853982
        %vm850 = vcmp.lt.s32.totalorder %v322, 0
        %v851 = vand.u32 %v322, 2139095040
        %v852 = vshrl.u32 %v851, 23
        %v853 = vsub.s32 %v852, 127
        %v854 = vand.u32 2147483647, %v322
        %v855 = vand.u32 %v854, 8388607
        %v856 = vor.u32 %v855, 8388608
        %v857 = vsub.s32 0, %v856
        %v858 = vadd.s32 %v853, 1
        %vm859 = vcmp.gt.s32.totalorder %v858, 0
        %v860 = vsel %vm859, %v858, 0
        %v861 = vshrl.u32 %v860, 5
        %v862 = vand.u32 %v860, 31
        %v863 = vsub.s32 32, %v862
        %v864 = vshrl.u32 683565275, %v863
        %v865 = vshll.u32 683565275, %v862
        %v866 = vshrl.u32 2475754826, %v863
        %v867 = vor.u32 %v865, %v866
        %v868 = vshll.u32 2475754826, %v862
        %v869 = vshrl.u32 2131351028, %v863
        %v870 = vor.u32 %v868, %v869
        %v871 = vshll.u32 2131351028, %v862
        %v872 = vshrl.u32 2102212464, %v863
        %v873 = vor.u32 %v871, %v872
        %v874 = vshll.u32 2102212464, %v862
        %v875 = vshrl.u32 920167782, %v863
        %v876 = vor.u32 %v874, %v875
        %v877 = vshll.u32 920167782, %v862
        %v878 = vshrl.u32 1326507024, %v863
        %v879 = vor.u32 %v877, %v878
        %vm880 = vcmp.lt.s32.totalorder %v861, 1
        %vm881 = vcmp.lt.s32.totalorder %v861, 2
        %vm882 = vcmp.lt.s32.totalorder %v861, 3
        %vm883 = vcmp.lt.s32.totalorder %v861, 4
        %v884 = vsel %vm880, %v864, %v867
        %v885 = vsel %vm883, %v873, 2102212464
        %v886 = vsel %vm882, %v870, %v885
        %v887 = vsel %vm881, %v884, %v886
        %v888 = vsel %vm880, %v867, %v870
        %v889 = vsel %vm883, %v876, 920167782
        %v890 = vsel %vm882, %v873, %v889
        %v891 = vsel %vm881, %v888, %v890
        %v892 = vsel %vm880, %v870, %v873
        %v893 = vsel %vm883, %v879, 1326507024
        %v894 = vsel %vm882, %v876, %v893
        %v895 = vsel %vm881, %v892, %v894
        %v896 = vshll.u32 %v856, 8
        %v897 = vmul.u32.u64.compose %v896, %v895
        %v898 = vextract.low.u32 %v897
        %v899 = vextract.high.u32 %v897
        %v900 = vmul.u32.u64.compose %v896, %v891
        %v901 = vextract.low.u32 %v900
        %v902 = vextract.high.u32 %v900
        %v903 = vmul.u32 %v896, %v887
        %v904 = vadd.s32 %v899, %v901
        %vm905 = vc.u32 %v899, %v901
        %v906 = vadd.s32 %v902, 1
        %v907 = vsel %vm905, %v906, %v902
        %v908 = vadd.s32 %v903, %v907
        %v909 = vadd.s32 %v908, 536870912
        %v910 = vshrl.u32 %v909, 30
        %v911 = vshll.u32 %v910, 30
        %v912 = vsub.s32 %v908, %v911
        %vm913 = vcmp.lt.s32.totalorder %v912, 0
        %v914 = vsub.s32 0, %v912
        %v915 = vsel %vm913, %v914, %v912
        %v916 = vclz %v915
        %v917 = vsub.s32 %v916, 2
        %vm918 = vcmp.gt.s32.totalorder 0, %v917
        %v919 = vsel %vm918, 0, %v917
        %v920 = vsub.s32 32, %v919
        %v921 = vshll.u32 %v912, %v919
        %v922 = vshrl.u32 %v904, %v920
        %v923 = vor.u32 %v921, %v922
        %v924 = vsub.s32 4294967266, %v919
        %v925 = vadd.s32 %v924, 127
        %v926 = vshll.u32 %v925, 23
        %v927 = vor.u32 4788187, %v926
        %v928 = vand.u32 2147483647, %v927
        %v930 = vcvt.s32.f32 %v923
        %v931 = vmul.f32 %v930, %v928
        %v932 = vxor.u32 %v931, 2147483648
        %v933 = vsel %vm850, %v932, %v931
        %v934 = vsub.s32 4, %v910
        %v935 = vsel %vm850, %v934, %v910
        %v936 = vsel %vm849, %v322, %v933
        %v937 = vsel %vm849, 0, %v935
        %v938 = vcosq.f32.pop %v936
        %v939 = vsinq.f32.pop %v936
        %vm940 = vweird.f32 %v322
        %v941 = vand.u32 %v937, 3
        %vm942 = vcmp.lt.s32.totalorder %v941, 2
        %vm943 = vcmp.eq.s32.totalorder %v941, 0
        %v944 = vxor.u32 %v939, 2147483648
        %v945 = vsel %vm943, %v938, %v944
        %vm946 = vcmp.eq.s32.totalorder %v941, 2
        %v947 = vxor.u32 %v938, 2147483648
        %v948 = vsel %vm946, %v947, %v939
        %v949 = vsel %vm942, %v945, %v948
        %v950 = vsel %vm940, nan, %v949
        %v951 = vand.u32 2147483647, %v323
        %vm952 = vcmp.le.f32.partialorder %v951, 0.7853982
        %vm953 = vcmp.lt.s32.totalorder %v323, 0
        %v954 = vand.u32 %v323, 2139095040
        %v955 = vshrl.u32 %v954, 23
        %v956 = vsub.s32 %v955, 127
        %v957 = vand.u32 2147483647, %v323
        %v958 = vand.u32 %v957, 8388607
        %v959 = vor.u32 %v958, 8388608
        %v960 = vsub.s32 0, %v959
        %v961 = vadd.s32 %v956, 1
        %vm962 = vcmp.gt.s32.totalorder %v961, 0
        %v963 = vsel %vm962, %v961, 0
        %v964 = vshrl.u32 %v963, 5
        %v965 = vand.u32 %v963, 31
        %v966 = vsub.s32 32, %v965
        %v967 = vshrl.u32 683565275, %v966
        %v968 = vshll.u32 683565275, %v965
        %v969 = vshrl.u32 2475754826, %v966
        %v970 = vor.u32 %v968, %v969
        %v971 = vshll.u32 2475754826, %v965
        %v972 = vshrl.u32 2131351028, %v966
        %v973 = vor.u32 %v971, %v972
        %v974 = vshll.u32 2131351028, %v965
        %v975 = vshrl.u32 2102212464, %v966
        %v976 = vor.u32 %v974, %v975
        %v977 = vshll.u32 2102212464, %v965
        %v978 = vshrl.u32 920167782, %v966
        %v979 = vor.u32 %v977, %v978
        %v980 = vshll.u32 920167782, %v965
        %v981 = vshrl.u32 1326507024, %v966
        %v982 = vor.u32 %v980, %v981
        %vm983 = vcmp.lt.s32.totalorder %v964, 1
        %vm984 = vcmp.lt.s32.totalorder %v964, 2
        %vm985 = vcmp.lt.s32.totalorder %v964, 3
        %vm986 = vcmp.lt.s32.totalorder %v964, 4
        %v987 = vsel %vm983, %v967, %v970
        %v988 = vsel %vm986, %v976, 2102212464
        %v989 = vsel %vm985, %v973, %v988
        %v990 = vsel %vm984, %v987, %v989
        %v991 = vsel %vm983, %v970, %v973
        %v992 = vsel %vm986, %v979, 920167782
        %v993 = vsel %vm985, %v976, %v992
        %v994 = vsel %vm984, %v991, %v993
        %v995 = vsel %vm983, %v973, %v976
        %v996 = vsel %vm986, %v982, 1326507024
        %v997 = vsel %vm985, %v979, %v996
        %v998 = vsel %vm984, %v995, %v997
        %v999 = vshll.u32 %v959, 8
        %v1000 = vmul.u32.u64.compose %v999, %v998
        %v1001 = vextract.low.u32 %v1000
        %v1002 = vextract.high.u32 %v1000
        %v1003 = vmul.u32.u64.compose %v999, %v994
        %v1004 = vextract.low.u32 %v1003
        %v1005 = vextract.high.u32 %v1003
        %v1006 = vmul.u32 %v999, %v990
        %v1007 = vadd.s32 %v1002, %v1004
        %vm1008 = vc.u32 %v1002, %v1004
        %v1009 = vadd.s32 %v1005, 1
        %v1010 = vsel %vm1008, %v1009, %v1005
        %v1011 = vadd.s32 %v1006, %v1010
        %v1012 = vadd.s32 %v1011, 536870912
        %v1013 = vshrl.u32 %v1012, 30
        %v1014 = vshll.u32 %v1013, 30
        %v1015 = vsub.s32 %v1011, %v1014
        %vm1016 = vcmp.lt.s32.totalorder %v1015, 0
        %v1017 = vsub.s32 0, %v1015
        %v1018 = vsel %vm1016, %v1017, %v1015
        %v1019 = vclz %v1018
        %v1020 = vsub.s32 %v1019, 2
        %vm1021 = vcmp.gt.s32.totalorder 0, %v1020
        %v1022 = vsel %vm1021, 0, %v1020
        %v1023 = vsub.s32 32, %v1022
        %v1024 = vshll.u32 %v1015, %v1022
        %v1025 = vshrl.u32 %v1007, %v1023
        %v1026 = vor.u32 %v1024, %v1025
        %v1027 = vsub.s32 4294967266, %v1022
        %v1028 = vadd.s32 %v1027, 127
        %v1029 = vshll.u32 %v1028, 23
        %v1030 = vor.u32 4788187, %v1029
        %v1031 = vand.u32 2147483647, %v1030
        %v1033 = vcvt.s32.f32 %v1026
        %v1034 = vmul.f32 %v1033, %v1031
        %v1035 = vxor.u32 %v1034, 2147483648
        %v1036 = vsel %vm953, %v1035, %v1034
        %v1037 = vsub.s32 4, %v1013
        %v1038 = vsel %vm953, %v1037, %v1013
        %v1039 = vsel %vm952, %v323, %v1036
        %v1040 = vsel %vm952, 0, %v1038
        %v1041 = vcosq.f32.pop %v1039
        %v1042 = vsinq.f32.pop %v1039
        %vm1043 = vweird.f32 %v323
        %v1044 = vand.u32 %v1040, 3
        %vm1045 = vcmp.lt.s32.totalorder %v1044, 2
        %vm1046 = vcmp.eq.s32.totalorder %v1044, 0
        %v1047 = vxor.u32 %v1042, 2147483648
        %v1048 = vsel %vm1046, %v1041, %v1047
        %vm1049 = vcmp.eq.s32.totalorder %v1044, 2
        %v1050 = vxor.u32 %v1041, 2147483648
        %v1051 = vsel %vm1049, %v1050, %v1042
        %v1052 = vsel %vm1045, %v1048, %v1051
        %v1053 = vsel %vm1043, nan, %v1052
        %v1054 = vand.u32 2147483647, %v324
        %vm1055 = vcmp.le.f32.partialorder %v1054, 0.7853982
        %vm1056 = vcmp.lt.s32.totalorder %v324, 0
        %v1057 = vand.u32 %v324, 2139095040
        %v1058 = vshrl.u32 %v1057, 23
        %v1059 = vsub.s32 %v1058, 127
        %v1060 = vand.u32 2147483647, %v324
        %v1061 = vand.u32 %v1060, 8388607
        %v1062 = vor.u32 %v1061, 8388608
        %v1063 = vsub.s32 0, %v1062
        %v1064 = vadd.s32 %v1059, 1
        %vm1065 = vcmp.gt.s32.totalorder %v1064, 0
        %v1066 = vsel %vm1065, %v1064, 0
        %v1067 = vshrl.u32 %v1066, 5
        %v1068 = vand.u32 %v1066, 31
        %v1069 = vsub.s32 32, %v1068
        %v1070 = vshrl.u32 683565275, %v1069
        %v1071 = vshll.u32 683565275, %v1068
        %v1072 = vshrl.u32 2475754826, %v1069
        %v1073 = vor.u32 %v1071, %v1072
        %v1074 = vshll.u32 2475754826, %v1068
        %v1075 = vshrl.u32 2131351028, %v1069
        %v1076 = vor.u32 %v1074, %v1075
        %v1077 = vshll.u32 2131351028, %v1068
        %v1078 = vshrl.u32 2102212464, %v1069
        %v1079 = vor.u32 %v1077, %v1078
        %v1080 = vshll.u32 2102212464, %v1068
        %v1081 = vshrl.u32 920167782, %v1069
        %v1082 = vor.u32 %v1080, %v1081
        %v1083 = vshll.u32 920167782, %v1068
        %v1084 = vshrl.u32 1326507024, %v1069
        %v1085 = vor.u32 %v1083, %v1084
        %vm1086 = vcmp.lt.s32.totalorder %v1067, 1
        %vm1087 = vcmp.lt.s32.totalorder %v1067, 2
        %vm1088 = vcmp.lt.s32.totalorder %v1067, 3
        %vm1089 = vcmp.lt.s32.totalorder %v1067, 4
        %v1090 = vsel %vm1086, %v1070, %v1073
        %v1091 = vsel %vm1089, %v1079, 2102212464
        %v1092 = vsel %vm1088, %v1076, %v1091
        %v1093 = vsel %vm1087, %v1090, %v1092
        %v1094 = vsel %vm1086, %v1073, %v1076
        %v1095 = vsel %vm1089, %v1082, 920167782
        %v1096 = vsel %vm1088, %v1079, %v1095
        %v1097 = vsel %vm1087, %v1094, %v1096
        %v1098 = vsel %vm1086, %v1076, %v1079
        %v1099 = vsel %vm1089, %v1085, 1326507024
        %v1100 = vsel %vm1088, %v1082, %v1099
        %v1101 = vsel %vm1087, %v1098, %v1100
        %v1102 = vshll.u32 %v1062, 8
        %v1103 = vmul.u32.u64.compose %v1102, %v1101
        %v1104 = vextract.low.u32 %v1103
        %v1105 = vextract.high.u32 %v1103
        %v1106 = vmul.u32.u64.compose %v1102, %v1097
        %v1107 = vextract.low.u32 %v1106
        %v1108 = vextract.high.u32 %v1106
        %v1109 = vmul.u32 %v1102, %v1093
        %v1110 = vadd.s32 %v1105, %v1107
        %vm1111 = vc.u32 %v1105, %v1107
        %v1112 = vadd.s32 %v1108, 1
        %v1113 = vsel %vm1111, %v1112, %v1108
        %v1114 = vadd.s32 %v1109, %v1113
        %v1115 = vadd.s32 %v1114, 536870912
        %v1116 = vshrl.u32 %v1115, 30
        %v1117 = vshll.u32 %v1116, 30
        %v1118 = vsub.s32 %v1114, %v1117
        %vm1119 = vcmp.lt.s32.totalorder %v1118, 0
        %v1120 = vsub.s32 0, %v1118
        %v1121 = vsel %vm1119, %v1120, %v1118
        %v1122 = vclz %v1121
        %v1123 = vsub.s32 %v1122, 2
        %vm1124 = vcmp.gt.s32.totalorder 0, %v1123
        %v1125 = vsel %vm1124, 0, %v1123
        %v1126 = vsub.s32 32, %v1125
        %v1127 = vshll.u32 %v1118, %v1125
        %v1128 = vshrl.u32 %v1110, %v1126
        %v1129 = vor.u32 %v1127, %v1128
        %v1130 = vsub.s32 4294967266, %v1125
        %v1131 = vadd.s32 %v1130, 127
        %v1132 = vshll.u32 %v1131, 23
        %v1133 = vor.u32 4788187, %v1132
        %v1134 = vand.u32 2147483647, %v1133
        %v1136 = vcvt.s32.f32 %v1129
        %v1137 = vmul.f32 %v1136, %v1134
        %v1138 = vxor.u32 %v1137, 2147483648
        %v1139 = vsel %vm1056, %v1138, %v1137
        %v1140 = vsub.s32 4, %v1116
        %v1141 = vsel %vm1056, %v1140, %v1116
        %v1142 = vsel %vm1055, %v324, %v1139
        %v1143 = vsel %vm1055, 0, %v1141
        %v1144 = vcosq.f32.pop %v1142
        %v1145 = vsinq.f32.pop %v1142
        %vm1146 = vweird.f32 %v324
        %v1147 = vand.u32 %v1143, 3
        %vm1148 = vcmp.lt.s32.totalorder %v1147, 2
        %vm1149 = vcmp.eq.s32.totalorder %v1147, 0
        %v1150 = vxor.u32 %v1145, 2147483648
        %v1151 = vsel %vm1149, %v1144, %v1150
        %vm1152 = vcmp.eq.s32.totalorder %v1147, 2
        %v1153 = vxor.u32 %v1144, 2147483648
        %v1154 = vsel %vm1152, %v1153, %v1145
        %v1155 = vsel %vm1148, %v1151, %v1154
        %v1156 = vsel %vm1146, nan, %v1155
        %v1157 = vand.u32 2147483647, %v325
        %vm1158 = vcmp.le.f32.partialorder %v1157, 0.7853982
        %vm1159 = vcmp.lt.s32.totalorder %v325, 0
        %v1160 = vand.u32 %v325, 2139095040
        %v1161 = vshrl.u32 %v1160, 23
        %v1162 = vsub.s32 %v1161, 127
        %v1163 = vand.u32 2147483647, %v325
        %v1164 = vand.u32 %v1163, 8388607
        %v1165 = vor.u32 %v1164, 8388608
        %v1166 = vsub.s32 0, %v1165
        %v1167 = vadd.s32 %v1162, 1
        %vm1168 = vcmp.gt.s32.totalorder %v1167, 0
        %v1169 = vsel %vm1168, %v1167, 0
        %v1170 = vshrl.u32 %v1169, 5
        %v1171 = vand.u32 %v1169, 31
        %v1172 = vsub.s32 32, %v1171
        %v1173 = vshrl.u32 683565275, %v1172
        %v1174 = vshll.u32 683565275, %v1171
        %v1175 = vshrl.u32 2475754826, %v1172
        %v1176 = vor.u32 %v1174, %v1175
        %v1177 = vshll.u32 2475754826, %v1171
        %v1178 = vshrl.u32 2131351028, %v1172
        %v1179 = vor.u32 %v1177, %v1178
        %v1180 = vshll.u32 2131351028, %v1171
        %v1181 = vshrl.u32 2102212464, %v1172
        %v1182 = vor.u32 %v1180, %v1181
        %v1183 = vshll.u32 2102212464, %v1171
        %v1184 = vshrl.u32 920167782, %v1172
        %v1185 = vor.u32 %v1183, %v1184
        %v1186 = vshll.u32 920167782, %v1171
        %v1187 = vshrl.u32 1326507024, %v1172
        %v1188 = vor.u32 %v1186, %v1187
        %vm1189 = vcmp.lt.s32.totalorder %v1170, 1
        %vm1190 = vcmp.lt.s32.totalorder %v1170, 2
        %vm1191 = vcmp.lt.s32.totalorder %v1170, 3
        %vm1192 = vcmp.lt.s32.totalorder %v1170, 4
        %v1193 = vsel %vm1189, %v1173, %v1176
        %v1194 = vsel %vm1192, %v1182, 2102212464
        %v1195 = vsel %vm1191, %v1179, %v1194
        %v1196 = vsel %vm1190, %v1193, %v1195
        %v1197 = vsel %vm1189, %v1176, %v1179
        %v1198 = vsel %vm1192, %v1185, 920167782
        %v1199 = vsel %vm1191, %v1182, %v1198
        %v1200 = vsel %vm1190, %v1197, %v1199
        %v1201 = vsel %vm1189, %v1179, %v1182
        %v1202 = vsel %vm1192, %v1188, 1326507024
        %v1203 = vsel %vm1191, %v1185, %v1202
        %v1204 = vsel %vm1190, %v1201, %v1203
        %v1205 = vshll.u32 %v1165, 8
        %v1206 = vmul.u32.u64.compose %v1205, %v1204
        %v1207 = vextract.low.u32 %v1206
        %v1208 = vextract.high.u32 %v1206
        %v1209 = vmul.u32.u64.compose %v1205, %v1200
        %v1210 = vextract.low.u32 %v1209
        %v1211 = vextract.high.u32 %v1209
        %v1212 = vmul.u32 %v1205, %v1196
        %v1213 = vadd.s32 %v1208, %v1210
        %vm1214 = vc.u32 %v1208, %v1210
        %v1215 = vadd.s32 %v1211, 1
        %v1216 = vsel %vm1214, %v1215, %v1211
        %v1217 = vadd.s32 %v1212, %v1216
        %v1218 = vadd.s32 %v1217, 536870912
        %v1219 = vshrl.u32 %v1218, 30
        %v1220 = vshll.u32 %v1219, 30
        %v1221 = vsub.s32 %v1217, %v1220
        %vm1222 = vcmp.lt.s32.totalorder %v1221, 0
        %v1223 = vsub.s32 0, %v1221
        %v1224 = vsel %vm1222, %v1223, %v1221
        %v1225 = vclz %v1224
        %v1226 = vsub.s32 %v1225, 2
        %vm1227 = vcmp.gt.s32.totalorder 0, %v1226
        %v1228 = vsel %vm1227, 0, %v1226
        %v1229 = vsub.s32 32, %v1228
        %v1230 = vshll.u32 %v1221, %v1228
        %v1231 = vshrl.u32 %v1213, %v1229
        %v1232 = vor.u32 %v1230, %v1231
        %v1233 = vsub.s32 4294967266, %v1228
        %v1234 = vadd.s32 %v1233, 127
        %v1235 = vshll.u32 %v1234, 23
        %v1236 = vor.u32 4788187, %v1235
        %v1237 = vand.u32 2147483647, %v1236
        %v1239 = vcvt.s32.f32 %v1232
        %v1240 = vmul.f32 %v1239, %v1237
        %v1241 = vxor.u32 %v1240, 2147483648
        %v1242 = vsel %vm1159, %v1241, %v1240
        %v1243 = vsub.s32 4, %v1219
        %v1244 = vsel %vm1159, %v1243, %v1219
        %v1245 = vsel %vm1158, %v325, %v1242
        %v1246 = vsel %vm1158, 0, %v1244
        %v1247 = vcosq.f32.pop %v1245
        %v1248 = vsinq.f32.pop %v1245
        %vm1249 = vweird.f32 %v325
        %v1250 = vand.u32 %v1246, 3
        %vm1251 = vcmp.lt.s32.totalorder %v1250, 2
        %vm1252 = vcmp.eq.s32.totalorder %v1250, 0
        %v1253 = vxor.u32 %v1248, 2147483648
        %v1254 = vsel %vm1252, %v1247, %v1253
        %vm1255 = vcmp.eq.s32.totalorder %v1250, 2
        %v1256 = vxor.u32 %v1247, 2147483648
        %v1257 = vsel %vm1255, %v1256, %v1248
        %v1258 = vsel %vm1251, %v1254, %v1257
        %v1259 = vsel %vm1249, nan, %v1258
        %v1260 = vand.u32 2147483647, %v326
        %vm1261 = vcmp.le.f32.partialorder %v1260, 0.7853982
        %vm1262 = vcmp.lt.s32.totalorder %v326, 0
        %v1263 = vand.u32 %v326, 2139095040
        %v1264 = vshrl.u32 %v1263, 23
        %v1265 = vsub.s32 %v1264, 127
        %v1266 = vand.u32 2147483647, %v326
        %v1267 = vand.u32 %v1266, 8388607
        %v1268 = vor.u32 %v1267, 8388608
        %v1269 = vsub.s32 0, %v1268
        %v1270 = vadd.s32 %v1265, 1
        %vm1271 = vcmp.gt.s32.totalorder %v1270, 0
        %v1272 = vsel %vm1271, %v1270, 0
        %v1273 = vshrl.u32 %v1272, 5
        %v1274 = vand.u32 %v1272, 31
        %v1275 = vsub.s32 32, %v1274
        %v1276 = vshrl.u32 683565275, %v1275
        %v1277 = vshll.u32 683565275, %v1274
        %v1278 = vshrl.u32 2475754826, %v1275
        %v1279 = vor.u32 %v1277, %v1278
        %v1280 = vshll.u32 2475754826, %v1274
        %v1281 = vshrl.u32 2131351028, %v1275
        %v1282 = vor.u32 %v1280, %v1281
        %v1283 = vshll.u32 2131351028, %v1274
        %v1284 = vshrl.u32 2102212464, %v1275
        %v1285 = vor.u32 %v1283, %v1284
        %v1286 = vshll.u32 2102212464, %v1274
        %v1287 = vshrl.u32 920167782, %v1275
        %v1288 = vor.u32 %v1286, %v1287
        %v1289 = vshll.u32 920167782, %v1274
        %v1290 = vshrl.u32 1326507024, %v1275
        %v1291 = vor.u32 %v1289, %v1290
        %vm1292 = vcmp.lt.s32.totalorder %v1273, 1
        %vm1293 = vcmp.lt.s32.totalorder %v1273, 2
        %vm1294 = vcmp.lt.s32.totalorder %v1273, 3
        %vm1295 = vcmp.lt.s32.totalorder %v1273, 4
        %v1296 = vsel %vm1292, %v1276, %v1279
        %v1297 = vsel %vm1295, %v1285, 2102212464
        %v1298 = vsel %vm1294, %v1282, %v1297
        %v1299 = vsel %vm1293, %v1296, %v1298
        %v1300 = vsel %vm1292, %v1279, %v1282
        %v1301 = vsel %vm1295, %v1288, 920167782
        %v1302 = vsel %vm1294, %v1285, %v1301
        %v1303 = vsel %vm1293, %v1300, %v1302
        %v1304 = vsel %vm1292, %v1282, %v1285
        %v1305 = vsel %vm1295, %v1291, 1326507024
        %v1306 = vsel %vm1294, %v1288, %v1305
        %v1307 = vsel %vm1293, %v1304, %v1306
        %v1308 = vshll.u32 %v1268, 8
        %v1309 = vmul.u32.u64.compose %v1308, %v1307
        %v1310 = vextract.low.u32 %v1309
        %v1311 = vextract.high.u32 %v1309
        %v1312 = vmul.u32.u64.compose %v1308, %v1303
        %v1313 = vextract.low.u32 %v1312
        %v1314 = vextract.high.u32 %v1312
        %v1315 = vmul.u32 %v1308, %v1299
        %v1316 = vadd.s32 %v1311, %v1313
        %vm1317 = vc.u32 %v1311, %v1313
        %v1318 = vadd.s32 %v1314, 1
        %v1319 = vsel %vm1317, %v1318, %v1314
        %v1320 = vadd.s32 %v1315, %v1319
        %v1321 = vadd.s32 %v1320, 536870912
        %v1322 = vshrl.u32 %v1321, 30
        %v1323 = vshll.u32 %v1322, 30
        %v1324 = vsub.s32 %v1320, %v1323
        %vm1325 = vcmp.lt.s32.totalorder %v1324, 0
        %v1326 = vsub.s32 0, %v1324
        %v1327 = vsel %vm1325, %v1326, %v1324
        %v1328 = vclz %v1327
        %v1329 = vsub.s32 %v1328, 2
        %vm1330 = vcmp.gt.s32.totalorder 0, %v1329
        %v1331 = vsel %vm1330, 0, %v1329
        %v1332 = vsub.s32 32, %v1331
        %v1333 = vshll.u32 %v1324, %v1331
        %v1334 = vshrl.u32 %v1316, %v1332
        %v1335 = vor.u32 %v1333, %v1334
        %v1336 = vsub.s32 4294967266, %v1331
        %v1337 = vadd.s32 %v1336, 127
        %v1338 = vshll.u32 %v1337, 23
        %v1339 = vor.u32 4788187, %v1338
        %v1340 = vand.u32 2147483647, %v1339
        %v1342 = vcvt.s32.f32 %v1335
        %v1343 = vmul.f32 %v1342, %v1340
        %v1344 = vxor.u32 %v1343, 2147483648
        %v1345 = vsel %vm1262, %v1344, %v1343
        %v1346 = vsub.s32 4, %v1322
        %v1347 = vsel %vm1262, %v1346, %v1322
        %v1348 = vsel %vm1261, %v326, %v1345
        %v1349 = vsel %vm1261, 0, %v1347
        %v1350 = vcosq.f32.pop %v1348
        %v1351 = vsinq.f32.pop %v1348
        %vm1352 = vweird.f32 %v326
        %v1353 = vand.u32 %v1349, 3
        %vm1354 = vcmp.lt.s32.totalorder %v1353, 2
        %vm1355 = vcmp.eq.s32.totalorder %v1353, 0
        %v1356 = vxor.u32 %v1351, 2147483648
        %v1357 = vsel %vm1355, %v1350, %v1356
        %vm1358 = vcmp.eq.s32.totalorder %v1353, 2
        %v1359 = vxor.u32 %v1350, 2147483648
        %v1360 = vsel %vm1358, %v1359, %v1351
        %v1361 = vsel %vm1354, %v1357, %v1360
        %v1362 = vsel %vm1352, nan, %v1361
        %v1363 = vand.u32 2147483647, %v327
        %vm1364 = vcmp.le.f32.partialorder %v1363, 0.7853982
        %vm1365 = vcmp.lt.s32.totalorder %v327, 0
        %v1366 = vand.u32 %v327, 2139095040
        %v1367 = vshrl.u32 %v1366, 23
        %v1368 = vsub.s32 %v1367, 127
        %v1369 = vand.u32 2147483647, %v327
        %v1370 = vand.u32 %v1369, 8388607
        %v1371 = vor.u32 %v1370, 8388608
        %v1372 = vsub.s32 0, %v1371
        %v1373 = vadd.s32 %v1368, 1
        %vm1374 = vcmp.gt.s32.totalorder %v1373, 0
        %v1375 = vsel %vm1374, %v1373, 0
        %v1376 = vshrl.u32 %v1375, 5
        %v1377 = vand.u32 %v1375, 31
        %v1378 = vsub.s32 32, %v1377
        %v1379 = vshrl.u32 683565275, %v1378
        %v1380 = vshll.u32 683565275, %v1377
        %v1381 = vshrl.u32 2475754826, %v1378
        %v1382 = vor.u32 %v1380, %v1381
        %v1383 = vshll.u32 2475754826, %v1377
        %v1384 = vshrl.u32 2131351028, %v1378
        %v1385 = vor.u32 %v1383, %v1384
        %v1386 = vshll.u32 2131351028, %v1377
        %v1387 = vshrl.u32 2102212464, %v1378
        %v1388 = vor.u32 %v1386, %v1387
        %v1389 = vshll.u32 2102212464, %v1377
        %v1390 = vshrl.u32 920167782, %v1378
        %v1391 = vor.u32 %v1389, %v1390
        %v1392 = vshll.u32 920167782, %v1377
        %v1393 = vshrl.u32 1326507024, %v1378
        %v1394 = vor.u32 %v1392, %v1393
        %vm1395 = vcmp.lt.s32.totalorder %v1376, 1
        %vm1396 = vcmp.lt.s32.totalorder %v1376, 2
        %vm1397 = vcmp.lt.s32.totalorder %v1376, 3
        %vm1398 = vcmp.lt.s32.totalorder %v1376, 4
        %v1399 = vsel %vm1395, %v1379, %v1382
        %v1400 = vsel %vm1398, %v1388, 2102212464
        %v1401 = vsel %vm1397, %v1385, %v1400
        %v1402 = vsel %vm1396, %v1399, %v1401
        %v1403 = vsel %vm1395, %v1382, %v1385
        %v1404 = vsel %vm1398, %v1391, 920167782
        %v1405 = vsel %vm1397, %v1388, %v1404
        %v1406 = vsel %vm1396, %v1403, %v1405
        %v1407 = vsel %vm1395, %v1385, %v1388
        %v1408 = vsel %vm1398, %v1394, 1326507024
        %v1409 = vsel %vm1397, %v1391, %v1408
        %v1410 = vsel %vm1396, %v1407, %v1409
        %v1411 = vshll.u32 %v1371, 8
        %v1412 = vmul.u32.u64.compose %v1411, %v1410
        %v1413 = vextract.low.u32 %v1412
        %v1414 = vextract.high.u32 %v1412
        %v1415 = vmul.u32.u64.compose %v1411, %v1406
        %v1416 = vextract.low.u32 %v1415
        %v1417 = vextract.high.u32 %v1415
        %v1418 = vmul.u32 %v1411, %v1402
        %v1419 = vadd.s32 %v1414, %v1416
        %vm1420 = vc.u32 %v1414, %v1416
        %v1421 = vadd.s32 %v1417, 1
        %v1422 = vsel %vm1420, %v1421, %v1417
        %v1423 = vadd.s32 %v1418, %v1422
        %v1424 = vadd.s32 %v1423, 536870912
        %v1425 = vshrl.u32 %v1424, 30
        %v1426 = vshll.u32 %v1425, 30
        %v1427 = vsub.s32 %v1423, %v1426
        %vm1428 = vcmp.lt.s32.totalorder %v1427, 0
        %v1429 = vsub.s32 0, %v1427
        %v1430 = vsel %vm1428, %v1429, %v1427
        %v1431 = vclz %v1430
        %v1432 = vsub.s32 %v1431, 2
        %vm1433 = vcmp.gt.s32.totalorder 0, %v1432
        %v1434 = vsel %vm1433, 0, %v1432
        %v1435 = vsub.s32 32, %v1434
        %v1436 = vshll.u32 %v1427, %v1434
        %v1437 = vshrl.u32 %v1419, %v1435
        %v1438 = vor.u32 %v1436, %v1437
        %v1439 = vsub.s32 4294967266, %v1434
        %v1440 = vadd.s32 %v1439, 127
        %v1441 = vshll.u32 %v1440, 23
        %v1442 = vor.u32 4788187, %v1441
        %v1443 = vand.u32 2147483647, %v1442
        %v1445 = vcvt.s32.f32 %v1438
        %v1446 = vmul.f32 %v1445, %v1443
        %v1447 = vxor.u32 %v1446, 2147483648
        %v1448 = vsel %vm1365, %v1447, %v1446
        %v1449 = vsub.s32 4, %v1425
        %v1450 = vsel %vm1365, %v1449, %v1425
        %v1451 = vsel %vm1364, %v327, %v1448
        %v1452 = vsel %vm1364, 0, %v1450
        %v1453 = vcosq.f32.pop %v1451
        %v1454 = vsinq.f32.pop %v1451
        %vm1455 = vweird.f32 %v327
        %v1456 = vand.u32 %v1452, 3
        %vm1457 = vcmp.lt.s32.totalorder %v1456, 2
        %vm1458 = vcmp.eq.s32.totalorder %v1456, 0
        %v1459 = vxor.u32 %v1454, 2147483648
        %v1460 = vsel %vm1458, %v1453, %v1459
        %vm1461 = vcmp.eq.s32.totalorder %v1456, 2
        %v1462 = vxor.u32 %v1453, 2147483648
        %v1463 = vsel %vm1461, %v1462, %v1454
        %v1464 = vsel %vm1457, %v1460, %v1463
        %v1465 = vsel %vm1455, nan, %v1464
        %v1466 = vand.u32 2147483647, %v328
        %vm1467 = vcmp.le.f32.partialorder %v1466, 0.7853982
        %vm1468 = vcmp.lt.s32.totalorder %v328, 0
        %v1469 = vand.u32 %v328, 2139095040
        %v1470 = vshrl.u32 %v1469, 23
        %v1471 = vsub.s32 %v1470, 127
        %v1472 = vand.u32 2147483647, %v328
        %v1473 = vand.u32 %v1472, 8388607
        %v1474 = vor.u32 %v1473, 8388608
        %v1475 = vsub.s32 0, %v1474
        %v1476 = vadd.s32 %v1471, 1
        %vm1477 = vcmp.gt.s32.totalorder %v1476, 0
        %v1478 = vsel %vm1477, %v1476, 0
        %v1479 = vshrl.u32 %v1478, 5
        %v1480 = vand.u32 %v1478, 31
        %v1481 = vsub.s32 32, %v1480
        %v1482 = vshrl.u32 683565275, %v1481
        %v1483 = vshll.u32 683565275, %v1480
        %v1484 = vshrl.u32 2475754826, %v1481
        %v1485 = vor.u32 %v1483, %v1484
        %v1486 = vshll.u32 2475754826, %v1480
        %v1487 = vshrl.u32 2131351028, %v1481
        %v1488 = vor.u32 %v1486, %v1487
        %v1489 = vshll.u32 2131351028, %v1480
        %v1490 = vshrl.u32 2102212464, %v1481
        %v1491 = vor.u32 %v1489, %v1490
        %v1492 = vshll.u32 2102212464, %v1480
        %v1493 = vshrl.u32 920167782, %v1481
        %v1494 = vor.u32 %v1492, %v1493
        %v1495 = vshll.u32 920167782, %v1480
        %v1496 = vshrl.u32 1326507024, %v1481
        %v1497 = vor.u32 %v1495, %v1496
        %vm1498 = vcmp.lt.s32.totalorder %v1479, 1
        %vm1499 = vcmp.lt.s32.totalorder %v1479, 2
        %vm1500 = vcmp.lt.s32.totalorder %v1479, 3
        %vm1501 = vcmp.lt.s32.totalorder %v1479, 4
        %v1502 = vsel %vm1498, %v1482, %v1485
        %v1503 = vsel %vm1501, %v1491, 2102212464
        %v1504 = vsel %vm1500, %v1488, %v1503
        %v1505 = vsel %vm1499, %v1502, %v1504
        %v1506 = vsel %vm1498, %v1485, %v1488
        %v1507 = vsel %vm1501, %v1494, 920167782
        %v1508 = vsel %vm1500, %v1491, %v1507
        %v1509 = vsel %vm1499, %v1506, %v1508
        %v1510 = vsel %vm1498, %v1488, %v1491
        %v1511 = vsel %vm1501, %v1497, 1326507024
        %v1512 = vsel %vm1500, %v1494, %v1511
        %v1513 = vsel %vm1499, %v1510, %v1512
        %v1514 = vshll.u32 %v1474, 8
        %v1515 = vmul.u32.u64.compose %v1514, %v1513
        %v1516 = vextract.low.u32 %v1515
        %v1517 = vextract.high.u32 %v1515
        %v1518 = vmul.u32.u64.compose %v1514, %v1509
        %v1519 = vextract.low.u32 %v1518
        %v1520 = vextract.high.u32 %v1518
        %v1521 = vmul.u32 %v1514, %v1505
        %v1522 = vadd.s32 %v1517, %v1519
        %vm1523 = vc.u32 %v1517, %v1519
        %v1524 = vadd.s32 %v1520, 1
        %v1525 = vsel %vm1523, %v1524, %v1520
        %v1526 = vadd.s32 %v1521, %v1525
        %v1527 = vadd.s32 %v1526, 536870912
        %v1528 = vshrl.u32 %v1527, 30
        %v1529 = vshll.u32 %v1528, 30
        %v1530 = vsub.s32 %v1526, %v1529
        %vm1531 = vcmp.lt.s32.totalorder %v1530, 0
        %v1532 = vsub.s32 0, %v1530
        %v1533 = vsel %vm1531, %v1532, %v1530
        %v1534 = vclz %v1533
        %v1535 = vsub.s32 %v1534, 2
        %vm1536 = vcmp.gt.s32.totalorder 0, %v1535
        %v1537 = vsel %vm1536, 0, %v1535
        %v1538 = vsub.s32 32, %v1537
        %v1539 = vshll.u32 %v1530, %v1537
        %v1540 = vshrl.u32 %v1522, %v1538
        %v1541 = vor.u32 %v1539, %v1540
        %v1542 = vsub.s32 4294967266, %v1537
        %v1543 = vadd.s32 %v1542, 127
        %v1544 = vshll.u32 %v1543, 23
        %v1545 = vor.u32 4788187, %v1544
        %v1546 = vand.u32 2147483647, %v1545
        %v1548 = vcvt.s32.f32 %v1541
        %v1549 = vmul.f32 %v1548, %v1546
        %v1550 = vxor.u32 %v1549, 2147483648
        %v1551 = vsel %vm1468, %v1550, %v1549
        %v1552 = vsub.s32 4, %v1528
        %v1553 = vsel %vm1468, %v1552, %v1528
        %v1554 = vsel %vm1467, %v328, %v1551
        %v1555 = vsel %vm1467, 0, %v1553
        %v1556 = vcosq.f32.pop %v1554
        %v1557 = vsinq.f32.pop %v1554
        %vm1558 = vweird.f32 %v328
        %v1559 = vand.u32 %v1555, 3
        %vm1560 = vcmp.lt.s32.totalorder %v1559, 2
        %vm1561 = vcmp.eq.s32.totalorder %v1559, 0
        %v1562 = vxor.u32 %v1557, 2147483648
        %v1563 = vsel %vm1561, %v1556, %v1562
        %vm1564 = vcmp.eq.s32.totalorder %v1559, 2
        %v1565 = vxor.u32 %v1556, 2147483648
        %v1566 = vsel %vm1564, %v1565, %v1557
        %v1567 = vsel %vm1560, %v1563, %v1566
        %v1568 = vsel %vm1558, nan, %v1567
        %v1569 = vand.u32 2147483647, %v329
        %vm1570 = vcmp.le.f32.partialorder %v1569, 0.7853982
        %vm1571 = vcmp.lt.s32.totalorder %v329, 0
        %v1572 = vand.u32 %v329, 2139095040
        %v1573 = vshrl.u32 %v1572, 23
        %v1574 = vsub.s32 %v1573, 127
        %v1575 = vand.u32 2147483647, %v329
        %v1576 = vand.u32 %v1575, 8388607
        %v1577 = vor.u32 %v1576, 8388608
        %v1578 = vsub.s32 0, %v1577
        %v1579 = vadd.s32 %v1574, 1
        %vm1580 = vcmp.gt.s32.totalorder %v1579, 0
        %v1581 = vsel %vm1580, %v1579, 0
        %v1582 = vshrl.u32 %v1581, 5
        %v1583 = vand.u32 %v1581, 31
        %v1584 = vsub.s32 32, %v1583
        %v1585 = vshrl.u32 683565275, %v1584
        %v1586 = vshll.u32 683565275, %v1583
        %v1587 = vshrl.u32 2475754826, %v1584
        %v1588 = vor.u32 %v1586, %v1587
        %v1589 = vshll.u32 2475754826, %v1583
        %v1590 = vshrl.u32 2131351028, %v1584
        %v1591 = vor.u32 %v1589, %v1590
        %v1592 = vshll.u32 2131351028, %v1583
        %v1593 = vshrl.u32 2102212464, %v1584
        %v1594 = vor.u32 %v1592, %v1593
        %v1595 = vshll.u32 2102212464, %v1583
        %v1596 = vshrl.u32 920167782, %v1584
        %v1597 = vor.u32 %v1595, %v1596
        %v1598 = vshll.u32 920167782, %v1583
        %v1599 = vshrl.u32 1326507024, %v1584
        %v1600 = vor.u32 %v1598, %v1599
        %vm1601 = vcmp.lt.s32.totalorder %v1582, 1
        %vm1602 = vcmp.lt.s32.totalorder %v1582, 2
        %vm1603 = vcmp.lt.s32.totalorder %v1582, 3
        %vm1604 = vcmp.lt.s32.totalorder %v1582, 4
        %v1605 = vsel %vm1601, %v1585, %v1588
        %v1606 = vsel %vm1604, %v1594, 2102212464
        %v1607 = vsel %vm1603, %v1591, %v1606
        %v1608 = vsel %vm1602, %v1605, %v1607
        %v1609 = vsel %vm1601, %v1588, %v1591
        %v1610 = vsel %vm1604, %v1597, 920167782
        %v1611 = vsel %vm1603, %v1594, %v1610
        %v1612 = vsel %vm1602, %v1609, %v1611
        %v1613 = vsel %vm1601, %v1591, %v1594
        %v1614 = vsel %vm1604, %v1600, 1326507024
        %v1615 = vsel %vm1603, %v1597, %v1614
        %v1616 = vsel %vm1602, %v1613, %v1615
        %v1617 = vshll.u32 %v1577, 8
        %v1618 = vmul.u32.u64.compose %v1617, %v1616
        %v1619 = vextract.low.u32 %v1618
        %v1620 = vextract.high.u32 %v1618
        %v1621 = vmul.u32.u64.compose %v1617, %v1612
        %v1622 = vextract.low.u32 %v1621
        %v1623 = vextract.high.u32 %v1621
        %v1624 = vmul.u32 %v1617, %v1608
        %v1625 = vadd.s32 %v1620, %v1622
        %vm1626 = vc.u32 %v1620, %v1622
        %v1627 = vadd.s32 %v1623, 1
        %v1628 = vsel %vm1626, %v1627, %v1623
        %v1629 = vadd.s32 %v1624, %v1628
        %v1630 = vadd.s32 %v1629, 536870912
        %v1631 = vshrl.u32 %v1630, 30
        %v1632 = vshll.u32 %v1631, 30
        %v1633 = vsub.s32 %v1629, %v1632
        %vm1634 = vcmp.lt.s32.totalorder %v1633, 0
        %v1635 = vsub.s32 0, %v1633
        %v1636 = vsel %vm1634, %v1635, %v1633
        %v1637 = vclz %v1636
        %v1638 = vsub.s32 %v1637, 2
        %vm1639 = vcmp.gt.s32.totalorder 0, %v1638
        %v1640 = vsel %vm1639, 0, %v1638
        %v1641 = vsub.s32 32, %v1640
        %v1642 = vshll.u32 %v1633, %v1640
        %v1643 = vshrl.u32 %v1625, %v1641
        %v1644 = vor.u32 %v1642, %v1643
        %v1645 = vsub.s32 4294967266, %v1640
        %v1646 = vadd.s32 %v1645, 127
        %v1647 = vshll.u32 %v1646, 23
        %v1648 = vor.u32 4788187, %v1647
        %v1649 = vand.u32 2147483647, %v1648
        %v1651 = vcvt.s32.f32 %v1644
        %v1652 = vmul.f32 %v1651, %v1649
        %v1653 = vxor.u32 %v1652, 2147483648
        %v1654 = vsel %vm1571, %v1653, %v1652
        %v1655 = vsub.s32 4, %v1631
        %v1656 = vsel %vm1571, %v1655, %v1631
        %v1657 = vsel %vm1570, %v329, %v1654
        %v1658 = vsel %vm1570, 0, %v1656
        %v1659 = vcosq.f32.pop %v1657
        %v1660 = vsinq.f32.pop %v1657
        %vm1661 = vweird.f32 %v329
        %v1662 = vand.u32 %v1658, 3
        %vm1663 = vcmp.lt.s32.totalorder %v1662, 2
        %vm1664 = vcmp.eq.s32.totalorder %v1662, 0
        %v1665 = vxor.u32 %v1660, 2147483648
        %v1666 = vsel %vm1664, %v1659, %v1665
        %vm1667 = vcmp.eq.s32.totalorder %v1662, 2
        %v1668 = vxor.u32 %v1659, 2147483648
        %v1669 = vsel %vm1667, %v1668, %v1660
        %v1670 = vsel %vm1663, %v1666, %v1669
        %v1671 = vsel %vm1661, nan, %v1670
        %v1672 = vand.u32 2147483647, %v330
        %vm1673 = vcmp.le.f32.partialorder %v1672, 0.7853982
        %vm1674 = vcmp.lt.s32.totalorder %v330, 0
        %v1675 = vand.u32 %v330, 2139095040
        %v1676 = vshrl.u32 %v1675, 23
        %v1677 = vsub.s32 %v1676, 127
        %v1678 = vand.u32 2147483647, %v330
        %v1679 = vand.u32 %v1678, 8388607
        %v1680 = vor.u32 %v1679, 8388608
        %v1681 = vsub.s32 0, %v1680
        %v1682 = vadd.s32 %v1677, 1
        %vm1683 = vcmp.gt.s32.totalorder %v1682, 0
        %v1684 = vsel %vm1683, %v1682, 0
        %v1685 = vshrl.u32 %v1684, 5
        %v1686 = vand.u32 %v1684, 31
        %v1687 = vsub.s32 32, %v1686
        %v1688 = vshrl.u32 683565275, %v1687
        %v1689 = vshll.u32 683565275, %v1686
        %v1690 = vshrl.u32 2475754826, %v1687
        %v1691 = vor.u32 %v1689, %v1690
        %v1692 = vshll.u32 2475754826, %v1686
        %v1693 = vshrl.u32 2131351028, %v1687
        %v1694 = vor.u32 %v1692, %v1693
        %v1695 = vshll.u32 2131351028, %v1686
        %v1696 = vshrl.u32 2102212464, %v1687
        %v1697 = vor.u32 %v1695, %v1696
        %v1698 = vshll.u32 2102212464, %v1686
        %v1699 = vshrl.u32 920167782, %v1687
        %v1700 = vor.u32 %v1698, %v1699
        %v1701 = vshll.u32 920167782, %v1686
        %v1702 = vshrl.u32 1326507024, %v1687
        %v1703 = vor.u32 %v1701, %v1702
        %vm1704 = vcmp.lt.s32.totalorder %v1685, 1
        %vm1705 = vcmp.lt.s32.totalorder %v1685, 2
        %vm1706 = vcmp.lt.s32.totalorder %v1685, 3
        %vm1707 = vcmp.lt.s32.totalorder %v1685, 4
        %v1708 = vsel %vm1704, %v1688, %v1691
        %v1709 = vsel %vm1707, %v1697, 2102212464
        %v1710 = vsel %vm1706, %v1694, %v1709
        %v1711 = vsel %vm1705, %v1708, %v1710
        %v1712 = vsel %vm1704, %v1691, %v1694
        %v1713 = vsel %vm1707, %v1700, 920167782
        %v1714 = vsel %vm1706, %v1697, %v1713
        %v1715 = vsel %vm1705, %v1712, %v1714
        %v1716 = vsel %vm1704, %v1694, %v1697
        %v1717 = vsel %vm1707, %v1703, 1326507024
        %v1718 = vsel %vm1706, %v1700, %v1717
        %v1719 = vsel %vm1705, %v1716, %v1718
        %v1720 = vshll.u32 %v1680, 8
        %v1721 = vmul.u32.u64.compose %v1720, %v1719
        %v1722 = vextract.low.u32 %v1721
        %v1723 = vextract.high.u32 %v1721
        %v1724 = vmul.u32.u64.compose %v1720, %v1715
        %v1725 = vextract.low.u32 %v1724
        %v1726 = vextract.high.u32 %v1724
        %v1727 = vmul.u32 %v1720, %v1711
        %v1728 = vadd.s32 %v1723, %v1725
        %vm1729 = vc.u32 %v1723, %v1725
        %v1730 = vadd.s32 %v1726, 1
        %v1731 = vsel %vm1729, %v1730, %v1726
        %v1732 = vadd.s32 %v1727, %v1731
        %v1733 = vadd.s32 %v1732, 536870912
        %v1734 = vshrl.u32 %v1733, 30
        %v1735 = vshll.u32 %v1734, 30
        %v1736 = vsub.s32 %v1732, %v1735
        %vm1737 = vcmp.lt.s32.totalorder %v1736, 0
        %v1738 = vsub.s32 0, %v1736
        %v1739 = vsel %vm1737, %v1738, %v1736
        %v1740 = vclz %v1739
        %v1741 = vsub.s32 %v1740, 2
        %vm1742 = vcmp.gt.s32.totalorder 0, %v1741
        %v1743 = vsel %vm1742, 0, %v1741
        %v1744 = vsub.s32 32, %v1743
        %v1745 = vshll.u32 %v1736, %v1743
        %v1746 = vshrl.u32 %v1728, %v1744
        %v1747 = vor.u32 %v1745, %v1746
        %v1748 = vsub.s32 4294967266, %v1743
        %v1749 = vadd.s32 %v1748, 127
        %v1750 = vshll.u32 %v1749, 23
        %v1751 = vor.u32 4788187, %v1750
        %v1752 = vand.u32 2147483647, %v1751
        %v1754 = vcvt.s32.f32 %v1747
        %v1755 = vmul.f32 %v1754, %v1752
        %v1756 = vxor.u32 %v1755, 2147483648
        %v1757 = vsel %vm1674, %v1756, %v1755
        %v1758 = vsub.s32 4, %v1734
        %v1759 = vsel %vm1674, %v1758, %v1734
        %v1760 = vsel %vm1673, %v330, %v1757
        %v1761 = vsel %vm1673, 0, %v1759
        %v1762 = vcosq.f32.pop %v1760
        %v1763 = vsinq.f32.pop %v1760
        %vm1764 = vweird.f32 %v330
        %v1765 = vand.u32 %v1761, 3
        %vm1766 = vcmp.lt.s32.totalorder %v1765, 2
        %vm1767 = vcmp.eq.s32.totalorder %v1765, 0
        %v1768 = vxor.u32 %v1763, 2147483648
        %v1769 = vsel %vm1767, %v1762, %v1768
        %vm1770 = vcmp.eq.s32.totalorder %v1765, 2
        %v1771 = vxor.u32 %v1762, 2147483648
        %v1772 = vsel %vm1770, %v1771, %v1763
        %v1773 = vsel %vm1766, %v1769, %v1772
        %v1774 = vsel %vm1764, nan, %v1773
        %v1775 = vand.u32 2147483647, %v331
        %vm1776 = vcmp.le.f32.partialorder %v1775, 0.7853982
        %vm1777 = vcmp.lt.s32.totalorder %v331, 0
        %v1778 = vand.u32 %v331, 2139095040
        %v1779 = vshrl.u32 %v1778, 23
        %v1780 = vsub.s32 %v1779, 127
        %v1781 = vand.u32 2147483647, %v331
        %v1782 = vand.u32 %v1781, 8388607
        %v1783 = vor.u32 %v1782, 8388608
        %v1784 = vsub.s32 0, %v1783
        %v1785 = vadd.s32 %v1780, 1
        %vm1786 = vcmp.gt.s32.totalorder %v1785, 0
        %v1787 = vsel %vm1786, %v1785, 0
        %v1788 = vshrl.u32 %v1787, 5
        %v1789 = vand.u32 %v1787, 31
        %v1790 = vsub.s32 32, %v1789
        %v1791 = vshrl.u32 683565275, %v1790
        %v1792 = vshll.u32 683565275, %v1789
        %v1793 = vshrl.u32 2475754826, %v1790
        %v1794 = vor.u32 %v1792, %v1793
        %v1795 = vshll.u32 2475754826, %v1789
        %v1796 = vshrl.u32 2131351028, %v1790
        %v1797 = vor.u32 %v1795, %v1796
        %v1798 = vshll.u32 2131351028, %v1789
        %v1799 = vshrl.u32 2102212464, %v1790
        %v1800 = vor.u32 %v1798, %v1799
        %v1801 = vshll.u32 2102212464, %v1789
        %v1802 = vshrl.u32 920167782, %v1790
        %v1803 = vor.u32 %v1801, %v1802
        %v1804 = vshll.u32 920167782, %v1789
        %v1805 = vshrl.u32 1326507024, %v1790
        %v1806 = vor.u32 %v1804, %v1805
        %vm1807 = vcmp.lt.s32.totalorder %v1788, 1
        %vm1808 = vcmp.lt.s32.totalorder %v1788, 2
        %vm1809 = vcmp.lt.s32.totalorder %v1788, 3
        %vm1810 = vcmp.lt.s32.totalorder %v1788, 4
        %v1811 = vsel %vm1807, %v1791, %v1794
        %v1812 = vsel %vm1810, %v1800, 2102212464
        %v1813 = vsel %vm1809, %v1797, %v1812
        %v1814 = vsel %vm1808, %v1811, %v1813
        %v1815 = vsel %vm1807, %v1794, %v1797
        %v1816 = vsel %vm1810, %v1803, 920167782
        %v1817 = vsel %vm1809, %v1800, %v1816
        %v1818 = vsel %vm1808, %v1815, %v1817
        %v1819 = vsel %vm1807, %v1797, %v1800
        %v1820 = vsel %vm1810, %v1806, 1326507024
        %v1821 = vsel %vm1809, %v1803, %v1820
        %v1822 = vsel %vm1808, %v1819, %v1821
        %v1823 = vshll.u32 %v1783, 8
        %v1824 = vmul.u32.u64.compose %v1823, %v1822
        %v1825 = vextract.low.u32 %v1824
        %v1826 = vextract.high.u32 %v1824
        %v1827 = vmul.u32.u64.compose %v1823, %v1818
        %v1828 = vextract.low.u32 %v1827
        %v1829 = vextract.high.u32 %v1827
        %v1830 = vmul.u32 %v1823, %v1814
        %v1831 = vadd.s32 %v1826, %v1828
        %vm1832 = vc.u32 %v1826, %v1828
        %v1833 = vadd.s32 %v1829, 1
        %v1834 = vsel %vm1832, %v1833, %v1829
        %v1835 = vadd.s32 %v1830, %v1834
        %v1836 = vadd.s32 %v1835, 536870912
        %v1837 = vshrl.u32 %v1836, 30
        %v1838 = vshll.u32 %v1837, 30
        %v1839 = vsub.s32 %v1835, %v1838
        %vm1840 = vcmp.lt.s32.totalorder %v1839, 0
        %v1841 = vsub.s32 0, %v1839
        %v1842 = vsel %vm1840, %v1841, %v1839
        %v1843 = vclz %v1842
        %v1844 = vsub.s32 %v1843, 2
        %vm1845 = vcmp.gt.s32.totalorder 0, %v1844
        %v1846 = vsel %vm1845, 0, %v1844
        %v1847 = vsub.s32 32, %v1846
        %v1848 = vshll.u32 %v1839, %v1846
        %v1849 = vshrl.u32 %v1831, %v1847
        %v1850 = vor.u32 %v1848, %v1849
        %v1851 = vsub.s32 4294967266, %v1846
        %v1852 = vadd.s32 %v1851, 127
        %v1853 = vshll.u32 %v1852, 23
        %v1854 = vor.u32 4788187, %v1853
        %v1855 = vand.u32 2147483647, %v1854
        %v1857 = vcvt.s32.f32 %v1850
        %v1858 = vmul.f32 %v1857, %v1855
        %v1859 = vxor.u32 %v1858, 2147483648
        %v1860 = vsel %vm1777, %v1859, %v1858
        %v1861 = vsub.s32 4, %v1837
        %v1862 = vsel %vm1777, %v1861, %v1837
        %v1863 = vsel %vm1776, %v331, %v1860
        %v1864 = vsel %vm1776, 0, %v1862
        %v1865 = vcosq.f32.pop %v1863
        %v1866 = vsinq.f32.pop %v1863
        %vm1867 = vweird.f32 %v331
        %v1868 = vand.u32 %v1864, 3
        %vm1869 = vcmp.lt.s32.totalorder %v1868, 2
        %vm1870 = vcmp.eq.s32.totalorder %v1868, 0
        %v1871 = vxor.u32 %v1866, 2147483648
        %v1872 = vsel %vm1870, %v1865, %v1871
        %vm1873 = vcmp.eq.s32.totalorder %v1868, 2
        %v1874 = vxor.u32 %v1865, 2147483648
        %v1875 = vsel %vm1873, %v1874, %v1866
        %v1876 = vsel %vm1869, %v1872, %v1875
        %v1877 = vsel %vm1867, nan, %v1876
        %v1878 = vand.u32 2147483647, %v332
        %vm1879 = vcmp.le.f32.partialorder %v1878, 0.7853982
        %vm1880 = vcmp.lt.s32.totalorder %v332, 0
        %v1881 = vand.u32 %v332, 2139095040
        %v1882 = vshrl.u32 %v1881, 23
        %v1883 = vsub.s32 %v1882, 127
        %v1884 = vand.u32 2147483647, %v332
        %v1885 = vand.u32 %v1884, 8388607
        %v1886 = vor.u32 %v1885, 8388608
        %v1887 = vsub.s32 0, %v1886
        %v1888 = vadd.s32 %v1883, 1
        %vm1889 = vcmp.gt.s32.totalorder %v1888, 0
        %v1890 = vsel %vm1889, %v1888, 0
        %v1891 = vshrl.u32 %v1890, 5
        %v1892 = vand.u32 %v1890, 31
        %v1893 = vsub.s32 32, %v1892
        %v1894 = vshrl.u32 683565275, %v1893
        %v1895 = vshll.u32 683565275, %v1892
        %v1896 = vshrl.u32 2475754826, %v1893
        %v1897 = vor.u32 %v1895, %v1896
        %v1898 = vshll.u32 2475754826, %v1892
        %v1899 = vshrl.u32 2131351028, %v1893
        %v1900 = vor.u32 %v1898, %v1899
        %v1901 = vshll.u32 2131351028, %v1892
        %v1902 = vshrl.u32 2102212464, %v1893
        %v1903 = vor.u32 %v1901, %v1902
        %v1904 = vshll.u32 2102212464, %v1892
        %v1905 = vshrl.u32 920167782, %v1893
        %v1906 = vor.u32 %v1904, %v1905
        %v1907 = vshll.u32 920167782, %v1892
        %v1908 = vshrl.u32 1326507024, %v1893
        %v1909 = vor.u32 %v1907, %v1908
        %vm1910 = vcmp.lt.s32.totalorder %v1891, 1
        %vm1911 = vcmp.lt.s32.totalorder %v1891, 2
        %vm1912 = vcmp.lt.s32.totalorder %v1891, 3
        %vm1913 = vcmp.lt.s32.totalorder %v1891, 4
        %v1914 = vsel %vm1910, %v1894, %v1897
        %v1915 = vsel %vm1913, %v1903, 2102212464
        %v1916 = vsel %vm1912, %v1900, %v1915
        %v1917 = vsel %vm1911, %v1914, %v1916
        %v1918 = vsel %vm1910, %v1897, %v1900
        %v1919 = vsel %vm1913, %v1906, 920167782
        %v1920 = vsel %vm1912, %v1903, %v1919
        %v1921 = vsel %vm1911, %v1918, %v1920
        %v1922 = vsel %vm1910, %v1900, %v1903
        %v1923 = vsel %vm1913, %v1909, 1326507024
        %v1924 = vsel %vm1912, %v1906, %v1923
        %v1925 = vsel %vm1911, %v1922, %v1924
        %v1926 = vshll.u32 %v1886, 8
        %v1927 = vmul.u32.u64.compose %v1926, %v1925
        %v1928 = vextract.low.u32 %v1927
        %v1929 = vextract.high.u32 %v1927
        %v1930 = vmul.u32.u64.compose %v1926, %v1921
        %v1931 = vextract.low.u32 %v1930
        %v1932 = vextract.high.u32 %v1930
        %v1933 = vmul.u32 %v1926, %v1917
        %v1934 = vadd.s32 %v1929, %v1931
        %vm1935 = vc.u32 %v1929, %v1931
        %v1936 = vadd.s32 %v1932, 1
        %v1937 = vsel %vm1935, %v1936, %v1932
        %v1938 = vadd.s32 %v1933, %v1937
        %v1939 = vadd.s32 %v1938, 536870912
        %v1940 = vshrl.u32 %v1939, 30
        %v1941 = vshll.u32 %v1940, 30
        %v1942 = vsub.s32 %v1938, %v1941
        %vm1943 = vcmp.lt.s32.totalorder %v1942, 0
        %v1944 = vsub.s32 0, %v1942
        %v1945 = vsel %vm1943, %v1944, %v1942
        %v1946 = vclz %v1945
        %v1947 = vsub.s32 %v1946, 2
        %vm1948 = vcmp.gt.s32.totalorder 0, %v1947
        %v1949 = vsel %vm1948, 0, %v1947
        %v1950 = vsub.s32 32, %v1949
        %v1951 = vshll.u32 %v1942, %v1949
        %v1952 = vshrl.u32 %v1934, %v1950
        %v1953 = vor.u32 %v1951, %v1952
        %v1954 = vsub.s32 4294967266, %v1949
        %v1955 = vadd.s32 %v1954, 127
        %v1956 = vshll.u32 %v1955, 23
        %v1957 = vor.u32 4788187, %v1956
        %v1958 = vand.u32 2147483647, %v1957
        %v1960 = vcvt.s32.f32 %v1953
        %v1961 = vmul.f32 %v1960, %v1958
        %v1962 = vxor.u32 %v1961, 2147483648
        %v1963 = vsel %vm1880, %v1962, %v1961
        %v1964 = vsub.s32 4, %v1940
        %v1965 = vsel %vm1880, %v1964, %v1940
        %v1966 = vsel %vm1879, %v332, %v1963
        %v1967 = vsel %vm1879, 0, %v1965
        %v1968 = vcosq.f32.pop %v1966
        %v1969 = vsinq.f32.pop %v1966
        %vm1970 = vweird.f32 %v332
        %v1971 = vand.u32 %v1967, 3
        %vm1972 = vcmp.lt.s32.totalorder %v1971, 2
        %vm1973 = vcmp.eq.s32.totalorder %v1971, 0
        %v1974 = vxor.u32 %v1969, 2147483648
        %v1975 = vsel %vm1973, %v1968, %v1974
        %vm1976 = vcmp.eq.s32.totalorder %v1971, 2
        %v1977 = vxor.u32 %v1968, 2147483648
        %v1978 = vsel %vm1976, %v1977, %v1969
        %v1979 = vsel %vm1972, %v1975, %v1978
        %v1980 = vsel %vm1970, nan, %v1979
        %v1981 = vand.u32 2147483647, %v317
        %vm1982 = vcmp.le.f32.partialorder %v1981, 0.7853982
        %vm1983 = vcmp.lt.s32.totalorder %v317, 0
        %v1984 = vand.u32 %v317, 2139095040
        %v1985 = vshrl.u32 %v1984, 23
        %v1986 = vsub.s32 %v1985, 127
        %v1987 = vand.u32 2147483647, %v317
        %v1988 = vand.u32 %v1987, 8388607
        %v1989 = vor.u32 %v1988, 8388608
        %v1990 = vsub.s32 0, %v1989
        %v1991 = vadd.s32 %v1986, 1
        %vm1992 = vcmp.gt.s32.totalorder %v1991, 0
        %v1993 = vsel %vm1992, %v1991, 0
        %v1994 = vshrl.u32 %v1993, 5
        %v1995 = vand.u32 %v1993, 31
        %v1996 = vsub.s32 32, %v1995
        %v1997 = vshrl.u32 683565275, %v1996
        %v1998 = vshll.u32 683565275, %v1995
        %v1999 = vshrl.u32 2475754826, %v1996
        %v2000 = vor.u32 %v1998, %v1999
        %v2001 = vshll.u32 2475754826, %v1995
        %v2002 = vshrl.u32 2131351028, %v1996
        %v2003 = vor.u32 %v2001, %v2002
        %v2004 = vshll.u32 2131351028, %v1995
        %v2005 = vshrl.u32 2102212464, %v1996
        %v2006 = vor.u32 %v2004, %v2005
        %v2007 = vshll.u32 2102212464, %v1995
        %v2008 = vshrl.u32 920167782, %v1996
        %v2009 = vor.u32 %v2007, %v2008
        %v2010 = vshll.u32 920167782, %v1995
        %v2011 = vshrl.u32 1326507024, %v1996
        %v2012 = vor.u32 %v2010, %v2011
        %vm2013 = vcmp.lt.s32.totalorder %v1994, 1
        %vm2014 = vcmp.lt.s32.totalorder %v1994, 2
        %vm2015 = vcmp.lt.s32.totalorder %v1994, 3
        %vm2016 = vcmp.lt.s32.totalorder %v1994, 4
        %v2017 = vsel %vm2013, %v1997, %v2000
        %v2018 = vsel %vm2016, %v2006, 2102212464
        %v2019 = vsel %vm2015, %v2003, %v2018
        %v2020 = vsel %vm2014, %v2017, %v2019
        %v2021 = vsel %vm2013, %v2000, %v2003
        %v2022 = vsel %vm2016, %v2009, 920167782
        %v2023 = vsel %vm2015, %v2006, %v2022
        %v2024 = vsel %vm2014, %v2021, %v2023
        %v2025 = vsel %vm2013, %v2003, %v2006
        %v2026 = vsel %vm2016, %v2012, 1326507024
        %v2027 = vsel %vm2015, %v2009, %v2026
        %v2028 = vsel %vm2014, %v2025, %v2027
        %v2029 = vshll.u32 %v1989, 8
        %v2030 = vmul.u32.u64.compose %v2029, %v2028
        %v2031 = vextract.low.u32 %v2030
        %v2032 = vextract.high.u32 %v2030
        %v2033 = vmul.u32.u64.compose %v2029, %v2024
        %v2034 = vextract.low.u32 %v2033
        %v2035 = vextract.high.u32 %v2033
        %v2036 = vmul.u32 %v2029, %v2020
        %v2037 = vadd.s32 %v2032, %v2034
        %vm2038 = vc.u32 %v2032, %v2034
        %v2039 = vadd.s32 %v2035, 1
        %v2040 = vsel %vm2038, %v2039, %v2035
        %v2041 = vadd.s32 %v2036, %v2040
        %v2042 = vadd.s32 %v2041, 536870912
        %v2043 = vshrl.u32 %v2042, 30
        %v2044 = vshll.u32 %v2043, 30
        %v2045 = vsub.s32 %v2041, %v2044
        %vm2046 = vcmp.lt.s32.totalorder %v2045, 0
        %v2047 = vsub.s32 0, %v2045
        %v2048 = vsel %vm2046, %v2047, %v2045
        %v2049 = vclz %v2048
        %v2050 = vsub.s32 %v2049, 2
        %vm2051 = vcmp.gt.s32.totalorder 0, %v2050
        %v2052 = vsel %vm2051, 0, %v2050
        %v2053 = vsub.s32 32, %v2052
        %v2054 = vshll.u32 %v2045, %v2052
        %v2055 = vshrl.u32 %v2037, %v2053
        %v2056 = vor.u32 %v2054, %v2055
        %v2057 = vsub.s32 4294967266, %v2052
        %v2058 = vadd.s32 %v2057, 127
        %v2059 = vshll.u32 %v2058, 23
        %v2060 = vor.u32 4788187, %v2059
        %v2061 = vand.u32 2147483647, %v2060
        %v2063 = vcvt.s32.f32 %v2056
        %v2064 = vmul.f32 %v2063, %v2061
        %v2065 = vxor.u32 %v2064, 2147483648
        %v2066 = vsel %vm1983, %v2065, %v2064
        %v2067 = vsub.s32 4, %v2043
        %v2068 = vsel %vm1983, %v2067, %v2043
        %v2069 = vsel %vm1982, %v317, %v2066
        %v2070 = vsel %vm1982, 0, %v2068
        %v2071 = vcosq.f32.pop %v2069
        %v2072 = vsinq.f32.pop %v2069
        %vm2073 = vweird.f32 %v317
        %v2074 = vadd.s32 %v2070, 3
        %v2075 = vand.u32 %v2074, 3
        %vm2076 = vcmp.lt.s32.totalorder %v2075, 2
        %vm2077 = vcmp.eq.s32.totalorder %v2075, 0
        %v2078 = vxor.u32 %v2072, 2147483648
        %v2079 = vsel %vm2077, %v2071, %v2078
        %vm2080 = vcmp.eq.s32.totalorder %v2075, 2
        %v2081 = vxor.u32 %v2071, 2147483648
        %v2082 = vsel %vm2080, %v2081, %v2072
        %v2083 = vsel %vm2076, %v2079, %v2082
        %v2084 = vsel %vm2073, nan, %v2083
        %v2085 = vand.u32 2147483647, %v318
        %vm2086 = vcmp.le.f32.partialorder %v2085, 0.7853982
        %vm2087 = vcmp.lt.s32.totalorder %v318, 0
        %v2088 = vand.u32 %v318, 2139095040
        %v2089 = vshrl.u32 %v2088, 23
        %v2090 = vsub.s32 %v2089, 127
        %v2091 = vand.u32 2147483647, %v318
        %v2092 = vand.u32 %v2091, 8388607
        %v2093 = vor.u32 %v2092, 8388608
        %v2094 = vsub.s32 0, %v2093
        %v2095 = vadd.s32 %v2090, 1
        %vm2096 = vcmp.gt.s32.totalorder %v2095, 0
        %v2097 = vsel %vm2096, %v2095, 0
        %v2098 = vshrl.u32 %v2097, 5
        %v2099 = vand.u32 %v2097, 31
        %v2100 = vsub.s32 32, %v2099
        %v2101 = vshrl.u32 683565275, %v2100
        %v2102 = vshll.u32 683565275, %v2099
        %v2103 = vshrl.u32 2475754826, %v2100
        %v2104 = vor.u32 %v2102, %v2103
        %v2105 = vshll.u32 2475754826, %v2099
        %v2106 = vshrl.u32 2131351028, %v2100
        %v2107 = vor.u32 %v2105, %v2106
        %v2108 = vshll.u32 2131351028, %v2099
        %v2109 = vshrl.u32 2102212464, %v2100
        %v2110 = vor.u32 %v2108, %v2109
        %v2111 = vshll.u32 2102212464, %v2099
        %v2112 = vshrl.u32 920167782, %v2100
        %v2113 = vor.u32 %v2111, %v2112
        %v2114 = vshll.u32 920167782, %v2099
        %v2115 = vshrl.u32 1326507024, %v2100
        %v2116 = vor.u32 %v2114, %v2115
        %vm2117 = vcmp.lt.s32.totalorder %v2098, 1
        %vm2118 = vcmp.lt.s32.totalorder %v2098, 2
        %vm2119 = vcmp.lt.s32.totalorder %v2098, 3
        %vm2120 = vcmp.lt.s32.totalorder %v2098, 4
        %v2121 = vsel %vm2117, %v2101, %v2104
        %v2122 = vsel %vm2120, %v2110, 2102212464
        %v2123 = vsel %vm2119, %v2107, %v2122
        %v2124 = vsel %vm2118, %v2121, %v2123
        %v2125 = vsel %vm2117, %v2104, %v2107
        %v2126 = vsel %vm2120, %v2113, 920167782
        %v2127 = vsel %vm2119, %v2110, %v2126
        %v2128 = vsel %vm2118, %v2125, %v2127
        %v2129 = vsel %vm2117, %v2107, %v2110
        %v2130 = vsel %vm2120, %v2116, 1326507024
        %v2131 = vsel %vm2119, %v2113, %v2130
        %v2132 = vsel %vm2118, %v2129, %v2131
        %v2133 = vshll.u32 %v2093, 8
        %v2134 = vmul.u32.u64.compose %v2133, %v2132
        %v2135 = vextract.low.u32 %v2134
        %v2136 = vextract.high.u32 %v2134
        %v2137 = vmul.u32.u64.compose %v2133, %v2128
        %v2138 = vextract.low.u32 %v2137
        %v2139 = vextract.high.u32 %v2137
        %v2140 = vmul.u32 %v2133, %v2124
        %v2141 = vadd.s32 %v2136, %v2138
        %vm2142 = vc.u32 %v2136, %v2138
        %v2143 = vadd.s32 %v2139, 1
        %v2144 = vsel %vm2142, %v2143, %v2139
        %v2145 = vadd.s32 %v2140, %v2144
        %v2146 = vadd.s32 %v2145, 536870912
        %v2147 = vshrl.u32 %v2146, 30
        %v2148 = vshll.u32 %v2147, 30
        %v2149 = vsub.s32 %v2145, %v2148
        %vm2150 = vcmp.lt.s32.totalorder %v2149, 0
        %v2151 = vsub.s32 0, %v2149
        %v2152 = vsel %vm2150, %v2151, %v2149
        %v2153 = vclz %v2152
        %v2154 = vsub.s32 %v2153, 2
        %vm2155 = vcmp.gt.s32.totalorder 0, %v2154
        %v2156 = vsel %vm2155, 0, %v2154
        %v2157 = vsub.s32 32, %v2156
        %v2158 = vshll.u32 %v2149, %v2156
        %v2159 = vshrl.u32 %v2141, %v2157
        %v2160 = vor.u32 %v2158, %v2159
        %v2161 = vsub.s32 4294967266, %v2156
        %v2162 = vadd.s32 %v2161, 127
        %v2163 = vshll.u32 %v2162, 23
        %v2164 = vor.u32 4788187, %v2163
        %v2165 = vand.u32 2147483647, %v2164
        %v2167 = vcvt.s32.f32 %v2160
        %v2168 = vmul.f32 %v2167, %v2165
        %v2169 = vxor.u32 %v2168, 2147483648
        %v2170 = vsel %vm2087, %v2169, %v2168
        %v2171 = vsub.s32 4, %v2147
        %v2172 = vsel %vm2087, %v2171, %v2147
        %v2173 = vsel %vm2086, %v318, %v2170
        %v2174 = vsel %vm2086, 0, %v2172
        %v2175 = vcosq.f32.pop %v2173
        %v2176 = vsinq.f32.pop %v2173
        %vm2177 = vweird.f32 %v318
        %v2178 = vadd.s32 %v2174, 3
        %v2179 = vand.u32 %v2178, 3
        %vm2180 = vcmp.lt.s32.totalorder %v2179, 2
        %vm2181 = vcmp.eq.s32.totalorder %v2179, 0
        %v2182 = vxor.u32 %v2176, 2147483648
        %v2183 = vsel %vm2181, %v2175, %v2182
        %vm2184 = vcmp.eq.s32.totalorder %v2179, 2
        %v2185 = vxor.u32 %v2175, 2147483648
        %v2186 = vsel %vm2184, %v2185, %v2176
        %v2187 = vsel %vm2180, %v2183, %v2186
        %v2188 = vsel %vm2177, nan, %v2187
        %v2189 = vand.u32 2147483647, %v319
        %vm2190 = vcmp.le.f32.partialorder %v2189, 0.7853982
        %vm2191 = vcmp.lt.s32.totalorder %v319, 0
        %v2192 = vand.u32 %v319, 2139095040
        %v2193 = vshrl.u32 %v2192, 23
        %v2194 = vsub.s32 %v2193, 127
        %v2195 = vand.u32 2147483647, %v319
        %v2196 = vand.u32 %v2195, 8388607
        %v2197 = vor.u32 %v2196, 8388608
        %v2198 = vsub.s32 0, %v2197
        %v2199 = vadd.s32 %v2194, 1
        %vm2200 = vcmp.gt.s32.totalorder %v2199, 0
        %v2201 = vsel %vm2200, %v2199, 0
        %v2202 = vshrl.u32 %v2201, 5
        %v2203 = vand.u32 %v2201, 31
        %v2204 = vsub.s32 32, %v2203
        %v2205 = vshrl.u32 683565275, %v2204
        %v2206 = vshll.u32 683565275, %v2203
        %v2207 = vshrl.u32 2475754826, %v2204
        %v2208 = vor.u32 %v2206, %v2207
        %v2209 = vshll.u32 2475754826, %v2203
        %v2210 = vshrl.u32 2131351028, %v2204
        %v2211 = vor.u32 %v2209, %v2210
        %v2212 = vshll.u32 2131351028, %v2203
        %v2213 = vshrl.u32 2102212464, %v2204
        %v2214 = vor.u32 %v2212, %v2213
        %v2215 = vshll.u32 2102212464, %v2203
        %v2216 = vshrl.u32 920167782, %v2204
        %v2217 = vor.u32 %v2215, %v2216
        %v2218 = vshll.u32 920167782, %v2203
        %v2219 = vshrl.u32 1326507024, %v2204
        %v2220 = vor.u32 %v2218, %v2219
        %vm2221 = vcmp.lt.s32.totalorder %v2202, 1
        %vm2222 = vcmp.lt.s32.totalorder %v2202, 2
        %vm2223 = vcmp.lt.s32.totalorder %v2202, 3
        %vm2224 = vcmp.lt.s32.totalorder %v2202, 4
        %v2225 = vsel %vm2221, %v2205, %v2208
        %v2226 = vsel %vm2224, %v2214, 2102212464
        %v2227 = vsel %vm2223, %v2211, %v2226
        %v2228 = vsel %vm2222, %v2225, %v2227
        %v2229 = vsel %vm2221, %v2208, %v2211
        %v2230 = vsel %vm2224, %v2217, 920167782
        %v2231 = vsel %vm2223, %v2214, %v2230
        %v2232 = vsel %vm2222, %v2229, %v2231
        %v2233 = vsel %vm2221, %v2211, %v2214
        %v2234 = vsel %vm2224, %v2220, 1326507024
        %v2235 = vsel %vm2223, %v2217, %v2234
        %v2236 = vsel %vm2222, %v2233, %v2235
        %v2237 = vshll.u32 %v2197, 8
        %v2238 = vmul.u32.u64.compose %v2237, %v2236
        %v2239 = vextract.low.u32 %v2238
        %v2240 = vextract.high.u32 %v2238
        %v2241 = vmul.u32.u64.compose %v2237, %v2232
        %v2242 = vextract.low.u32 %v2241
        %v2243 = vextract.high.u32 %v2241
        %v2244 = vmul.u32 %v2237, %v2228
        %v2245 = vadd.s32 %v2240, %v2242
        %vm2246 = vc.u32 %v2240, %v2242
        %v2247 = vadd.s32 %v2243, 1
        %v2248 = vsel %vm2246, %v2247, %v2243
        %v2249 = vadd.s32 %v2244, %v2248
        %v2250 = vadd.s32 %v2249, 536870912
        %v2251 = vshrl.u32 %v2250, 30
        %v2252 = vshll.u32 %v2251, 30
        %v2253 = vsub.s32 %v2249, %v2252
        %vm2254 = vcmp.lt.s32.totalorder %v2253, 0
        %v2255 = vsub.s32 0, %v2253
        %v2256 = vsel %vm2254, %v2255, %v2253
        %v2257 = vclz %v2256
        %v2258 = vsub.s32 %v2257, 2
        %vm2259 = vcmp.gt.s32.totalorder 0, %v2258
        %v2260 = vsel %vm2259, 0, %v2258
        %v2261 = vsub.s32 32, %v2260
        %v2262 = vshll.u32 %v2253, %v2260
        %v2263 = vshrl.u32 %v2245, %v2261
        %v2264 = vor.u32 %v2262, %v2263
        %v2265 = vsub.s32 4294967266, %v2260
        %v2266 = vadd.s32 %v2265, 127
        %v2267 = vshll.u32 %v2266, 23
        %v2268 = vor.u32 4788187, %v2267
        %v2269 = vand.u32 2147483647, %v2268
        %v2271 = vcvt.s32.f32 %v2264
        %v2272 = vmul.f32 %v2271, %v2269
        %v2273 = vxor.u32 %v2272, 2147483648
        %v2274 = vsel %vm2191, %v2273, %v2272
        %v2275 = vsub.s32 4, %v2251
        %v2276 = vsel %vm2191, %v2275, %v2251
        %v2277 = vsel %vm2190, %v319, %v2274
        %v2278 = vsel %vm2190, 0, %v2276
        %v2279 = vcosq.f32.pop %v2277
        %v2280 = vsinq.f32.pop %v2277
        %vm2281 = vweird.f32 %v319
        %v2282 = vadd.s32 %v2278, 3
        %v2283 = vand.u32 %v2282, 3
        %vm2284 = vcmp.lt.s32.totalorder %v2283, 2
        %vm2285 = vcmp.eq.s32.totalorder %v2283, 0
        %v2286 = vxor.u32 %v2280, 2147483648
        %v2287 = vsel %vm2285, %v2279, %v2286
        %vm2288 = vcmp.eq.s32.totalorder %v2283, 2
        %v2289 = vxor.u32 %v2279, 2147483648
        %v2290 = vsel %vm2288, %v2289, %v2280
        %v2291 = vsel %vm2284, %v2287, %v2290
        %v2292 = vsel %vm2281, nan, %v2291
        %v2293 = vand.u32 2147483647, %v320
        %vm2294 = vcmp.le.f32.partialorder %v2293, 0.7853982
        %vm2295 = vcmp.lt.s32.totalorder %v320, 0
        %v2296 = vand.u32 %v320, 2139095040
        %v2297 = vshrl.u32 %v2296, 23
        %v2298 = vsub.s32 %v2297, 127
        %v2299 = vand.u32 2147483647, %v320
        %v2300 = vand.u32 %v2299, 8388607
        %v2301 = vor.u32 %v2300, 8388608
        %v2302 = vsub.s32 0, %v2301
        %v2303 = vadd.s32 %v2298, 1
        %vm2304 = vcmp.gt.s32.totalorder %v2303, 0
        %v2305 = vsel %vm2304, %v2303, 0
        %v2306 = vshrl.u32 %v2305, 5
        %v2307 = vand.u32 %v2305, 31
        %v2308 = vsub.s32 32, %v2307
        %v2309 = vshrl.u32 683565275, %v2308
        %v2310 = vshll.u32 683565275, %v2307
        %v2311 = vshrl.u32 2475754826, %v2308
        %v2312 = vor.u32 %v2310, %v2311
        %v2313 = vshll.u32 2475754826, %v2307
        %v2314 = vshrl.u32 2131351028, %v2308
        %v2315 = vor.u32 %v2313, %v2314
        %v2316 = vshll.u32 2131351028, %v2307
        %v2317 = vshrl.u32 2102212464, %v2308
        %v2318 = vor.u32 %v2316, %v2317
        %v2319 = vshll.u32 2102212464, %v2307
        %v2320 = vshrl.u32 920167782, %v2308
        %v2321 = vor.u32 %v2319, %v2320
        %v2322 = vshll.u32 920167782, %v2307
        %v2323 = vshrl.u32 1326507024, %v2308
        %v2324 = vor.u32 %v2322, %v2323
        %vm2325 = vcmp.lt.s32.totalorder %v2306, 1
        %vm2326 = vcmp.lt.s32.totalorder %v2306, 2
        %vm2327 = vcmp.lt.s32.totalorder %v2306, 3
        %vm2328 = vcmp.lt.s32.totalorder %v2306, 4
        %v2329 = vsel %vm2325, %v2309, %v2312
        %v2330 = vsel %vm2328, %v2318, 2102212464
        %v2331 = vsel %vm2327, %v2315, %v2330
        %v2332 = vsel %vm2326, %v2329, %v2331
        %v2333 = vsel %vm2325, %v2312, %v2315
        %v2334 = vsel %vm2328, %v2321, 920167782
        %v2335 = vsel %vm2327, %v2318, %v2334
        %v2336 = vsel %vm2326, %v2333, %v2335
        %v2337 = vsel %vm2325, %v2315, %v2318
        %v2338 = vsel %vm2328, %v2324, 1326507024
        %v2339 = vsel %vm2327, %v2321, %v2338
        %v2340 = vsel %vm2326, %v2337, %v2339
        %v2341 = vshll.u32 %v2301, 8
        %v2342 = vmul.u32.u64.compose %v2341, %v2340
        %v2343 = vextract.low.u32 %v2342
        %v2344 = vextract.high.u32 %v2342
        %v2345 = vmul.u32.u64.compose %v2341, %v2336
        %v2346 = vextract.low.u32 %v2345
        %v2347 = vextract.high.u32 %v2345
        %v2348 = vmul.u32 %v2341, %v2332
        %v2349 = vadd.s32 %v2344, %v2346
        %vm2350 = vc.u32 %v2344, %v2346
        %v2351 = vadd.s32 %v2347, 1
        %v2352 = vsel %vm2350, %v2351, %v2347
        %v2353 = vadd.s32 %v2348, %v2352
        %v2354 = vadd.s32 %v2353, 536870912
        %v2355 = vshrl.u32 %v2354, 30
        %v2356 = vshll.u32 %v2355, 30
        %v2357 = vsub.s32 %v2353, %v2356
        %vm2358 = vcmp.lt.s32.totalorder %v2357, 0
        %v2359 = vsub.s32 0, %v2357
        %v2360 = vsel %vm2358, %v2359, %v2357
        %v2361 = vclz %v2360
        %v2362 = vsub.s32 %v2361, 2
        %vm2363 = vcmp.gt.s32.totalorder 0, %v2362
        %v2364 = vsel %vm2363, 0, %v2362
        %v2365 = vsub.s32 32, %v2364
        %v2366 = vshll.u32 %v2357, %v2364
        %v2367 = vshrl.u32 %v2349, %v2365
        %v2368 = vor.u32 %v2366, %v2367
        %v2369 = vsub.s32 4294967266, %v2364
        %v2370 = vadd.s32 %v2369, 127
        %v2371 = vshll.u32 %v2370, 23
        %v2372 = vor.u32 4788187, %v2371
        %v2373 = vand.u32 2147483647, %v2372
        %v2375 = vcvt.s32.f32 %v2368
        %v2376 = vmul.f32 %v2375, %v2373
        %v2377 = vxor.u32 %v2376, 2147483648
        %v2378 = vsel %vm2295, %v2377, %v2376
        %v2379 = vsub.s32 4, %v2355
        %v2380 = vsel %vm2295, %v2379, %v2355
        %v2381 = vsel %vm2294, %v320, %v2378
        %v2382 = vsel %vm2294, 0, %v2380
        %v2383 = vcosq.f32.pop %v2381
        %v2384 = vsinq.f32.pop %v2381
        %vm2385 = vweird.f32 %v320
        %v2386 = vadd.s32 %v2382, 3
        %v2387 = vand.u32 %v2386, 3
        %vm2388 = vcmp.lt.s32.totalorder %v2387, 2
        %vm2389 = vcmp.eq.s32.totalorder %v2387, 0
        %v2390 = vxor.u32 %v2384, 2147483648
        %v2391 = vsel %vm2389, %v2383, %v2390
        %vm2392 = vcmp.eq.s32.totalorder %v2387, 2
        %v2393 = vxor.u32 %v2383, 2147483648
        %v2394 = vsel %vm2392, %v2393, %v2384
        %v2395 = vsel %vm2388, %v2391, %v2394
        %v2396 = vsel %vm2385, nan, %v2395
        %v2397 = vand.u32 2147483647, %v321
        %vm2398 = vcmp.le.f32.partialorder %v2397, 0.7853982
        %vm2399 = vcmp.lt.s32.totalorder %v321, 0
        %v2400 = vand.u32 %v321, 2139095040
        %v2401 = vshrl.u32 %v2400, 23
        %v2402 = vsub.s32 %v2401, 127
        %v2403 = vand.u32 2147483647, %v321
        %v2404 = vand.u32 %v2403, 8388607
        %v2405 = vor.u32 %v2404, 8388608
        %v2406 = vsub.s32 0, %v2405
        %v2407 = vadd.s32 %v2402, 1
        %vm2408 = vcmp.gt.s32.totalorder %v2407, 0
        %v2409 = vsel %vm2408, %v2407, 0
        %v2410 = vshrl.u32 %v2409, 5
        %v2411 = vand.u32 %v2409, 31
        %v2412 = vsub.s32 32, %v2411
        %v2413 = vshrl.u32 683565275, %v2412
        %v2414 = vshll.u32 683565275, %v2411
        %v2415 = vshrl.u32 2475754826, %v2412
        %v2416 = vor.u32 %v2414, %v2415
        %v2417 = vshll.u32 2475754826, %v2411
        %v2418 = vshrl.u32 2131351028, %v2412
        %v2419 = vor.u32 %v2417, %v2418
        %v2420 = vshll.u32 2131351028, %v2411
        %v2421 = vshrl.u32 2102212464, %v2412
        %v2422 = vor.u32 %v2420, %v2421
        %v2423 = vshll.u32 2102212464, %v2411
        %v2424 = vshrl.u32 920167782, %v2412
        %v2425 = vor.u32 %v2423, %v2424
        %v2426 = vshll.u32 920167782, %v2411
        %v2427 = vshrl.u32 1326507024, %v2412
        %v2428 = vor.u32 %v2426, %v2427
        %vm2429 = vcmp.lt.s32.totalorder %v2410, 1
        %vm2430 = vcmp.lt.s32.totalorder %v2410, 2
        %vm2431 = vcmp.lt.s32.totalorder %v2410, 3
        %vm2432 = vcmp.lt.s32.totalorder %v2410, 4
        %v2433 = vsel %vm2429, %v2413, %v2416
        %v2434 = vsel %vm2432, %v2422, 2102212464
        %v2435 = vsel %vm2431, %v2419, %v2434
        %v2436 = vsel %vm2430, %v2433, %v2435
        %v2437 = vsel %vm2429, %v2416, %v2419
        %v2438 = vsel %vm2432, %v2425, 920167782
        %v2439 = vsel %vm2431, %v2422, %v2438
        %v2440 = vsel %vm2430, %v2437, %v2439
        %v2441 = vsel %vm2429, %v2419, %v2422
        %v2442 = vsel %vm2432, %v2428, 1326507024
        %v2443 = vsel %vm2431, %v2425, %v2442
        %v2444 = vsel %vm2430, %v2441, %v2443
        %v2445 = vshll.u32 %v2405, 8
        %v2446 = vmul.u32.u64.compose %v2445, %v2444
        %v2447 = vextract.low.u32 %v2446
        %v2448 = vextract.high.u32 %v2446
        %v2449 = vmul.u32.u64.compose %v2445, %v2440
        %v2450 = vextract.low.u32 %v2449
        %v2451 = vextract.high.u32 %v2449
        %v2452 = vmul.u32 %v2445, %v2436
        %v2453 = vadd.s32 %v2448, %v2450
        %vm2454 = vc.u32 %v2448, %v2450
        %v2455 = vadd.s32 %v2451, 1
        %v2456 = vsel %vm2454, %v2455, %v2451
        %v2457 = vadd.s32 %v2452, %v2456
        %v2458 = vadd.s32 %v2457, 536870912
        %v2459 = vshrl.u32 %v2458, 30
        %v2460 = vshll.u32 %v2459, 30
        %v2461 = vsub.s32 %v2457, %v2460
        %vm2462 = vcmp.lt.s32.totalorder %v2461, 0
        %v2463 = vsub.s32 0, %v2461
        %v2464 = vsel %vm2462, %v2463, %v2461
        %v2465 = vclz %v2464
        %v2466 = vsub.s32 %v2465, 2
        %vm2467 = vcmp.gt.s32.totalorder 0, %v2466
        %v2468 = vsel %vm2467, 0, %v2466
        %v2469 = vsub.s32 32, %v2468
        %v2470 = vshll.u32 %v2461, %v2468
        %v2471 = vshrl.u32 %v2453, %v2469
        %v2472 = vor.u32 %v2470, %v2471
        %v2473 = vsub.s32 4294967266, %v2468
        %v2474 = vadd.s32 %v2473, 127
        %v2475 = vshll.u32 %v2474, 23
        %v2476 = vor.u32 4788187, %v2475
        %v2477 = vand.u32 2147483647, %v2476
        %v2479 = vcvt.s32.f32 %v2472
        %v2480 = vmul.f32 %v2479, %v2477
        %v2481 = vxor.u32 %v2480, 2147483648
        %v2482 = vsel %vm2399, %v2481, %v2480
        %v2483 = vsub.s32 4, %v2459
        %v2484 = vsel %vm2399, %v2483, %v2459
        %v2485 = vsel %vm2398, %v321, %v2482
        %v2486 = vsel %vm2398, 0, %v2484
        %v2487 = vcosq.f32.pop %v2485
        %v2488 = vsinq.f32.pop %v2485
        %vm2489 = vweird.f32 %v321
        %v2490 = vadd.s32 %v2486, 3
        %v2491 = vand.u32 %v2490, 3
        %vm2492 = vcmp.lt.s32.totalorder %v2491, 2
        %vm2493 = vcmp.eq.s32.totalorder %v2491, 0
        %v2494 = vxor.u32 %v2488, 2147483648
        %v2495 = vsel %vm2493, %v2487, %v2494
        %vm2496 = vcmp.eq.s32.totalorder %v2491, 2
        %v2497 = vxor.u32 %v2487, 2147483648
        %v2498 = vsel %vm2496, %v2497, %v2488
        %v2499 = vsel %vm2492, %v2495, %v2498
        %v2500 = vsel %vm2489, nan, %v2499
        %v2501 = vand.u32 2147483647, %v322
        %vm2502 = vcmp.le.f32.partialorder %v2501, 0.7853982
        %vm2503 = vcmp.lt.s32.totalorder %v322, 0
        %v2504 = vand.u32 %v322, 2139095040
        %v2505 = vshrl.u32 %v2504, 23
        %v2506 = vsub.s32 %v2505, 127
        %v2507 = vand.u32 2147483647, %v322
        %v2508 = vand.u32 %v2507, 8388607
        %v2509 = vor.u32 %v2508, 8388608
        %v2510 = vsub.s32 0, %v2509
        %v2511 = vadd.s32 %v2506, 1
        %vm2512 = vcmp.gt.s32.totalorder %v2511, 0
        %v2513 = vsel %vm2512, %v2511, 0
        %v2514 = vshrl.u32 %v2513, 5
        %v2515 = vand.u32 %v2513, 31
        %v2516 = vsub.s32 32, %v2515
        %v2517 = vshrl.u32 683565275, %v2516
        %v2518 = vshll.u32 683565275, %v2515
        %v2519 = vshrl.u32 2475754826, %v2516
        %v2520 = vor.u32 %v2518, %v2519
        %v2521 = vshll.u32 2475754826, %v2515
        %v2522 = vshrl.u32 2131351028, %v2516
        %v2523 = vor.u32 %v2521, %v2522
        %v2524 = vshll.u32 2131351028, %v2515
        %v2525 = vshrl.u32 2102212464, %v2516
        %v2526 = vor.u32 %v2524, %v2525
        %v2527 = vshll.u32 2102212464, %v2515
        %v2528 = vshrl.u32 920167782, %v2516
        %v2529 = vor.u32 %v2527, %v2528
        %v2530 = vshll.u32 920167782, %v2515
        %v2531 = vshrl.u32 1326507024, %v2516
        %v2532 = vor.u32 %v2530, %v2531
        %vm2533 = vcmp.lt.s32.totalorder %v2514, 1
        %vm2534 = vcmp.lt.s32.totalorder %v2514, 2
        %vm2535 = vcmp.lt.s32.totalorder %v2514, 3
        %vm2536 = vcmp.lt.s32.totalorder %v2514, 4
        %v2537 = vsel %vm2533, %v2517, %v2520
        %v2538 = vsel %vm2536, %v2526, 2102212464
        %v2539 = vsel %vm2535, %v2523, %v2538
        %v2540 = vsel %vm2534, %v2537, %v2539
        %v2541 = vsel %vm2533, %v2520, %v2523
        %v2542 = vsel %vm2536, %v2529, 920167782
        %v2543 = vsel %vm2535, %v2526, %v2542
        %v2544 = vsel %vm2534, %v2541, %v2543
        %v2545 = vsel %vm2533, %v2523, %v2526
        %v2546 = vsel %vm2536, %v2532, 1326507024
        %v2547 = vsel %vm2535, %v2529, %v2546
        %v2548 = vsel %vm2534, %v2545, %v2547
        %v2549 = vshll.u32 %v2509, 8
        %v2550 = vmul.u32.u64.compose %v2549, %v2548
        %v2551 = vextract.low.u32 %v2550
        %v2552 = vextract.high.u32 %v2550
        %v2553 = vmul.u32.u64.compose %v2549, %v2544
        %v2554 = vextract.low.u32 %v2553
        %v2555 = vextract.high.u32 %v2553
        %v2556 = vmul.u32 %v2549, %v2540
        %v2557 = vadd.s32 %v2552, %v2554
        %vm2558 = vc.u32 %v2552, %v2554
        %v2559 = vadd.s32 %v2555, 1
        %v2560 = vsel %vm2558, %v2559, %v2555
        %v2561 = vadd.s32 %v2556, %v2560
        %v2562 = vadd.s32 %v2561, 536870912
        %v2563 = vshrl.u32 %v2562, 30
        %v2564 = vshll.u32 %v2563, 30
        %v2565 = vsub.s32 %v2561, %v2564
        %vm2566 = vcmp.lt.s32.totalorder %v2565, 0
        %v2567 = vsub.s32 0, %v2565
        %v2568 = vsel %vm2566, %v2567, %v2565
        %v2569 = vclz %v2568
        %v2570 = vsub.s32 %v2569, 2
        %vm2571 = vcmp.gt.s32.totalorder 0, %v2570
        %v2572 = vsel %vm2571, 0, %v2570
        %v2573 = vsub.s32 32, %v2572
        %v2574 = vshll.u32 %v2565, %v2572
        %v2575 = vshrl.u32 %v2557, %v2573
        %v2576 = vor.u32 %v2574, %v2575
        %v2577 = vsub.s32 4294967266, %v2572
        %v2578 = vadd.s32 %v2577, 127
        %v2579 = vshll.u32 %v2578, 23
        %v2580 = vor.u32 4788187, %v2579
        %v2581 = vand.u32 2147483647, %v2580
        %v2583 = vcvt.s32.f32 %v2576
        %v2584 = vmul.f32 %v2583, %v2581
        %v2585 = vxor.u32 %v2584, 2147483648
        %v2586 = vsel %vm2503, %v2585, %v2584
        %v2587 = vsub.s32 4, %v2563
        %v2588 = vsel %vm2503, %v2587, %v2563
        %v2589 = vsel %vm2502, %v322, %v2586
        %v2590 = vsel %vm2502, 0, %v2588
        %v2591 = vcosq.f32.pop %v2589
        %v2592 = vsinq.f32.pop %v2589
        %vm2593 = vweird.f32 %v322
        %v2594 = vadd.s32 %v2590, 3
        %v2595 = vand.u32 %v2594, 3
        %vm2596 = vcmp.lt.s32.totalorder %v2595, 2
        %vm2597 = vcmp.eq.s32.totalorder %v2595, 0
        %v2598 = vxor.u32 %v2592, 2147483648
        %v2599 = vsel %vm2597, %v2591, %v2598
        %vm2600 = vcmp.eq.s32.totalorder %v2595, 2
        %v2601 = vxor.u32 %v2591, 2147483648
        %v2602 = vsel %vm2600, %v2601, %v2592
        %v2603 = vsel %vm2596, %v2599, %v2602
        %v2604 = vsel %vm2593, nan, %v2603
        %v2605 = vand.u32 2147483647, %v323
        %vm2606 = vcmp.le.f32.partialorder %v2605, 0.7853982
        %vm2607 = vcmp.lt.s32.totalorder %v323, 0
        %v2608 = vand.u32 %v323, 2139095040
        %v2609 = vshrl.u32 %v2608, 23
        %v2610 = vsub.s32 %v2609, 127
        %v2611 = vand.u32 2147483647, %v323
        %v2612 = vand.u32 %v2611, 8388607
        %v2613 = vor.u32 %v2612, 8388608
        %v2614 = vsub.s32 0, %v2613
        %v2615 = vadd.s32 %v2610, 1
        %vm2616 = vcmp.gt.s32.totalorder %v2615, 0
        %v2617 = vsel %vm2616, %v2615, 0
        %v2618 = vshrl.u32 %v2617, 5
        %v2619 = vand.u32 %v2617, 31
        %v2620 = vsub.s32 32, %v2619
        %v2621 = vshrl.u32 683565275, %v2620
        %v2622 = vshll.u32 683565275, %v2619
        %v2623 = vshrl.u32 2475754826, %v2620
        %v2624 = vor.u32 %v2622, %v2623
        %v2625 = vshll.u32 2475754826, %v2619
        %v2626 = vshrl.u32 2131351028, %v2620
        %v2627 = vor.u32 %v2625, %v2626
        %v2628 = vshll.u32 2131351028, %v2619
        %v2629 = vshrl.u32 2102212464, %v2620
        %v2630 = vor.u32 %v2628, %v2629
        %v2631 = vshll.u32 2102212464, %v2619
        %v2632 = vshrl.u32 920167782, %v2620
        %v2633 = vor.u32 %v2631, %v2632
        %v2634 = vshll.u32 920167782, %v2619
        %v2635 = vshrl.u32 1326507024, %v2620
        %v2636 = vor.u32 %v2634, %v2635
        %vm2637 = vcmp.lt.s32.totalorder %v2618, 1
        %vm2638 = vcmp.lt.s32.totalorder %v2618, 2
        %vm2639 = vcmp.lt.s32.totalorder %v2618, 3
        %vm2640 = vcmp.lt.s32.totalorder %v2618, 4
        %v2641 = vsel %vm2637, %v2621, %v2624
        %v2642 = vsel %vm2640, %v2630, 2102212464
        %v2643 = vsel %vm2639, %v2627, %v2642
        %v2644 = vsel %vm2638, %v2641, %v2643
        %v2645 = vsel %vm2637, %v2624, %v2627
        %v2646 = vsel %vm2640, %v2633, 920167782
        %v2647 = vsel %vm2639, %v2630, %v2646
        %v2648 = vsel %vm2638, %v2645, %v2647
        %v2649 = vsel %vm2637, %v2627, %v2630
        %v2650 = vsel %vm2640, %v2636, 1326507024
        %v2651 = vsel %vm2639, %v2633, %v2650
        %v2652 = vsel %vm2638, %v2649, %v2651
        %v2653 = vshll.u32 %v2613, 8
        %v2654 = vmul.u32.u64.compose %v2653, %v2652
        %v2655 = vextract.low.u32 %v2654
        %v2656 = vextract.high.u32 %v2654
        %v2657 = vmul.u32.u64.compose %v2653, %v2648
        %v2658 = vextract.low.u32 %v2657
        %v2659 = vextract.high.u32 %v2657
        %v2660 = vmul.u32 %v2653, %v2644
        %v2661 = vadd.s32 %v2656, %v2658
        %vm2662 = vc.u32 %v2656, %v2658
        %v2663 = vadd.s32 %v2659, 1
        %v2664 = vsel %vm2662, %v2663, %v2659
        %v2665 = vadd.s32 %v2660, %v2664
        %v2666 = vadd.s32 %v2665, 536870912
        %v2667 = vshrl.u32 %v2666, 30
        %v2668 = vshll.u32 %v2667, 30
        %v2669 = vsub.s32 %v2665, %v2668
        %vm2670 = vcmp.lt.s32.totalorder %v2669, 0
        %v2671 = vsub.s32 0, %v2669
        %v2672 = vsel %vm2670, %v2671, %v2669
        %v2673 = vclz %v2672
        %v2674 = vsub.s32 %v2673, 2
        %vm2675 = vcmp.gt.s32.totalorder 0, %v2674
        %v2676 = vsel %vm2675, 0, %v2674
        %v2677 = vsub.s32 32, %v2676
        %v2678 = vshll.u32 %v2669, %v2676
        %v2679 = vshrl.u32 %v2661, %v2677
        %v2680 = vor.u32 %v2678, %v2679
        %v2681 = vsub.s32 4294967266, %v2676
        %v2682 = vadd.s32 %v2681, 127
        %v2683 = vshll.u32 %v2682, 23
        %v2684 = vor.u32 4788187, %v2683
        %v2685 = vand.u32 2147483647, %v2684
        %v2687 = vcvt.s32.f32 %v2680
        %v2688 = vmul.f32 %v2687, %v2685
        %v2689 = vxor.u32 %v2688, 2147483648
        %v2690 = vsel %vm2607, %v2689, %v2688
        %v2691 = vsub.s32 4, %v2667
        %v2692 = vsel %vm2607, %v2691, %v2667
        %v2693 = vsel %vm2606, %v323, %v2690
        %v2694 = vsel %vm2606, 0, %v2692
        %v2695 = vcosq.f32.pop %v2693
        %v2696 = vsinq.f32.pop %v2693
        %vm2697 = vweird.f32 %v323
        %v2698 = vadd.s32 %v2694, 3
        %v2699 = vand.u32 %v2698, 3
        %vm2700 = vcmp.lt.s32.totalorder %v2699, 2
        %vm2701 = vcmp.eq.s32.totalorder %v2699, 0
        %v2702 = vxor.u32 %v2696, 2147483648
        %v2703 = vsel %vm2701, %v2695, %v2702
        %vm2704 = vcmp.eq.s32.totalorder %v2699, 2
        %v2705 = vxor.u32 %v2695, 2147483648
        %v2706 = vsel %vm2704, %v2705, %v2696
        %v2707 = vsel %vm2700, %v2703, %v2706
        %v2708 = vsel %vm2697, nan, %v2707
        %v2709 = vand.u32 2147483647, %v324
        %vm2710 = vcmp.le.f32.partialorder %v2709, 0.7853982
        %vm2711 = vcmp.lt.s32.totalorder %v324, 0
        %v2712 = vand.u32 %v324, 2139095040
        %v2713 = vshrl.u32 %v2712, 23
        %v2714 = vsub.s32 %v2713, 127
        %v2715 = vand.u32 2147483647, %v324
        %v2716 = vand.u32 %v2715, 8388607
        %v2717 = vor.u32 %v2716, 8388608
        %v2718 = vsub.s32 0, %v2717
        %v2719 = vadd.s32 %v2714, 1
        %vm2720 = vcmp.gt.s32.totalorder %v2719, 0
        %v2721 = vsel %vm2720, %v2719, 0
        %v2722 = vshrl.u32 %v2721, 5
        %v2723 = vand.u32 %v2721, 31
        %v2724 = vsub.s32 32, %v2723
        %v2725 = vshrl.u32 683565275, %v2724
        %v2726 = vshll.u32 683565275, %v2723
        %v2727 = vshrl.u32 2475754826, %v2724
        %v2728 = vor.u32 %v2726, %v2727
        %v2729 = vshll.u32 2475754826, %v2723
        %v2730 = vshrl.u32 2131351028, %v2724
        %v2731 = vor.u32 %v2729, %v2730
        %v2732 = vshll.u32 2131351028, %v2723
        %v2733 = vshrl.u32 2102212464, %v2724
        %v2734 = vor.u32 %v2732, %v2733
        %v2735 = vshll.u32 2102212464, %v2723
        %v2736 = vshrl.u32 920167782, %v2724
        %v2737 = vor.u32 %v2735, %v2736
        %v2738 = vshll.u32 920167782, %v2723
        %v2739 = vshrl.u32 1326507024, %v2724
        %v2740 = vor.u32 %v2738, %v2739
        %vm2741 = vcmp.lt.s32.totalorder %v2722, 1
        %vm2742 = vcmp.lt.s32.totalorder %v2722, 2
        %vm2743 = vcmp.lt.s32.totalorder %v2722, 3
        %vm2744 = vcmp.lt.s32.totalorder %v2722, 4
        %v2745 = vsel %vm2741, %v2725, %v2728
        %v2746 = vsel %vm2744, %v2734, 2102212464
        %v2747 = vsel %vm2743, %v2731, %v2746
        %v2748 = vsel %vm2742, %v2745, %v2747
        %v2749 = vsel %vm2741, %v2728, %v2731
        %v2750 = vsel %vm2744, %v2737, 920167782
        %v2751 = vsel %vm2743, %v2734, %v2750
        %v2752 = vsel %vm2742, %v2749, %v2751
        %v2753 = vsel %vm2741, %v2731, %v2734
        %v2754 = vsel %vm2744, %v2740, 1326507024
        %v2755 = vsel %vm2743, %v2737, %v2754
        %v2756 = vsel %vm2742, %v2753, %v2755
        %v2757 = vshll.u32 %v2717, 8
        %v2758 = vmul.u32.u64.compose %v2757, %v2756
        %v2759 = vextract.low.u32 %v2758
        %v2760 = vextract.high.u32 %v2758
        %v2761 = vmul.u32.u64.compose %v2757, %v2752
        %v2762 = vextract.low.u32 %v2761
        %v2763 = vextract.high.u32 %v2761
        %v2764 = vmul.u32 %v2757, %v2748
        %v2765 = vadd.s32 %v2760, %v2762
        %vm2766 = vc.u32 %v2760, %v2762
        %v2767 = vadd.s32 %v2763, 1
        %v2768 = vsel %vm2766, %v2767, %v2763
        %v2769 = vadd.s32 %v2764, %v2768
        %v2770 = vadd.s32 %v2769, 536870912
        %v2771 = vshrl.u32 %v2770, 30
        %v2772 = vshll.u32 %v2771, 30
        %v2773 = vsub.s32 %v2769, %v2772
        %vm2774 = vcmp.lt.s32.totalorder %v2773, 0
        %v2775 = vsub.s32 0, %v2773
        %v2776 = vsel %vm2774, %v2775, %v2773
        %v2777 = vclz %v2776
        %v2778 = vsub.s32 %v2777, 2
        %vm2779 = vcmp.gt.s32.totalorder 0, %v2778
        %v2780 = vsel %vm2779, 0, %v2778
        %v2781 = vsub.s32 32, %v2780
        %v2782 = vshll.u32 %v2773, %v2780
        %v2783 = vshrl.u32 %v2765, %v2781
        %v2784 = vor.u32 %v2782, %v2783
        %v2785 = vsub.s32 4294967266, %v2780
        %v2786 = vadd.s32 %v2785, 127
        %v2787 = vshll.u32 %v2786, 23
        %v2788 = vor.u32 4788187, %v2787
        %v2789 = vand.u32 2147483647, %v2788
        %v2791 = vcvt.s32.f32 %v2784
        %v2792 = vmul.f32 %v2791, %v2789
        %v2793 = vxor.u32 %v2792, 2147483648
        %v2794 = vsel %vm2711, %v2793, %v2792
        %v2795 = vsub.s32 4, %v2771
        %v2796 = vsel %vm2711, %v2795, %v2771
        %v2797 = vsel %vm2710, %v324, %v2794
        %v2798 = vsel %vm2710, 0, %v2796
        %v2799 = vcosq.f32.pop %v2797
        %v2800 = vsinq.f32.pop %v2797
        %vm2801 = vweird.f32 %v324
        %v2802 = vadd.s32 %v2798, 3
        %v2803 = vand.u32 %v2802, 3
        %vm2804 = vcmp.lt.s32.totalorder %v2803, 2
        %vm2805 = vcmp.eq.s32.totalorder %v2803, 0
        %v2806 = vxor.u32 %v2800, 2147483648
        %v2807 = vsel %vm2805, %v2799, %v2806
        %vm2808 = vcmp.eq.s32.totalorder %v2803, 2
        %v2809 = vxor.u32 %v2799, 2147483648
        %v2810 = vsel %vm2808, %v2809, %v2800
        %v2811 = vsel %vm2804, %v2807, %v2810
        %v2812 = vsel %vm2801, nan, %v2811
        %v2813 = vand.u32 2147483647, %v325
        %vm2814 = vcmp.le.f32.partialorder %v2813, 0.7853982
        %vm2815 = vcmp.lt.s32.totalorder %v325, 0
        %v2816 = vand.u32 %v325, 2139095040
        %v2817 = vshrl.u32 %v2816, 23
        %v2818 = vsub.s32 %v2817, 127
        %v2819 = vand.u32 2147483647, %v325
        %v2820 = vand.u32 %v2819, 8388607
        %v2821 = vor.u32 %v2820, 8388608
        %v2822 = vsub.s32 0, %v2821
        %v2823 = vadd.s32 %v2818, 1
        %vm2824 = vcmp.gt.s32.totalorder %v2823, 0
        %v2825 = vsel %vm2824, %v2823, 0
        %v2826 = vshrl.u32 %v2825, 5
        %v2827 = vand.u32 %v2825, 31
        %v2828 = vsub.s32 32, %v2827
        %v2829 = vshrl.u32 683565275, %v2828
        %v2830 = vshll.u32 683565275, %v2827
        %v2831 = vshrl.u32 2475754826, %v2828
        %v2832 = vor.u32 %v2830, %v2831
        %v2833 = vshll.u32 2475754826, %v2827
        %v2834 = vshrl.u32 2131351028, %v2828
        %v2835 = vor.u32 %v2833, %v2834
        %v2836 = vshll.u32 2131351028, %v2827
        %v2837 = vshrl.u32 2102212464, %v2828
        %v2838 = vor.u32 %v2836, %v2837
        %v2839 = vshll.u32 2102212464, %v2827
        %v2840 = vshrl.u32 920167782, %v2828
        %v2841 = vor.u32 %v2839, %v2840
        %v2842 = vshll.u32 920167782, %v2827
        %v2843 = vshrl.u32 1326507024, %v2828
        %v2844 = vor.u32 %v2842, %v2843
        %vm2845 = vcmp.lt.s32.totalorder %v2826, 1
        %vm2846 = vcmp.lt.s32.totalorder %v2826, 2
        %vm2847 = vcmp.lt.s32.totalorder %v2826, 3
        %vm2848 = vcmp.lt.s32.totalorder %v2826, 4
        %v2849 = vsel %vm2845, %v2829, %v2832
        %v2850 = vsel %vm2848, %v2838, 2102212464
        %v2851 = vsel %vm2847, %v2835, %v2850
        %v2852 = vsel %vm2846, %v2849, %v2851
        %v2853 = vsel %vm2845, %v2832, %v2835
        %v2854 = vsel %vm2848, %v2841, 920167782
        %v2855 = vsel %vm2847, %v2838, %v2854
        %v2856 = vsel %vm2846, %v2853, %v2855
        %v2857 = vsel %vm2845, %v2835, %v2838
        %v2858 = vsel %vm2848, %v2844, 1326507024
        %v2859 = vsel %vm2847, %v2841, %v2858
        %v2860 = vsel %vm2846, %v2857, %v2859
        %v2861 = vshll.u32 %v2821, 8
        %v2862 = vmul.u32.u64.compose %v2861, %v2860
        %v2863 = vextract.low.u32 %v2862
        %v2864 = vextract.high.u32 %v2862
        %v2865 = vmul.u32.u64.compose %v2861, %v2856
        %v2866 = vextract.low.u32 %v2865
        %v2867 = vextract.high.u32 %v2865
        %v2868 = vmul.u32 %v2861, %v2852
        %v2869 = vadd.s32 %v2864, %v2866
        %vm2870 = vc.u32 %v2864, %v2866
        %v2871 = vadd.s32 %v2867, 1
        %v2872 = vsel %vm2870, %v2871, %v2867
        %v2873 = vadd.s32 %v2868, %v2872
        %v2874 = vadd.s32 %v2873, 536870912
        %v2875 = vshrl.u32 %v2874, 30
        %v2876 = vshll.u32 %v2875, 30
        %v2877 = vsub.s32 %v2873, %v2876
        %vm2878 = vcmp.lt.s32.totalorder %v2877, 0
        %v2879 = vsub.s32 0, %v2877
        %v2880 = vsel %vm2878, %v2879, %v2877
        %v2881 = vclz %v2880
        %v2882 = vsub.s32 %v2881, 2
        %vm2883 = vcmp.gt.s32.totalorder 0, %v2882
        %v2884 = vsel %vm2883, 0, %v2882
        %v2885 = vsub.s32 32, %v2884
        %v2886 = vshll.u32 %v2877, %v2884
        %v2887 = vshrl.u32 %v2869, %v2885
        %v2888 = vor.u32 %v2886, %v2887
        %v2889 = vsub.s32 4294967266, %v2884
        %v2890 = vadd.s32 %v2889, 127
        %v2891 = vshll.u32 %v2890, 23
        %v2892 = vor.u32 4788187, %v2891
        %v2893 = vand.u32 2147483647, %v2892
        %v2895 = vcvt.s32.f32 %v2888
        %v2896 = vmul.f32 %v2895, %v2893
        %v2897 = vxor.u32 %v2896, 2147483648
        %v2898 = vsel %vm2815, %v2897, %v2896
        %v2899 = vsub.s32 4, %v2875
        %v2900 = vsel %vm2815, %v2899, %v2875
        %v2901 = vsel %vm2814, %v325, %v2898
        %v2902 = vsel %vm2814, 0, %v2900
        %v2903 = vcosq.f32.pop %v2901
        %v2904 = vsinq.f32.pop %v2901
        %vm2905 = vweird.f32 %v325
        %v2906 = vadd.s32 %v2902, 3
        %v2907 = vand.u32 %v2906, 3
        %vm2908 = vcmp.lt.s32.totalorder %v2907, 2
        %vm2909 = vcmp.eq.s32.totalorder %v2907, 0
        %v2910 = vxor.u32 %v2904, 2147483648
        %v2911 = vsel %vm2909, %v2903, %v2910
        %vm2912 = vcmp.eq.s32.totalorder %v2907, 2
        %v2913 = vxor.u32 %v2903, 2147483648
        %v2914 = vsel %vm2912, %v2913, %v2904
        %v2915 = vsel %vm2908, %v2911, %v2914
        %v2916 = vsel %vm2905, nan, %v2915
        %v2917 = vand.u32 2147483647, %v326
        %vm2918 = vcmp.le.f32.partialorder %v2917, 0.7853982
        %vm2919 = vcmp.lt.s32.totalorder %v326, 0
        %v2920 = vand.u32 %v326, 2139095040
        %v2921 = vshrl.u32 %v2920, 23
        %v2922 = vsub.s32 %v2921, 127
        %v2923 = vand.u32 2147483647, %v326
        %v2924 = vand.u32 %v2923, 8388607
        %v2925 = vor.u32 %v2924, 8388608
        %v2926 = vsub.s32 0, %v2925
        %v2927 = vadd.s32 %v2922, 1
        %vm2928 = vcmp.gt.s32.totalorder %v2927, 0
        %v2929 = vsel %vm2928, %v2927, 0
        %v2930 = vshrl.u32 %v2929, 5
        %v2931 = vand.u32 %v2929, 31
        %v2932 = vsub.s32 32, %v2931
        %v2933 = vshrl.u32 683565275, %v2932
        %v2934 = vshll.u32 683565275, %v2931
        %v2935 = vshrl.u32 2475754826, %v2932
        %v2936 = vor.u32 %v2934, %v2935
        %v2937 = vshll.u32 2475754826, %v2931
        %v2938 = vshrl.u32 2131351028, %v2932
        %v2939 = vor.u32 %v2937, %v2938
        %v2940 = vshll.u32 2131351028, %v2931
        %v2941 = vshrl.u32 2102212464, %v2932
        %v2942 = vor.u32 %v2940, %v2941
        %v2943 = vshll.u32 2102212464, %v2931
        %v2944 = vshrl.u32 920167782, %v2932
        %v2945 = vor.u32 %v2943, %v2944
        %v2946 = vshll.u32 920167782, %v2931
        %v2947 = vshrl.u32 1326507024, %v2932
        %v2948 = vor.u32 %v2946, %v2947
        %vm2949 = vcmp.lt.s32.totalorder %v2930, 1
        %vm2950 = vcmp.lt.s32.totalorder %v2930, 2
        %vm2951 = vcmp.lt.s32.totalorder %v2930, 3
        %vm2952 = vcmp.lt.s32.totalorder %v2930, 4
        %v2953 = vsel %vm2949, %v2933, %v2936
        %v2954 = vsel %vm2952, %v2942, 2102212464
        %v2955 = vsel %vm2951, %v2939, %v2954
        %v2956 = vsel %vm2950, %v2953, %v2955
        %v2957 = vsel %vm2949, %v2936, %v2939
        %v2958 = vsel %vm2952, %v2945, 920167782
        %v2959 = vsel %vm2951, %v2942, %v2958
        %v2960 = vsel %vm2950, %v2957, %v2959
        %v2961 = vsel %vm2949, %v2939, %v2942
        %v2962 = vsel %vm2952, %v2948, 1326507024
        %v2963 = vsel %vm2951, %v2945, %v2962
        %v2964 = vsel %vm2950, %v2961, %v2963
        %v2965 = vshll.u32 %v2925, 8
        %v2966 = vmul.u32.u64.compose %v2965, %v2964
        %v2967 = vextract.low.u32 %v2966
        %v2968 = vextract.high.u32 %v2966
        %v2969 = vmul.u32.u64.compose %v2965, %v2960
        %v2970 = vextract.low.u32 %v2969
        %v2971 = vextract.high.u32 %v2969
        %v2972 = vmul.u32 %v2965, %v2956
        %v2973 = vadd.s32 %v2968, %v2970
        %vm2974 = vc.u32 %v2968, %v2970
        %v2975 = vadd.s32 %v2971, 1
        %v2976 = vsel %vm2974, %v2975, %v2971
        %v2977 = vadd.s32 %v2972, %v2976
        %v2978 = vadd.s32 %v2977, 536870912
        %v2979 = vshrl.u32 %v2978, 30
        %v2980 = vshll.u32 %v2979, 30
        %v2981 = vsub.s32 %v2977, %v2980
        %vm2982 = vcmp.lt.s32.totalorder %v2981, 0
        %v2983 = vsub.s32 0, %v2981
        %v2984 = vsel %vm2982, %v2983, %v2981
        %v2985 = vclz %v2984
        %v2986 = vsub.s32 %v2985, 2
        %vm2987 = vcmp.gt.s32.totalorder 0, %v2986
        %v2988 = vsel %vm2987, 0, %v2986
        %v2989 = vsub.s32 32, %v2988
        %v2990 = vshll.u32 %v2981, %v2988
        %v2991 = vshrl.u32 %v2973, %v2989
        %v2992 = vor.u32 %v2990, %v2991
        %v2993 = vsub.s32 4294967266, %v2988
        %v2994 = vadd.s32 %v2993, 127
        %v2995 = vshll.u32 %v2994, 23
        %v2996 = vor.u32 4788187, %v2995
        %v2997 = vand.u32 2147483647, %v2996
        %v2999 = vcvt.s32.f32 %v2992
        %v3000 = vmul.f32 %v2999, %v2997
        %v3001 = vxor.u32 %v3000, 2147483648
        %v3002 = vsel %vm2919, %v3001, %v3000
        %v3003 = vsub.s32 4, %v2979
        %v3004 = vsel %vm2919, %v3003, %v2979
        %v3005 = vsel %vm2918, %v326, %v3002
        %v3006 = vsel %vm2918, 0, %v3004
        %v3007 = vcosq.f32.pop %v3005
        %v3008 = vsinq.f32.pop %v3005
        %vm3009 = vweird.f32 %v326
        %v3010 = vadd.s32 %v3006, 3
        %v3011 = vand.u32 %v3010, 3
        %vm3012 = vcmp.lt.s32.totalorder %v3011, 2
        %vm3013 = vcmp.eq.s32.totalorder %v3011, 0
        %v3014 = vxor.u32 %v3008, 2147483648
        %v3015 = vsel %vm3013, %v3007, %v3014
        %vm3016 = vcmp.eq.s32.totalorder %v3011, 2
        %v3017 = vxor.u32 %v3007, 2147483648
        %v3018 = vsel %vm3016, %v3017, %v3008
        %v3019 = vsel %vm3012, %v3015, %v3018
        %v3020 = vsel %vm3009, nan, %v3019
        %v3021 = vand.u32 2147483647, %v327
        %vm3022 = vcmp.le.f32.partialorder %v3021, 0.7853982
        %vm3023 = vcmp.lt.s32.totalorder %v327, 0
        %v3024 = vand.u32 %v327, 2139095040
        %v3025 = vshrl.u32 %v3024, 23
        %v3026 = vsub.s32 %v3025, 127
        %v3027 = vand.u32 2147483647, %v327
        %v3028 = vand.u32 %v3027, 8388607
        %v3029 = vor.u32 %v3028, 8388608
        %v3030 = vsub.s32 0, %v3029
        %v3031 = vadd.s32 %v3026, 1
        %vm3032 = vcmp.gt.s32.totalorder %v3031, 0
        %v3033 = vsel %vm3032, %v3031, 0
        %v3034 = vshrl.u32 %v3033, 5
        %v3035 = vand.u32 %v3033, 31
        %v3036 = vsub.s32 32, %v3035
        %v3037 = vshrl.u32 683565275, %v3036
        %v3038 = vshll.u32 683565275, %v3035
        %v3039 = vshrl.u32 2475754826, %v3036
        %v3040 = vor.u32 %v3038, %v3039
        %v3041 = vshll.u32 2475754826, %v3035
        %v3042 = vshrl.u32 2131351028, %v3036
        %v3043 = vor.u32 %v3041, %v3042
        %v3044 = vshll.u32 2131351028, %v3035
        %v3045 = vshrl.u32 2102212464, %v3036
        %v3046 = vor.u32 %v3044, %v3045
        %v3047 = vshll.u32 2102212464, %v3035
        %v3048 = vshrl.u32 920167782, %v3036
        %v3049 = vor.u32 %v3047, %v3048
        %v3050 = vshll.u32 920167782, %v3035
        %v3051 = vshrl.u32 1326507024, %v3036
        %v3052 = vor.u32 %v3050, %v3051
        %vm3053 = vcmp.lt.s32.totalorder %v3034, 1
        %vm3054 = vcmp.lt.s32.totalorder %v3034, 2
        %vm3055 = vcmp.lt.s32.totalorder %v3034, 3
        %vm3056 = vcmp.lt.s32.totalorder %v3034, 4
        %v3057 = vsel %vm3053, %v3037, %v3040
        %v3058 = vsel %vm3056, %v3046, 2102212464
        %v3059 = vsel %vm3055, %v3043, %v3058
        %v3060 = vsel %vm3054, %v3057, %v3059
        %v3061 = vsel %vm3053, %v3040, %v3043
        %v3062 = vsel %vm3056, %v3049, 920167782
        %v3063 = vsel %vm3055, %v3046, %v3062
        %v3064 = vsel %vm3054, %v3061, %v3063
        %v3065 = vsel %vm3053, %v3043, %v3046
        %v3066 = vsel %vm3056, %v3052, 1326507024
        %v3067 = vsel %vm3055, %v3049, %v3066
        %v3068 = vsel %vm3054, %v3065, %v3067
        %v3069 = vshll.u32 %v3029, 8
        %v3070 = vmul.u32.u64.compose %v3069, %v3068
        %v3071 = vextract.low.u32 %v3070
        %v3072 = vextract.high.u32 %v3070
        %v3073 = vmul.u32.u64.compose %v3069, %v3064
        %v3074 = vextract.low.u32 %v3073
        %v3075 = vextract.high.u32 %v3073
        %v3076 = vmul.u32 %v3069, %v3060
        %v3077 = vadd.s32 %v3072, %v3074
        %vm3078 = vc.u32 %v3072, %v3074
        %v3079 = vadd.s32 %v3075, 1
        %v3080 = vsel %vm3078, %v3079, %v3075
        %v3081 = vadd.s32 %v3076, %v3080
        %v3082 = vadd.s32 %v3081, 536870912
        %v3083 = vshrl.u32 %v3082, 30
        %v3084 = vshll.u32 %v3083, 30
        %v3085 = vsub.s32 %v3081, %v3084
        %vm3086 = vcmp.lt.s32.totalorder %v3085, 0
        %v3087 = vsub.s32 0, %v3085
        %v3088 = vsel %vm3086, %v3087, %v3085
        %v3089 = vclz %v3088
        %v3090 = vsub.s32 %v3089, 2
        %vm3091 = vcmp.gt.s32.totalorder 0, %v3090
        %v3092 = vsel %vm3091, 0, %v3090
        %v3093 = vsub.s32 32, %v3092
        %v3094 = vshll.u32 %v3085, %v3092
        %v3095 = vshrl.u32 %v3077, %v3093
        %v3096 = vor.u32 %v3094, %v3095
        %v3097 = vsub.s32 4294967266, %v3092
        %v3098 = vadd.s32 %v3097, 127
        %v3099 = vshll.u32 %v3098, 23
        %v3100 = vor.u32 4788187, %v3099
        %v3101 = vand.u32 2147483647, %v3100
        %v3103 = vcvt.s32.f32 %v3096
        %v3104 = vmul.f32 %v3103, %v3101
        %v3105 = vxor.u32 %v3104, 2147483648
        %v3106 = vsel %vm3023, %v3105, %v3104
        %v3107 = vsub.s32 4, %v3083
        %v3108 = vsel %vm3023, %v3107, %v3083
        %v3109 = vsel %vm3022, %v327, %v3106
        %v3110 = vsel %vm3022, 0, %v3108
        %v3111 = vcosq.f32.pop %v3109
        %v3112 = vsinq.f32.pop %v3109
        %vm3113 = vweird.f32 %v327
        %v3114 = vadd.s32 %v3110, 3
        %v3115 = vand.u32 %v3114, 3
        %vm3116 = vcmp.lt.s32.totalorder %v3115, 2
        %vm3117 = vcmp.eq.s32.totalorder %v3115, 0
        %v3118 = vxor.u32 %v3112, 2147483648
        %v3119 = vsel %vm3117, %v3111, %v3118
        %vm3120 = vcmp.eq.s32.totalorder %v3115, 2
        %v3121 = vxor.u32 %v3111, 2147483648
        %v3122 = vsel %vm3120, %v3121, %v3112
        %v3123 = vsel %vm3116, %v3119, %v3122
        %v3124 = vsel %vm3113, nan, %v3123
        %v3125 = vand.u32 2147483647, %v328
        %vm3126 = vcmp.le.f32.partialorder %v3125, 0.7853982
        %vm3127 = vcmp.lt.s32.totalorder %v328, 0
        %v3128 = vand.u32 %v328, 2139095040
        %v3129 = vshrl.u32 %v3128, 23
        %v3130 = vsub.s32 %v3129, 127
        %v3131 = vand.u32 2147483647, %v328
        %v3132 = vand.u32 %v3131, 8388607
        %v3133 = vor.u32 %v3132, 8388608
        %v3134 = vsub.s32 0, %v3133
        %v3135 = vadd.s32 %v3130, 1
        %vm3136 = vcmp.gt.s32.totalorder %v3135, 0
        %v3137 = vsel %vm3136, %v3135, 0
        %v3138 = vshrl.u32 %v3137, 5
        %v3139 = vand.u32 %v3137, 31
        %v3140 = vsub.s32 32, %v3139
        %v3141 = vshrl.u32 683565275, %v3140
        %v3142 = vshll.u32 683565275, %v3139
        %v3143 = vshrl.u32 2475754826, %v3140
        %v3144 = vor.u32 %v3142, %v3143
        %v3145 = vshll.u32 2475754826, %v3139
        %v3146 = vshrl.u32 2131351028, %v3140
        %v3147 = vor.u32 %v3145, %v3146
        %v3148 = vshll.u32 2131351028, %v3139
        %v3149 = vshrl.u32 2102212464, %v3140
        %v3150 = vor.u32 %v3148, %v3149
        %v3151 = vshll.u32 2102212464, %v3139
        %v3152 = vshrl.u32 920167782, %v3140
        %v3153 = vor.u32 %v3151, %v3152
        %v3154 = vshll.u32 920167782, %v3139
        %v3155 = vshrl.u32 1326507024, %v3140
        %v3156 = vor.u32 %v3154, %v3155
        %vm3157 = vcmp.lt.s32.totalorder %v3138, 1
        %vm3158 = vcmp.lt.s32.totalorder %v3138, 2
        %vm3159 = vcmp.lt.s32.totalorder %v3138, 3
        %vm3160 = vcmp.lt.s32.totalorder %v3138, 4
        %v3161 = vsel %vm3157, %v3141, %v3144
        %v3162 = vsel %vm3160, %v3150, 2102212464
        %v3163 = vsel %vm3159, %v3147, %v3162
        %v3164 = vsel %vm3158, %v3161, %v3163
        %v3165 = vsel %vm3157, %v3144, %v3147
        %v3166 = vsel %vm3160, %v3153, 920167782
        %v3167 = vsel %vm3159, %v3150, %v3166
        %v3168 = vsel %vm3158, %v3165, %v3167
        %v3169 = vsel %vm3157, %v3147, %v3150
        %v3170 = vsel %vm3160, %v3156, 1326507024
        %v3171 = vsel %vm3159, %v3153, %v3170
        %v3172 = vsel %vm3158, %v3169, %v3171
        %v3173 = vshll.u32 %v3133, 8
        %v3174 = vmul.u32.u64.compose %v3173, %v3172
        %v3175 = vextract.low.u32 %v3174
        %v3176 = vextract.high.u32 %v3174
        %v3177 = vmul.u32.u64.compose %v3173, %v3168
        %v3178 = vextract.low.u32 %v3177
        %v3179 = vextract.high.u32 %v3177
        %v3180 = vmul.u32 %v3173, %v3164
        %v3181 = vadd.s32 %v3176, %v3178
        %vm3182 = vc.u32 %v3176, %v3178
        %v3183 = vadd.s32 %v3179, 1
        %v3184 = vsel %vm3182, %v3183, %v3179
        %v3185 = vadd.s32 %v3180, %v3184
        %v3186 = vadd.s32 %v3185, 536870912
        %v3187 = vshrl.u32 %v3186, 30
        %v3188 = vshll.u32 %v3187, 30
        %v3189 = vsub.s32 %v3185, %v3188
        %vm3190 = vcmp.lt.s32.totalorder %v3189, 0
        %v3191 = vsub.s32 0, %v3189
        %v3192 = vsel %vm3190, %v3191, %v3189
        %v3193 = vclz %v3192
        %v3194 = vsub.s32 %v3193, 2
        %vm3195 = vcmp.gt.s32.totalorder 0, %v3194
        %v3196 = vsel %vm3195, 0, %v3194
        %v3197 = vsub.s32 32, %v3196
        %v3198 = vshll.u32 %v3189, %v3196
        %v3199 = vshrl.u32 %v3181, %v3197
        %v3200 = vor.u32 %v3198, %v3199
        %v3201 = vsub.s32 4294967266, %v3196
        %v3202 = vadd.s32 %v3201, 127
        %v3203 = vshll.u32 %v3202, 23
        %v3204 = vor.u32 4788187, %v3203
        %v3205 = vand.u32 2147483647, %v3204
        %v3207 = vcvt.s32.f32 %v3200
        %v3208 = vmul.f32 %v3207, %v3205
        %v3209 = vxor.u32 %v3208, 2147483648
        %v3210 = vsel %vm3127, %v3209, %v3208
        %v3211 = vsub.s32 4, %v3187
        %v3212 = vsel %vm3127, %v3211, %v3187
        %v3213 = vsel %vm3126, %v328, %v3210
        %v3214 = vsel %vm3126, 0, %v3212
        %v3215 = vcosq.f32.pop %v3213
        %v3216 = vsinq.f32.pop %v3213
        %vm3217 = vweird.f32 %v328
        %v3218 = vadd.s32 %v3214, 3
        %v3219 = vand.u32 %v3218, 3
        %vm3220 = vcmp.lt.s32.totalorder %v3219, 2
        %vm3221 = vcmp.eq.s32.totalorder %v3219, 0
        %v3222 = vxor.u32 %v3216, 2147483648
        %v3223 = vsel %vm3221, %v3215, %v3222
        %vm3224 = vcmp.eq.s32.totalorder %v3219, 2
        %v3225 = vxor.u32 %v3215, 2147483648
        %v3226 = vsel %vm3224, %v3225, %v3216
        %v3227 = vsel %vm3220, %v3223, %v3226
        %v3228 = vsel %vm3217, nan, %v3227
        %v3229 = vand.u32 2147483647, %v329
        %vm3230 = vcmp.le.f32.partialorder %v3229, 0.7853982
        %vm3231 = vcmp.lt.s32.totalorder %v329, 0
        %v3232 = vand.u32 %v329, 2139095040
        %v3233 = vshrl.u32 %v3232, 23
        %v3234 = vsub.s32 %v3233, 127
        %v3235 = vand.u32 2147483647, %v329
        %v3236 = vand.u32 %v3235, 8388607
        %v3237 = vor.u32 %v3236, 8388608
        %v3238 = vsub.s32 0, %v3237
        %v3239 = vadd.s32 %v3234, 1
        %vm3240 = vcmp.gt.s32.totalorder %v3239, 0
        %v3241 = vsel %vm3240, %v3239, 0
        %v3242 = vshrl.u32 %v3241, 5
        %v3243 = vand.u32 %v3241, 31
        %v3244 = vsub.s32 32, %v3243
        %v3245 = vshrl.u32 683565275, %v3244
        %v3246 = vshll.u32 683565275, %v3243
        %v3247 = vshrl.u32 2475754826, %v3244
        %v3248 = vor.u32 %v3246, %v3247
        %v3249 = vshll.u32 2475754826, %v3243
        %v3250 = vshrl.u32 2131351028, %v3244
        %v3251 = vor.u32 %v3249, %v3250
        %v3252 = vshll.u32 2131351028, %v3243
        %v3253 = vshrl.u32 2102212464, %v3244
        %v3254 = vor.u32 %v3252, %v3253
        %v3255 = vshll.u32 2102212464, %v3243
        %v3256 = vshrl.u32 920167782, %v3244
        %v3257 = vor.u32 %v3255, %v3256
        %v3258 = vshll.u32 920167782, %v3243
        %v3259 = vshrl.u32 1326507024, %v3244
        %v3260 = vor.u32 %v3258, %v3259
        %vm3261 = vcmp.lt.s32.totalorder %v3242, 1
        %vm3262 = vcmp.lt.s32.totalorder %v3242, 2
        %vm3263 = vcmp.lt.s32.totalorder %v3242, 3
        %vm3264 = vcmp.lt.s32.totalorder %v3242, 4
        %v3265 = vsel %vm3261, %v3245, %v3248
        %v3266 = vsel %vm3264, %v3254, 2102212464
        %v3267 = vsel %vm3263, %v3251, %v3266
        %v3268 = vsel %vm3262, %v3265, %v3267
        %v3269 = vsel %vm3261, %v3248, %v3251
        %v3270 = vsel %vm3264, %v3257, 920167782
        %v3271 = vsel %vm3263, %v3254, %v3270
        %v3272 = vsel %vm3262, %v3269, %v3271
        %v3273 = vsel %vm3261, %v3251, %v3254
        %v3274 = vsel %vm3264, %v3260, 1326507024
        %v3275 = vsel %vm3263, %v3257, %v3274
        %v3276 = vsel %vm3262, %v3273, %v3275
        %v3277 = vshll.u32 %v3237, 8
        %v3278 = vmul.u32.u64.compose %v3277, %v3276
        %v3279 = vextract.low.u32 %v3278
        %v3280 = vextract.high.u32 %v3278
        %v3281 = vmul.u32.u64.compose %v3277, %v3272
        %v3282 = vextract.low.u32 %v3281
        %v3283 = vextract.high.u32 %v3281
        %v3284 = vmul.u32 %v3277, %v3268
        %v3285 = vadd.s32 %v3280, %v3282
        %vm3286 = vc.u32 %v3280, %v3282
        %v3287 = vadd.s32 %v3283, 1
        %v3288 = vsel %vm3286, %v3287, %v3283
        %v3289 = vadd.s32 %v3284, %v3288
        %v3290 = vadd.s32 %v3289, 536870912
        %v3291 = vshrl.u32 %v3290, 30
        %v3292 = vshll.u32 %v3291, 30
        %v3293 = vsub.s32 %v3289, %v3292
        %vm3294 = vcmp.lt.s32.totalorder %v3293, 0
        %v3295 = vsub.s32 0, %v3293
        %v3296 = vsel %vm3294, %v3295, %v3293
        %v3297 = vclz %v3296
        %v3298 = vsub.s32 %v3297, 2
        %vm3299 = vcmp.gt.s32.totalorder 0, %v3298
        %v3300 = vsel %vm3299, 0, %v3298
        %v3301 = vsub.s32 32, %v3300
        %v3302 = vshll.u32 %v3293, %v3300
        %v3303 = vshrl.u32 %v3285, %v3301
        %v3304 = vor.u32 %v3302, %v3303
        %v3305 = vsub.s32 4294967266, %v3300
        %v3306 = vadd.s32 %v3305, 127
        %v3307 = vshll.u32 %v3306, 23
        %v3308 = vor.u32 4788187, %v3307
        %v3309 = vand.u32 2147483647, %v3308
        %v3311 = vcvt.s32.f32 %v3304
        %v3312 = vmul.f32 %v3311, %v3309
        %v3313 = vxor.u32 %v3312, 2147483648
        %v3314 = vsel %vm3231, %v3313, %v3312
        %v3315 = vsub.s32 4, %v3291
        %v3316 = vsel %vm3231, %v3315, %v3291
        %v3317 = vsel %vm3230, %v329, %v3314
        %v3318 = vsel %vm3230, 0, %v3316
        %v3319 = vcosq.f32.pop %v3317
        %v3320 = vsinq.f32.pop %v3317
        %vm3321 = vweird.f32 %v329
        %v3322 = vadd.s32 %v3318, 3
        %v3323 = vand.u32 %v3322, 3
        %vm3324 = vcmp.lt.s32.totalorder %v3323, 2
        %vm3325 = vcmp.eq.s32.totalorder %v3323, 0
        %v3326 = vxor.u32 %v3320, 2147483648
        %v3327 = vsel %vm3325, %v3319, %v3326
        %vm3328 = vcmp.eq.s32.totalorder %v3323, 2
        %v3329 = vxor.u32 %v3319, 2147483648
        %v3330 = vsel %vm3328, %v3329, %v3320
        %v3331 = vsel %vm3324, %v3327, %v3330
        %v3332 = vsel %vm3321, nan, %v3331
        %v3333 = vand.u32 2147483647, %v330
        %vm3334 = vcmp.le.f32.partialorder %v3333, 0.7853982
        %vm3335 = vcmp.lt.s32.totalorder %v330, 0
        %v3336 = vand.u32 %v330, 2139095040
        %v3337 = vshrl.u32 %v3336, 23
        %v3338 = vsub.s32 %v3337, 127
        %v3339 = vand.u32 2147483647, %v330
        %v3340 = vand.u32 %v3339, 8388607
        %v3341 = vor.u32 %v3340, 8388608
        %v3342 = vsub.s32 0, %v3341
        %v3343 = vadd.s32 %v3338, 1
        %vm3344 = vcmp.gt.s32.totalorder %v3343, 0
        %v3345 = vsel %vm3344, %v3343, 0
        %v3346 = vshrl.u32 %v3345, 5
        %v3347 = vand.u32 %v3345, 31
        %v3348 = vsub.s32 32, %v3347
        %v3349 = vshrl.u32 683565275, %v3348
        %v3350 = vshll.u32 683565275, %v3347
        %v3351 = vshrl.u32 2475754826, %v3348
        %v3352 = vor.u32 %v3350, %v3351
        %v3353 = vshll.u32 2475754826, %v3347
        %v3354 = vshrl.u32 2131351028, %v3348
        %v3355 = vor.u32 %v3353, %v3354
        %v3356 = vshll.u32 2131351028, %v3347
        %v3357 = vshrl.u32 2102212464, %v3348
        %v3358 = vor.u32 %v3356, %v3357
        %v3359 = vshll.u32 2102212464, %v3347
        %v3360 = vshrl.u32 920167782, %v3348
        %v3361 = vor.u32 %v3359, %v3360
        %v3362 = vshll.u32 920167782, %v3347
        %v3363 = vshrl.u32 1326507024, %v3348
        %v3364 = vor.u32 %v3362, %v3363
        %vm3365 = vcmp.lt.s32.totalorder %v3346, 1
        %vm3366 = vcmp.lt.s32.totalorder %v3346, 2
        %vm3367 = vcmp.lt.s32.totalorder %v3346, 3
        %vm3368 = vcmp.lt.s32.totalorder %v3346, 4
        %v3369 = vsel %vm3365, %v3349, %v3352
        %v3370 = vsel %vm3368, %v3358, 2102212464
        %v3371 = vsel %vm3367, %v3355, %v3370
        %v3372 = vsel %vm3366, %v3369, %v3371
        %v3373 = vsel %vm3365, %v3352, %v3355
        %v3374 = vsel %vm3368, %v3361, 920167782
        %v3375 = vsel %vm3367, %v3358, %v3374
        %v3376 = vsel %vm3366, %v3373, %v3375
        %v3377 = vsel %vm3365, %v3355, %v3358
        %v3378 = vsel %vm3368, %v3364, 1326507024
        %v3379 = vsel %vm3367, %v3361, %v3378
        %v3380 = vsel %vm3366, %v3377, %v3379
        %v3381 = vshll.u32 %v3341, 8
        %v3382 = vmul.u32.u64.compose %v3381, %v3380
        %v3383 = vextract.low.u32 %v3382
        %v3384 = vextract.high.u32 %v3382
        %v3385 = vmul.u32.u64.compose %v3381, %v3376
        %v3386 = vextract.low.u32 %v3385
        %v3387 = vextract.high.u32 %v3385
        %v3388 = vmul.u32 %v3381, %v3372
        %v3389 = vadd.s32 %v3384, %v3386
        %vm3390 = vc.u32 %v3384, %v3386
        %v3391 = vadd.s32 %v3387, 1
        %v3392 = vsel %vm3390, %v3391, %v3387
        %v3393 = vadd.s32 %v3388, %v3392
        %v3394 = vadd.s32 %v3393, 536870912
        %v3395 = vshrl.u32 %v3394, 30
        %v3396 = vshll.u32 %v3395, 30
        %v3397 = vsub.s32 %v3393, %v3396
        %vm3398 = vcmp.lt.s32.totalorder %v3397, 0
        %v3399 = vsub.s32 0, %v3397
        %v3400 = vsel %vm3398, %v3399, %v3397
        %v3401 = vclz %v3400
        %v3402 = vsub.s32 %v3401, 2
        %vm3403 = vcmp.gt.s32.totalorder 0, %v3402
        %v3404 = vsel %vm3403, 0, %v3402
        %v3405 = vsub.s32 32, %v3404
        %v3406 = vshll.u32 %v3397, %v3404
        %v3407 = vshrl.u32 %v3389, %v3405
        %v3408 = vor.u32 %v3406, %v3407
        %v3409 = vsub.s32 4294967266, %v3404
        %v3410 = vadd.s32 %v3409, 127
        %v3411 = vshll.u32 %v3410, 23
        %v3412 = vor.u32 4788187, %v3411
        %v3413 = vand.u32 2147483647, %v3412
        %v3415 = vcvt.s32.f32 %v3408
        %v3416 = vmul.f32 %v3415, %v3413
        %v3417 = vxor.u32 %v3416, 2147483648
        %v3418 = vsel %vm3335, %v3417, %v3416
        %v3419 = vsub.s32 4, %v3395
        %v3420 = vsel %vm3335, %v3419, %v3395
        %v3421 = vsel %vm3334, %v330, %v3418
        %v3422 = vsel %vm3334, 0, %v3420
        %v3423 = vcosq.f32.pop %v3421
        %v3424 = vsinq.f32.pop %v3421
        %vm3425 = vweird.f32 %v330
        %v3426 = vadd.s32 %v3422, 3
        %v3427 = vand.u32 %v3426, 3
        %vm3428 = vcmp.lt.s32.totalorder %v3427, 2
        %vm3429 = vcmp.eq.s32.totalorder %v3427, 0
        %v3430 = vxor.u32 %v3424, 2147483648
        %v3431 = vsel %vm3429, %v3423, %v3430
        %vm3432 = vcmp.eq.s32.totalorder %v3427, 2
        %v3433 = vxor.u32 %v3423, 2147483648
        %v3434 = vsel %vm3432, %v3433, %v3424
        %v3435 = vsel %vm3428, %v3431, %v3434
        %v3436 = vsel %vm3425, nan, %v3435
        %v3437 = vand.u32 2147483647, %v331
        %vm3438 = vcmp.le.f32.partialorder %v3437, 0.7853982
        %vm3439 = vcmp.lt.s32.totalorder %v331, 0
        %v3440 = vand.u32 %v331, 2139095040
        %v3441 = vshrl.u32 %v3440, 23
        %v3442 = vsub.s32 %v3441, 127
        %v3443 = vand.u32 2147483647, %v331
        %v3444 = vand.u32 %v3443, 8388607
        %v3445 = vor.u32 %v3444, 8388608
        %v3446 = vsub.s32 0, %v3445
        %v3447 = vadd.s32 %v3442, 1
        %vm3448 = vcmp.gt.s32.totalorder %v3447, 0
        %v3449 = vsel %vm3448, %v3447, 0
        %v3450 = vshrl.u32 %v3449, 5
        %v3451 = vand.u32 %v3449, 31
        %v3452 = vsub.s32 32, %v3451
        %v3453 = vshrl.u32 683565275, %v3452
        %v3454 = vshll.u32 683565275, %v3451
        %v3455 = vshrl.u32 2475754826, %v3452
        %v3456 = vor.u32 %v3454, %v3455
        %v3457 = vshll.u32 2475754826, %v3451
        %v3458 = vshrl.u32 2131351028, %v3452
        %v3459 = vor.u32 %v3457, %v3458
        %v3460 = vshll.u32 2131351028, %v3451
        %v3461 = vshrl.u32 2102212464, %v3452
        %v3462 = vor.u32 %v3460, %v3461
        %v3463 = vshll.u32 2102212464, %v3451
        %v3464 = vshrl.u32 920167782, %v3452
        %v3465 = vor.u32 %v3463, %v3464
        %v3466 = vshll.u32 920167782, %v3451
        %v3467 = vshrl.u32 1326507024, %v3452
        %v3468 = vor.u32 %v3466, %v3467
        %vm3469 = vcmp.lt.s32.totalorder %v3450, 1
        %vm3470 = vcmp.lt.s32.totalorder %v3450, 2
        %vm3471 = vcmp.lt.s32.totalorder %v3450, 3
        %vm3472 = vcmp.lt.s32.totalorder %v3450, 4
        %v3473 = vsel %vm3469, %v3453, %v3456
        %v3474 = vsel %vm3472, %v3462, 2102212464
        %v3475 = vsel %vm3471, %v3459, %v3474
        %v3476 = vsel %vm3470, %v3473, %v3475
        %v3477 = vsel %vm3469, %v3456, %v3459
        %v3478 = vsel %vm3472, %v3465, 920167782
        %v3479 = vsel %vm3471, %v3462, %v3478
        %v3480 = vsel %vm3470, %v3477, %v3479
        %v3481 = vsel %vm3469, %v3459, %v3462
        %v3482 = vsel %vm3472, %v3468, 1326507024
        %v3483 = vsel %vm3471, %v3465, %v3482
        %v3484 = vsel %vm3470, %v3481, %v3483
        %v3485 = vshll.u32 %v3445, 8
        %v3486 = vmul.u32.u64.compose %v3485, %v3484
        %v3487 = vextract.low.u32 %v3486
        %v3488 = vextract.high.u32 %v3486
        %v3489 = vmul.u32.u64.compose %v3485, %v3480
        %v3490 = vextract.low.u32 %v3489
        %v3491 = vextract.high.u32 %v3489
        %v3492 = vmul.u32 %v3485, %v3476
        %v3493 = vadd.s32 %v3488, %v3490
        %vm3494 = vc.u32 %v3488, %v3490
        %v3495 = vadd.s32 %v3491, 1
        %v3496 = vsel %vm3494, %v3495, %v3491
        %v3497 = vadd.s32 %v3492, %v3496
        %v3498 = vadd.s32 %v3497, 536870912
        %v3499 = vshrl.u32 %v3498, 30
        %v3500 = vshll.u32 %v3499, 30
        %v3501 = vsub.s32 %v3497, %v3500
        %vm3502 = vcmp.lt.s32.totalorder %v3501, 0
        %v3503 = vsub.s32 0, %v3501
        %v3504 = vsel %vm3502, %v3503, %v3501
        %v3505 = vclz %v3504
        %v3506 = vsub.s32 %v3505, 2
        %vm3507 = vcmp.gt.s32.totalorder 0, %v3506
        %v3508 = vsel %vm3507, 0, %v3506
        %v3509 = vsub.s32 32, %v3508
        %v3510 = vshll.u32 %v3501, %v3508
        %v3511 = vshrl.u32 %v3493, %v3509
        %v3512 = vor.u32 %v3510, %v3511
        %v3513 = vsub.s32 4294967266, %v3508
        %v3514 = vadd.s32 %v3513, 127
        %v3515 = vshll.u32 %v3514, 23
        %v3516 = vor.u32 4788187, %v3515
        %v3517 = vand.u32 2147483647, %v3516
        %v3519 = vcvt.s32.f32 %v3512
        %v3520 = vmul.f32 %v3519, %v3517
        %v3521 = vxor.u32 %v3520, 2147483648
        %v3522 = vsel %vm3439, %v3521, %v3520
        %v3523 = vsub.s32 4, %v3499
        %v3524 = vsel %vm3439, %v3523, %v3499
        %v3525 = vsel %vm3438, %v331, %v3522
        %v3526 = vsel %vm3438, 0, %v3524
        %v3527 = vcosq.f32.pop %v3525
        %v3528 = vsinq.f32.pop %v3525
        %vm3529 = vweird.f32 %v331
        %v3530 = vadd.s32 %v3526, 3
        %v3531 = vand.u32 %v3530, 3
        %vm3532 = vcmp.lt.s32.totalorder %v3531, 2
        %vm3533 = vcmp.eq.s32.totalorder %v3531, 0
        %v3534 = vxor.u32 %v3528, 2147483648
        %v3535 = vsel %vm3533, %v3527, %v3534
        %vm3536 = vcmp.eq.s32.totalorder %v3531, 2
        %v3537 = vxor.u32 %v3527, 2147483648
        %v3538 = vsel %vm3536, %v3537, %v3528
        %v3539 = vsel %vm3532, %v3535, %v3538
        %v3540 = vsel %vm3529, nan, %v3539
        %v3541 = vand.u32 2147483647, %v332
        %vm3542 = vcmp.le.f32.partialorder %v3541, 0.7853982
        %vm3543 = vcmp.lt.s32.totalorder %v332, 0
        %v3544 = vand.u32 %v332, 2139095040
        %v3545 = vshrl.u32 %v3544, 23
        %v3546 = vsub.s32 %v3545, 127
        %v3547 = vand.u32 2147483647, %v332
        %v3548 = vand.u32 %v3547, 8388607
        %v3549 = vor.u32 %v3548, 8388608
        %v3550 = vsub.s32 0, %v3549
        %v3551 = vadd.s32 %v3546, 1
        %vm3552 = vcmp.gt.s32.totalorder %v3551, 0
        %v3553 = vsel %vm3552, %v3551, 0
        %v3554 = vshrl.u32 %v3553, 5
        %v3555 = vand.u32 %v3553, 31
        %v3556 = vsub.s32 32, %v3555
        %v3557 = vshrl.u32 683565275, %v3556
        %v3558 = vshll.u32 683565275, %v3555
        %v3559 = vshrl.u32 2475754826, %v3556
        %v3560 = vor.u32 %v3558, %v3559
        %v3561 = vshll.u32 2475754826, %v3555
        %v3562 = vshrl.u32 2131351028, %v3556
        %v3563 = vor.u32 %v3561, %v3562
        %v3564 = vshll.u32 2131351028, %v3555
        %v3565 = vshrl.u32 2102212464, %v3556
        %v3566 = vor.u32 %v3564, %v3565
        %v3567 = vshll.u32 2102212464, %v3555
        %v3568 = vshrl.u32 920167782, %v3556
        %v3569 = vor.u32 %v3567, %v3568
        %v3570 = vshll.u32 920167782, %v3555
        %v3571 = vshrl.u32 1326507024, %v3556
        %v3572 = vor.u32 %v3570, %v3571
        %vm3573 = vcmp.lt.s32.totalorder %v3554, 1
        %vm3574 = vcmp.lt.s32.totalorder %v3554, 2
        %vm3575 = vcmp.lt.s32.totalorder %v3554, 3
        %vm3576 = vcmp.lt.s32.totalorder %v3554, 4
        %v3577 = vsel %vm3573, %v3557, %v3560
        %v3578 = vsel %vm3576, %v3566, 2102212464
        %v3579 = vsel %vm3575, %v3563, %v3578
        %v3580 = vsel %vm3574, %v3577, %v3579
        %v3581 = vsel %vm3573, %v3560, %v3563
        %v3582 = vsel %vm3576, %v3569, 920167782
        %v3583 = vsel %vm3575, %v3566, %v3582
        %v3584 = vsel %vm3574, %v3581, %v3583
        %v3585 = vsel %vm3573, %v3563, %v3566
        %v3586 = vsel %vm3576, %v3572, 1326507024
        %v3587 = vsel %vm3575, %v3569, %v3586
        %v3588 = vsel %vm3574, %v3585, %v3587
        %v3589 = vshll.u32 %v3549, 8
        %v3590 = vmul.u32.u64.compose %v3589, %v3588
        %v3591 = vextract.low.u32 %v3590
        %v3592 = vextract.high.u32 %v3590
        %v3593 = vmul.u32.u64.compose %v3589, %v3584
        %v3594 = vextract.low.u32 %v3593
        %v3595 = vextract.high.u32 %v3593
        %v3596 = vmul.u32 %v3589, %v3580
        %v3597 = vadd.s32 %v3592, %v3594
        %vm3598 = vc.u32 %v3592, %v3594
        %v3599 = vadd.s32 %v3595, 1
        %v3600 = vsel %vm3598, %v3599, %v3595
        %v3601 = vadd.s32 %v3596, %v3600
        %v3602 = vadd.s32 %v3601, 536870912
        %v3603 = vshrl.u32 %v3602, 30
        %v3604 = vshll.u32 %v3603, 30
        %v3605 = vsub.s32 %v3601, %v3604
        %vm3606 = vcmp.lt.s32.totalorder %v3605, 0
        %v3607 = vsub.s32 0, %v3605
        %v3608 = vsel %vm3606, %v3607, %v3605
        %v3609 = vclz %v3608
        %v3610 = vsub.s32 %v3609, 2
        %vm3611 = vcmp.gt.s32.totalorder 0, %v3610
        %v3612 = vsel %vm3611, 0, %v3610
        %v3613 = vsub.s32 32, %v3612
        %v3614 = vshll.u32 %v3605, %v3612
        %v3615 = vshrl.u32 %v3597, %v3613
        %v3616 = vor.u32 %v3614, %v3615
        %v3617 = vsub.s32 4294967266, %v3612
        %v3618 = vadd.s32 %v3617, 127
        %v3619 = vshll.u32 %v3618, 23
        %v3620 = vor.u32 4788187, %v3619
        %v3621 = vand.u32 2147483647, %v3620
        %v3623 = vcvt.s32.f32 %v3616
        %v3624 = vmul.f32 %v3623, %v3621
        %v3625 = vxor.u32 %v3624, 2147483648
        %v3626 = vsel %vm3543, %v3625, %v3624
        %v3627 = vsub.s32 4, %v3603
        %v3628 = vsel %vm3543, %v3627, %v3603
        %v3629 = vsel %vm3542, %v332, %v3626
        %v3630 = vsel %vm3542, 0, %v3628
        %v3631 = vcosq.f32.pop %v3629
        %v3632 = vsinq.f32.pop %v3629
        %vm3633 = vweird.f32 %v332
        %v3634 = vadd.s32 %v3630, 3
        %v3635 = vand.u32 %v3634, 3
        %vm3636 = vcmp.lt.s32.totalorder %v3635, 2
        %vm3637 = vcmp.eq.s32.totalorder %v3635, 0
        %v3638 = vxor.u32 %v3632, 2147483648
        %v3639 = vsel %vm3637, %v3631, %v3638
        %vm3640 = vcmp.eq.s32.totalorder %v3635, 2
        %v3641 = vxor.u32 %v3631, 2147483648
        %v3642 = vsel %vm3640, %v3641, %v3632
        %v3643 = vsel %vm3636, %v3639, %v3642
        %v3644 = vsel %vm3633, nan, %v3643
        %v3645 = vld [vmem:[%s178] sm:$0xff]
        %v3646 = vld [vmem:[%s178 + $0x8] sm:$0xff]
        %v3647 = vld [vmem:[%s178 + $0x10] sm:$0xff]
        %v3648 = vld [vmem:[%s178 + $0x18] sm:$0xff]
        %v3649 = vld [vmem:[%s178 + $0x20] sm:$0xff]
        %v3650 = vld [vmem:[%s178 + $0x28] sm:$0xff]
        %v3651 = vld [vmem:[%s178 + $0x30] sm:$0xff]
        %v3652 = vld [vmem:[%s178 + $0x38] sm:$0xff]
        %v3653 = vld [vmem:[%s178 + $0x40] sm:$0xff]
        %v3654 = vld [vmem:[%s178 + $0x48] sm:$0xff]
        %v3655 = vld [vmem:[%s178 + $0x50] sm:$0xff]
        %v3656 = vld [vmem:[%s178 + $0x58] sm:$0xff]
        %v3657 = vld [vmem:[%s178 + $0x60] sm:$0xff]
        %v3658 = vld [vmem:[%s178 + $0x68] sm:$0xff]
        %v3659 = vld [vmem:[%s178 + $0x70] sm:$0xff]
        %v3660 = vld [vmem:[%s178 + $0x78] sm:$0xff]
        %v3661 = vld [vmem:[%s178 + $0x80] sm:$0xff]
        %v3662 = vld [vmem:[%s178 + $0x88] sm:$0xff]
        %v3663 = vld [vmem:[%s178 + $0x90] sm:$0xff]
        %v3664 = vld [vmem:[%s178 + $0x98] sm:$0xff]
        %v3665 = vld [vmem:[%s178 + $0xa0] sm:$0xff]
        %v3666 = vld [vmem:[%s178 + $0xa8] sm:$0xff]
        %v3667 = vld [vmem:[%s178 + $0xb0] sm:$0xff]
        %v3668 = vld [vmem:[%s178 + $0xb8] sm:$0xff]
        %v3669 = vld [vmem:[%s178 + $0xc0] sm:$0xff]
        %v3670 = vld [vmem:[%s178 + $0xc8] sm:$0xff]
        %v3671 = vld [vmem:[%s178 + $0xd0] sm:$0xff]
        %v3672 = vld [vmem:[%s178 + $0xd8] sm:$0xff]
        %v3673 = vld [vmem:[%s178 + $0xe0] sm:$0xff]
        %v3674 = vld [vmem:[%s178 + $0xe8] sm:$0xff]
        %v3675 = vld [vmem:[%s178 + $0xf0] sm:$0xff]
        %v3676 = vld [vmem:[%s178 + $0xf8] sm:$0xff]
        %v3677 = vld [vmem:[%s178 + $0x100] sm:$0xff]
        %v3678 = vld [vmem:[%s178 + $0x108] sm:$0xff]
        %v3679 = vld [vmem:[%s178 + $0x110] sm:$0xff]
        %v3680 = vld [vmem:[%s178 + $0x118] sm:$0xff]
        %v3681 = vld [vmem:[%s178 + $0x120] sm:$0xff]
        %v3682 = vld [vmem:[%s178 + $0x128] sm:$0xff]
        %v3683 = vld [vmem:[%s178 + $0x130] sm:$0xff]
        %v3684 = vld [vmem:[%s178 + $0x138] sm:$0xff]
        %v3685 = vld [vmem:[%s178 + $0x140] sm:$0xff]
        %v3686 = vld [vmem:[%s178 + $0x148] sm:$0xff]
        %v3687 = vld [vmem:[%s178 + $0x150] sm:$0xff]
        %v3688 = vld [vmem:[%s178 + $0x158] sm:$0xff]
        %v3689 = vld [vmem:[%s178 + $0x160] sm:$0xff]
        %v3690 = vld [vmem:[%s178 + $0x168] sm:$0xff]
        %v3691 = vld [vmem:[%s178 + $0x170] sm:$0xff]
        %v3692 = vld [vmem:[%s178 + $0x178] sm:$0xff]
        %v3693 = vld [vmem:[%s178 + $0x180] sm:$0xff]
        %v3694 = vld [vmem:[%s178 + $0x188] sm:$0xff]
        %v3695 = vld [vmem:[%s178 + $0x190] sm:$0xff]
        %v3696 = vld [vmem:[%s178 + $0x198] sm:$0xff]
        %v3697 = vld [vmem:[%s178 + $0x1a0] sm:$0xff]
        %v3698 = vld [vmem:[%s178 + $0x1a8] sm:$0xff]
        %v3699 = vld [vmem:[%s178 + $0x1b0] sm:$0xff]
        %v3700 = vld [vmem:[%s178 + $0x1b8] sm:$0xff]
        %v3701 = vld [vmem:[%s178 + $0x1c0] sm:$0xff]
        %v3702 = vld [vmem:[%s178 + $0x1c8] sm:$0xff]
        %v3703 = vld [vmem:[%s178 + $0x1d0] sm:$0xff]
        %v3704 = vld [vmem:[%s178 + $0x1d8] sm:$0xff]
        %v3705 = vld [vmem:[%s178 + $0x1e0] sm:$0xff]
        %v3706 = vld [vmem:[%s178 + $0x1e8] sm:$0xff]
        %v3707 = vld [vmem:[%s178 + $0x1f0] sm:$0xff]
        %v3708 = vld [vmem:[%s178 + $0x1f8] sm:$0xff]
        %v3709 = vlaneseq
        %v3710 = vand.u32 %v3709, 127
        %v3711 = vadd.s32 %v3710, 128
        %v3712 = vadd.s32 %v3710, 256
        %v3713 = vadd.s32 %v3710, 384
        %3714 = vrot.lane.b32.xlu0 %v3645, 1
        %v3715 = vpop.permute.xlu0 %3714
        %3716 = vrot.lane.b32.xlu0 %v3649, 1
        %v3717 = vpop.permute.xlu0 %3716
        %3718 = vrot.lane.b32.xlu0 %v3653, 1
        %v3719 = vpop.permute.xlu0 %3718
        %3720 = vrot.lane.b32.xlu0 %v3657, 1
        %v3721 = vpop.permute.xlu0 %3720
        %3722 = vrot.lane.b32.xlu0 %v3661, 1
        %v3723 = vpop.permute.xlu0 %3722
        %3724 = vrot.lane.b32.xlu0 %v3665, 1
        %v3725 = vpop.permute.xlu0 %3724
        %3726 = vrot.lane.b32.xlu0 %v3669, 1
        %v3727 = vpop.permute.xlu0 %3726
        %3728 = vrot.lane.b32.xlu0 %v3673, 1
        %v3729 = vpop.permute.xlu0 %3728
        %3730 = vrot.lane.b32.xlu0 %v3677, 1
        %v3731 = vpop.permute.xlu0 %3730
        %3732 = vrot.lane.b32.xlu0 %v3681, 1
        %v3733 = vpop.permute.xlu0 %3732
        %3734 = vrot.lane.b32.xlu0 %v3685, 1
        %v3735 = vpop.permute.xlu0 %3734
        %3736 = vrot.lane.b32.xlu0 %v3689, 1
        %v3737 = vpop.permute.xlu0 %3736
        %3738 = vrot.lane.b32.xlu0 %v3693, 1
        %v3739 = vpop.permute.xlu0 %3738
        %3740 = vrot.lane.b32.xlu0 %v3697, 1
        %v3741 = vpop.permute.xlu0 %3740
        %3742 = vrot.lane.b32.xlu0 %v3701, 1
        %v3743 = vpop.permute.xlu0 %3742
        %3744 = vrot.lane.b32.xlu0 %v3705, 1
        %v3745 = vpop.permute.xlu0 %3744
        %3746 = vrot.lane.b32.xlu0 %v3646, 1
        %v3747 = vpop.permute.xlu0 %3746
        %3748 = vrot.lane.b32.xlu0 %v3650, 1
        %v3749 = vpop.permute.xlu0 %3748
        %3750 = vrot.lane.b32.xlu0 %v3654, 1
        %v3751 = vpop.permute.xlu0 %3750
        %3752 = vrot.lane.b32.xlu0 %v3658, 1
        %v3753 = vpop.permute.xlu0 %3752
        %3754 = vrot.lane.b32.xlu0 %v3662, 1
        %v3755 = vpop.permute.xlu0 %3754
        %3756 = vrot.lane.b32.xlu0 %v3666, 1
        %v3757 = vpop.permute.xlu0 %3756
        %3758 = vrot.lane.b32.xlu0 %v3670, 1
        %v3759 = vpop.permute.xlu0 %3758
        %3760 = vrot.lane.b32.xlu0 %v3674, 1
        %v3761 = vpop.permute.xlu0 %3760
        %3762 = vrot.lane.b32.xlu0 %v3678, 1
        %v3763 = vpop.permute.xlu0 %3762
        %3764 = vrot.lane.b32.xlu0 %v3682, 1
        %v3765 = vpop.permute.xlu0 %3764
        %3766 = vrot.lane.b32.xlu0 %v3686, 1
        %v3767 = vpop.permute.xlu0 %3766
        %3768 = vrot.lane.b32.xlu0 %v3690, 1
        %v3769 = vpop.permute.xlu0 %3768
        %3770 = vrot.lane.b32.xlu0 %v3694, 1
        %v3771 = vpop.permute.xlu0 %3770
        %3772 = vrot.lane.b32.xlu0 %v3698, 1
        %v3773 = vpop.permute.xlu0 %3772
        %3774 = vrot.lane.b32.xlu0 %v3702, 1
        %v3775 = vpop.permute.xlu0 %3774
        %3776 = vrot.lane.b32.xlu0 %v3706, 1
        %v3777 = vpop.permute.xlu0 %3776
        %3778 = vrot.lane.b32.xlu0 %v3647, 1
        %v3779 = vpop.permute.xlu0 %3778
        %3780 = vrot.lane.b32.xlu0 %v3651, 1
        %v3781 = vpop.permute.xlu0 %3780
        %3782 = vrot.lane.b32.xlu0 %v3655, 1
        %v3783 = vpop.permute.xlu0 %3782
        %3784 = vrot.lane.b32.xlu0 %v3659, 1
        %v3785 = vpop.permute.xlu0 %3784
        %3786 = vrot.lane.b32.xlu0 %v3663, 1
        %v3787 = vpop.permute.xlu0 %3786
        %3788 = vrot.lane.b32.xlu0 %v3667, 1
        %v3789 = vpop.permute.xlu0 %3788
        %3790 = vrot.lane.b32.xlu0 %v3671, 1
        %v3791 = vpop.permute.xlu0 %3790
        %3792 = vrot.lane.b32.xlu0 %v3675, 1
        %v3793 = vpop.permute.xlu0 %3792
        %3794 = vrot.lane.b32.xlu0 %v3679, 1
        %v3795 = vpop.permute.xlu0 %3794
        %3796 = vrot.lane.b32.xlu0 %v3683, 1
        %v3797 = vpop.permute.xlu0 %3796
        %3798 = vrot.lane.b32.xlu0 %v3687, 1
        %v3799 = vpop.permute.xlu0 %3798
        %3800 = vrot.lane.b32.xlu0 %v3691, 1
        %v3801 = vpop.permute.xlu0 %3800
        %3802 = vrot.lane.b32.xlu0 %v3695, 1
        %v3803 = vpop.permute.xlu0 %3802
        %3804 = vrot.lane.b32.xlu0 %v3699, 1
        %v3805 = vpop.permute.xlu0 %3804
        %3806 = vrot.lane.b32.xlu0 %v3703, 1
        %v3807 = vpop.permute.xlu0 %3806
        %3808 = vrot.lane.b32.xlu0 %v3707, 1
        %v3809 = vpop.permute.xlu0 %3808
        %3810 = vrot.lane.b32.xlu0 %v3648, 1
        %v3811 = vpop.permute.xlu0 %3810
        %3812 = vrot.lane.b32.xlu0 %v3652, 1
        %v3813 = vpop.permute.xlu0 %3812
        %3814 = vrot.lane.b32.xlu0 %v3656, 1
        %v3815 = vpop.permute.xlu0 %3814
        %3816 = vrot.lane.b32.xlu0 %v3660, 1
        %v3817 = vpop.permute.xlu0 %3816
        %3818 = vrot.lane.b32.xlu0 %v3664, 1
        %v3819 = vpop.permute.xlu0 %3818
        %3820 = vrot.lane.b32.xlu0 %v3668, 1
        %v3821 = vpop.permute.xlu0 %3820
        %3822 = vrot.lane.b32.xlu0 %v3672, 1
        %v3823 = vpop.permute.xlu0 %3822
        %3824 = vrot.lane.b32.xlu0 %v3676, 1
        %v3825 = vpop.permute.xlu0 %3824
        %3826 = vrot.lane.b32.xlu0 %v3680, 1
        %v3827 = vpop.permute.xlu0 %3826
        %3828 = vrot.lane.b32.xlu0 %v3684, 1
        %v3829 = vpop.permute.xlu0 %3828
        %3830 = vrot.lane.b32.xlu0 %v3688, 1
        %v3831 = vpop.permute.xlu0 %3830
        %3832 = vrot.lane.b32.xlu0 %v3692, 1
        %v3833 = vpop.permute.xlu0 %3832
        %3834 = vrot.lane.b32.xlu0 %v3696, 1
        %v3835 = vpop.permute.xlu0 %3834
        %3836 = vrot.lane.b32.xlu0 %v3700, 1
        %v3837 = vpop.permute.xlu0 %3836
        %3838 = vrot.lane.b32.xlu0 %v3704, 1
        %v3839 = vpop.permute.xlu0 %3838
        %3840 = vrot.lane.b32.xlu0 %v3708, 1
        %v3841 = vpop.permute.xlu0 %3840
        %vm3842 = vcmp.lt.s32.totalorder %v3710, 1
        %v3843 = vsel %vm3842, %v3779, %v3811
        %v3844 = vsel %vm3842, %v3781, %v3813
        %v3845 = vsel %vm3842, %v3783, %v3815
        %v3846 = vsel %vm3842, %v3785, %v3817
        %v3847 = vsel %vm3842, %v3787, %v3819
        %v3848 = vsel %vm3842, %v3789, %v3821
        %v3849 = vsel %vm3842, %v3791, %v3823
        %v3850 = vsel %vm3842, %v3793, %v3825
        %v3851 = vsel %vm3842, %v3795, %v3827
        %v3852 = vsel %vm3842, %v3797, %v3829
        %v3853 = vsel %vm3842, %v3799, %v3831
        %v3854 = vsel %vm3842, %v3801, %v3833
        %v3855 = vsel %vm3842, %v3803, %v3835
        %v3856 = vsel %vm3842, %v3805, %v3837
        %v3857 = vsel %vm3842, %v3807, %v3839
        %v3858 = vsel %vm3842, %v3809, %v3841
        %v3859 = vsel %vm3842, %v3747, %v3779
        %v3860 = vsel %vm3842, %v3749, %v3781
        %v3861 = vsel %vm3842, %v3751, %v3783
        %v3862 = vsel %vm3842, %v3753, %v3785
        %v3863 = vsel %vm3842, %v3755, %v3787
        %v3864 = vsel %vm3842, %v3757, %v3789
        %v3865 = vsel %vm3842, %v3759, %v3791
        %v3866 = vsel %vm3842, %v3761, %v3793
        %v3867 = vsel %vm3842, %v3763, %v3795
        %v3868 = vsel %vm3842, %v3765, %v3797
        %v3869 = vsel %vm3842, %v3767, %v3799
        %v3870 = vsel %vm3842, %v3769, %v3801
        %v3871 = vsel %vm3842, %v3771, %v3803
        %v3872 = vsel %vm3842, %v3773, %v3805
        %v3873 = vsel %vm3842, %v3775, %v3807
        %v3874 = vsel %vm3842, %v3777, %v3809
        %v3875 = vsel %vm3842, %v3715, %v3747
        %v3876 = vsel %vm3842, %v3717, %v3749
        %v3877 = vsel %vm3842, %v3719, %v3751
        %v3878 = vsel %vm3842, %v3721, %v3753
        %v3879 = vsel %vm3842, %v3723, %v3755
        %v3880 = vsel %vm3842, %v3725, %v3757
        %v3881 = vsel %vm3842, %v3727, %v3759
        %v3882 = vsel %vm3842, %v3729, %v3761
        %v3883 = vsel %vm3842, %v3731, %v3763
        %v3884 = vsel %vm3842, %v3733, %v3765
        %v3885 = vsel %vm3842, %v3735, %v3767
        %v3886 = vsel %vm3842, %v3737, %v3769
        %v3887 = vsel %vm3842, %v3739, %v3771
        %v3888 = vsel %vm3842, %v3741, %v3773
        %v3889 = vsel %vm3842, %v3743, %v3775
        %v3890 = vsel %vm3842, %v3745, %v3777
        %v3891 = vsel %vm3842, %v3811, %v3715
        %v3892 = vsel %vm3842, %v3813, %v3717
        %v3893 = vsel %vm3842, %v3815, %v3719
        %v3894 = vsel %vm3842, %v3817, %v3721
        %v3895 = vsel %vm3842, %v3819, %v3723
        %v3896 = vsel %vm3842, %v3821, %v3725
        %v3897 = vsel %vm3842, %v3823, %v3727
        %v3898 = vsel %vm3842, %v3825, %v3729
        %v3899 = vsel %vm3842, %v3827, %v3731
        %v3900 = vsel %vm3842, %v3829, %v3733
        %v3901 = vsel %vm3842, %v3831, %v3735
        %v3902 = vsel %vm3842, %v3833, %v3737
        %v3903 = vsel %vm3842, %v3835, %v3739
        %v3904 = vsel %vm3842, %v3837, %v3741
        %v3905 = vsel %vm3842, %v3839, %v3743
        %v3906 = vsel %vm3842, %v3841, %v3745
        %3907 = vrot.lane.b32.xlu0 %v3645, 127
        %v3908 = vpop.permute.xlu0 %3907
        %3909 = vrot.lane.b32.xlu0 %v3649, 127
        %v3910 = vpop.permute.xlu0 %3909
        %3911 = vrot.lane.b32.xlu0 %v3653, 127
        %v3912 = vpop.permute.xlu0 %3911
        %3913 = vrot.lane.b32.xlu0 %v3657, 127
        %v3914 = vpop.permute.xlu0 %3913
        %3915 = vrot.lane.b32.xlu0 %v3661, 127
        %v3916 = vpop.permute.xlu0 %3915
        %3917 = vrot.lane.b32.xlu0 %v3665, 127
        %v3918 = vpop.permute.xlu0 %3917
        %3919 = vrot.lane.b32.xlu0 %v3669, 127
        %v3920 = vpop.permute.xlu0 %3919
        %3921 = vrot.lane.b32.xlu0 %v3673, 127
        %v3922 = vpop.permute.xlu0 %3921
        %3923 = vrot.lane.b32.xlu0 %v3677, 127
        %v3924 = vpop.permute.xlu0 %3923
        %3925 = vrot.lane.b32.xlu0 %v3681, 127
        %v3926 = vpop.permute.xlu0 %3925
        %3927 = vrot.lane.b32.xlu0 %v3685, 127
        %v3928 = vpop.permute.xlu0 %3927
        %3929 = vrot.lane.b32.xlu0 %v3689, 127
        %v3930 = vpop.permute.xlu0 %3929
        %3931 = vrot.lane.b32.xlu0 %v3693, 127
        %v3932 = vpop.permute.xlu0 %3931
        %3933 = vrot.lane.b32.xlu0 %v3697, 127
        %v3934 = vpop.permute.xlu0 %3933
        %3935 = vrot.lane.b32.xlu0 %v3701, 127
        %v3936 = vpop.permute.xlu0 %3935
        %3937 = vrot.lane.b32.xlu0 %v3705, 127
        %v3938 = vpop.permute.xlu0 %3937
        %3939 = vrot.lane.b32.xlu0 %v3646, 127
        %v3940 = vpop.permute.xlu0 %3939
        %3941 = vrot.lane.b32.xlu0 %v3650, 127
        %v3942 = vpop.permute.xlu0 %3941
        %3943 = vrot.lane.b32.xlu0 %v3654, 127
        %v3944 = vpop.permute.xlu0 %3943
        %3945 = vrot.lane.b32.xlu0 %v3658, 127
        %v3946 = vpop.permute.xlu0 %3945
        %3947 = vrot.lane.b32.xlu0 %v3662, 127
        %v3948 = vpop.permute.xlu0 %3947
        %3949 = vrot.lane.b32.xlu0 %v3666, 127
        %v3950 = vpop.permute.xlu0 %3949
        %3951 = vrot.lane.b32.xlu0 %v3670, 127
        %v3952 = vpop.permute.xlu0 %3951
        %3953 = vrot.lane.b32.xlu0 %v3674, 127
        %v3954 = vpop.permute.xlu0 %3953
        %3955 = vrot.lane.b32.xlu0 %v3678, 127
        %v3956 = vpop.permute.xlu0 %3955
        %3957 = vrot.lane.b32.xlu0 %v3682, 127
        %v3958 = vpop.permute.xlu0 %3957
        %3959 = vrot.lane.b32.xlu0 %v3686, 127
        %v3960 = vpop.permute.xlu0 %3959
        %3961 = vrot.lane.b32.xlu0 %v3690, 127
        %v3962 = vpop.permute.xlu0 %3961
        %3963 = vrot.lane.b32.xlu0 %v3694, 127
        %v3964 = vpop.permute.xlu0 %3963
        %3965 = vrot.lane.b32.xlu0 %v3698, 127
        %v3966 = vpop.permute.xlu0 %3965
        %3967 = vrot.lane.b32.xlu0 %v3702, 127
        %v3968 = vpop.permute.xlu0 %3967
        %3969 = vrot.lane.b32.xlu0 %v3706, 127
        %v3970 = vpop.permute.xlu0 %3969
        %3971 = vrot.lane.b32.xlu0 %v3647, 127
        %v3972 = vpop.permute.xlu0 %3971
        %3973 = vrot.lane.b32.xlu0 %v3651, 127
        %v3974 = vpop.permute.xlu0 %3973
        %3975 = vrot.lane.b32.xlu0 %v3655, 127
        %v3976 = vpop.permute.xlu0 %3975
        %3977 = vrot.lane.b32.xlu0 %v3659, 127
        %v3978 = vpop.permute.xlu0 %3977
        %3979 = vrot.lane.b32.xlu0 %v3663, 127
        %v3980 = vpop.permute.xlu0 %3979
        %3981 = vrot.lane.b32.xlu0 %v3667, 127
        %v3982 = vpop.permute.xlu0 %3981
        %3983 = vrot.lane.b32.xlu0 %v3671, 127
        %v3984 = vpop.permute.xlu0 %3983
        %3985 = vrot.lane.b32.xlu0 %v3675, 127
        %v3986 = vpop.permute.xlu0 %3985
        %3987 = vrot.lane.b32.xlu0 %v3679, 127
        %v3988 = vpop.permute.xlu0 %3987
        %3989 = vrot.lane.b32.xlu0 %v3683, 127
        %v3990 = vpop.permute.xlu0 %3989
        %3991 = vrot.lane.b32.xlu0 %v3687, 127
        %v3992 = vpop.permute.xlu0 %3991
        %3993 = vrot.lane.b32.xlu0 %v3691, 127
        %v3994 = vpop.permute.xlu0 %3993
        %3995 = vrot.lane.b32.xlu0 %v3695, 127
        %v3996 = vpop.permute.xlu0 %3995
        %3997 = vrot.lane.b32.xlu0 %v3699, 127
        %v3998 = vpop.permute.xlu0 %3997
        %3999 = vrot.lane.b32.xlu0 %v3703, 127
        %v4000 = vpop.permute.xlu0 %3999
        %4001 = vrot.lane.b32.xlu0 %v3707, 127
        %v4002 = vpop.permute.xlu0 %4001
        %4003 = vrot.lane.b32.xlu0 %v3648, 127
        %v4004 = vpop.permute.xlu0 %4003
        %4005 = vrot.lane.b32.xlu0 %v3652, 127
        %v4006 = vpop.permute.xlu0 %4005
        %4007 = vrot.lane.b32.xlu0 %v3656, 127
        %v4008 = vpop.permute.xlu0 %4007
        %4009 = vrot.lane.b32.xlu0 %v3660, 127
        %v4010 = vpop.permute.xlu0 %4009
        %4011 = vrot.lane.b32.xlu0 %v3664, 127
        %v4012 = vpop.permute.xlu0 %4011
        %4013 = vrot.lane.b32.xlu0 %v3668, 127
        %v4014 = vpop.permute.xlu0 %4013
        %4015 = vrot.lane.b32.xlu0 %v3672, 127
        %v4016 = vpop.permute.xlu0 %4015
        %4017 = vrot.lane.b32.xlu0 %v3676, 127
        %v4018 = vpop.permute.xlu0 %4017
        %4019 = vrot.lane.b32.xlu0 %v3680, 127
        %v4020 = vpop.permute.xlu0 %4019
        %4021 = vrot.lane.b32.xlu0 %v3684, 127
        %v4022 = vpop.permute.xlu0 %4021
        %4023 = vrot.lane.b32.xlu0 %v3688, 127
        %v4024 = vpop.permute.xlu0 %4023
        %4025 = vrot.lane.b32.xlu0 %v3692, 127
        %v4026 = vpop.permute.xlu0 %4025
        %4027 = vrot.lane.b32.xlu0 %v3696, 127
        %v4028 = vpop.permute.xlu0 %4027
        %4029 = vrot.lane.b32.xlu0 %v3700, 127
        %v4030 = vpop.permute.xlu0 %4029
        %4031 = vrot.lane.b32.xlu0 %v3704, 127
        %v4032 = vpop.permute.xlu0 %4031
        %4033 = vrot.lane.b32.xlu0 %v3708, 127
        %v4034 = vpop.permute.xlu0 %4033
        %vm4035 = vcmp.lt.s32.totalorder %v3710, 127
        %v4036 = vsel %vm4035, %v3972, %v4004
        %v4037 = vsel %vm4035, %v3974, %v4006
        %v4038 = vsel %vm4035, %v3976, %v4008
        %v4039 = vsel %vm4035, %v3978, %v4010
        %v4040 = vsel %vm4035, %v3980, %v4012
        %v4041 = vsel %vm4035, %v3982, %v4014
        %v4042 = vsel %vm4035, %v3984, %v4016
        %v4043 = vsel %vm4035, %v3986, %v4018
        %v4044 = vsel %vm4035, %v3988, %v4020
        %v4045 = vsel %vm4035, %v3990, %v4022
        %v4046 = vsel %vm4035, %v3992, %v4024
        %v4047 = vsel %vm4035, %v3994, %v4026
        %v4048 = vsel %vm4035, %v3996, %v4028
        %v4049 = vsel %vm4035, %v3998, %v4030
        %v4050 = vsel %vm4035, %v4000, %v4032
        %v4051 = vsel %vm4035, %v4002, %v4034
        %v4052 = vsel %vm4035, %v3940, %v3972
        %v4053 = vsel %vm4035, %v3942, %v3974
        %v4054 = vsel %vm4035, %v3944, %v3976
        %v4055 = vsel %vm4035, %v3946, %v3978
        %v4056 = vsel %vm4035, %v3948, %v3980
        %v4057 = vsel %vm4035, %v3950, %v3982
        %v4058 = vsel %vm4035, %v3952, %v3984
        %v4059 = vsel %vm4035, %v3954, %v3986
        %v4060 = vsel %vm4035, %v3956, %v3988
        %v4061 = vsel %vm4035, %v3958, %v3990
        %v4062 = vsel %vm4035, %v3960, %v3992
        %v4063 = vsel %vm4035, %v3962, %v3994
        %v4064 = vsel %vm4035, %v3964, %v3996
        %v4065 = vsel %vm4035, %v3966, %v3998
        %v4066 = vsel %vm4035, %v3968, %v4000
        %v4067 = vsel %vm4035, %v3970, %v4002
        %v4068 = vsel %vm4035, %v3908, %v3940
        %v4069 = vsel %vm4035, %v3910, %v3942
        %v4070 = vsel %vm4035, %v3912, %v3944
        %v4071 = vsel %vm4035, %v3914, %v3946
        %v4072 = vsel %vm4035, %v3916, %v3948
        %v4073 = vsel %vm4035, %v3918, %v3950
        %v4074 = vsel %vm4035, %v3920, %v3952
        %v4075 = vsel %vm4035, %v3922, %v3954
        %v4076 = vsel %vm4035, %v3924, %v3956
        %v4077 = vsel %vm4035, %v3926, %v3958
        %v4078 = vsel %vm4035, %v3928, %v3960
        %v4079 = vsel %vm4035, %v3930, %v3962
        %v4080 = vsel %vm4035, %v3932, %v3964
        %v4081 = vsel %vm4035, %v3934, %v3966
        %v4082 = vsel %vm4035, %v3936, %v3968
        %v4083 = vsel %vm4035, %v3938, %v3970
        %v4084 = vsel %vm4035, %v4004, %v3908
        %v4085 = vsel %vm4035, %v4006, %v3910
        %v4086 = vsel %vm4035, %v4008, %v3912
        %v4087 = vsel %vm4035, %v4010, %v3914
        %v4088 = vsel %vm4035, %v4012, %v3916
        %v4089 = vsel %vm4035, %v4014, %v3918
        %v4090 = vsel %vm4035, %v4016, %v3920
        %v4091 = vsel %vm4035, %v4018, %v3922
        %v4092 = vsel %vm4035, %v4020, %v3924
        %v4093 = vsel %vm4035, %v4022, %v3926
        %v4094 = vsel %vm4035, %v4024, %v3928
        %v4095 = vsel %vm4035, %v4026, %v3930
        %v4096 = vsel %vm4035, %v4028, %v3932
        %v4097 = vsel %vm4035, %v4030, %v3934
        %v4098 = vsel %vm4035, %v4032, %v3936
        %v4099 = vsel %vm4035, %v4034, %v3938
        %4100 = vrot.lane.b32.xlu0 %v3710, 1
        %v4101 = vpop.permute.xlu0 %4100
        %4102 = vrot.lane.b32.xlu0 %v3711, 1
        %v4103 = vpop.permute.xlu0 %4102
        %4104 = vrot.lane.b32.xlu0 %v3712, 1
        %v4105 = vpop.permute.xlu0 %4104
        %4106 = vrot.lane.b32.xlu0 %v3713, 1
        %v4107 = vpop.permute.xlu0 %4106
        %v4108 = vsel %vm3842, %v4105, %v4107
        %v4109 = vsel %vm3842, %v4103, %v4105
        %v4110 = vsel %vm3842, %v4101, %v4103
        %v4111 = vsel %vm3842, %v4107, %v4101
        %v4112 = vxor.u32 %v3710, 1
        %v4113 = vxor.u32 %v3711, 1
        %v4114 = vxor.u32 %v3712, 1
        %v4115 = vxor.u32 %v3713, 1
        %vm4116 = vcmp.eq.s32.totalorder %v4111, %v4112
        %vm4117 = vcmp.eq.s32.totalorder %v4110, %v4113
        %vm4118 = vcmp.eq.s32.totalorder %v4109, %v4114
        %vm4119 = vcmp.eq.s32.totalorder %v4108, %v4115
        %v4120 = vsel %vm4116, %v3891, %v4068
        %v4121 = vsel %vm4117, %v3875, %v4052
        %v4122 = vsel %vm4118, %v3859, %v4036
        %v4123 = vsel %vm4119, %v3843, %v4084
        %v4124 = vsel %vm4116, %v3892, %v4069
        %v4125 = vsel %vm4117, %v3876, %v4053
        %v4126 = vsel %vm4118, %v3860, %v4037
        %v4127 = vsel %vm4119, %v3844, %v4085
        %v4128 = vsel %vm4116, %v3893, %v4070
        %v4129 = vsel %vm4117, %v3877, %v4054
        %v4130 = vsel %vm4118, %v3861, %v4038
        %v4131 = vsel %vm4119, %v3845, %v4086
        %v4132 = vsel %vm4116, %v3894, %v4071
        %v4133 = vsel %vm4117, %v3878, %v4055
        %v4134 = vsel %vm4118, %v3862, %v4039
        %v4135 = vsel %vm4119, %v3846, %v4087
        %v4136 = vsel %vm4116, %v3895, %v4072
        %v4137 = vsel %vm4117, %v3879, %v4056
        %v4138 = vsel %vm4118, %v3863, %v4040
        %v4139 = vsel %vm4119, %v3847, %v4088
        %v4140 = vsel %vm4116, %v3896, %v4073
        %v4141 = vsel %vm4117, %v3880, %v4057
        %v4142 = vsel %vm4118, %v3864, %v4041
        %v4143 = vsel %vm4119, %v3848, %v4089
        %v4144 = vsel %vm4116, %v3897, %v4074
        %v4145 = vsel %vm4117, %v3881, %v4058
        %v4146 = vsel %vm4118, %v3865, %v4042
        %v4147 = vsel %vm4119, %v3849, %v4090
        %v4148 = vsel %vm4116, %v3898, %v4075
        %v4149 = vsel %vm4117, %v3882, %v4059
        %v4150 = vsel %vm4118, %v3866, %v4043
        %v4151 = vsel %vm4119, %v3850, %v4091
        %v4152 = vsel %vm4116, %v3899, %v4076
        %v4153 = vsel %vm4117, %v3883, %v4060
        %v4154 = vsel %vm4118, %v3867, %v4044
        %v4155 = vsel %vm4119, %v3851, %v4092
        %v4156 = vsel %vm4116, %v3900, %v4077
        %v4157 = vsel %vm4117, %v3884, %v4061
        %v4158 = vsel %vm4118, %v3868, %v4045
        %v4159 = vsel %vm4119, %v3852, %v4093
        %v4160 = vsel %vm4116, %v3901, %v4078
        %v4161 = vsel %vm4117, %v3885, %v4062
        %v4162 = vsel %vm4118, %v3869, %v4046
        %v4163 = vsel %vm4119, %v3853, %v4094
        %v4164 = vsel %vm4116, %v3902, %v4079
        %v4165 = vsel %vm4117, %v3886, %v4063
        %v4166 = vsel %vm4118, %v3870, %v4047
        %v4167 = vsel %vm4119, %v3854, %v4095
        %v4168 = vsel %vm4116, %v3903, %v4080
        %v4169 = vsel %vm4117, %v3887, %v4064
        %v4170 = vsel %vm4118, %v3871, %v4048
        %v4171 = vsel %vm4119, %v3855, %v4096
        %v4172 = vsel %vm4116, %v3904, %v4081
        %v4173 = vsel %vm4117, %v3888, %v4065
        %v4174 = vsel %vm4118, %v3872, %v4049
        %v4175 = vsel %vm4119, %v3856, %v4097
        %v4176 = vsel %vm4116, %v3905, %v4082
        %v4177 = vsel %vm4117, %v3889, %v4066
        %v4178 = vsel %vm4118, %v3873, %v4050
        %v4179 = vsel %vm4119, %v3857, %v4098
        %v4180 = vsel %vm4116, %v3906, %v4083
        %v4181 = vsel %vm4117, %v3890, %v4067
        %v4182 = vsel %vm4118, %v3874, %v4051
        %v4183 = vsel %vm4119, %v3858, %v4099
        %v4184 = vand.u32 %v3710, 1
        %v4185 = vand.u32 %v3711, 1
        %v4186 = vand.u32 %v3712, 1
        %v4187 = vand.u32 %v3713, 1
        %vm4188 = vcmp.eq.s32.totalorder %v4184, 0
        %vm4189 = vcmp.eq.s32.totalorder %v4185, 0
        %vm4190 = vcmp.eq.s32.totalorder %v4186, 0
        %vm4191 = vcmp.eq.s32.totalorder %v4187, 0
        %v4192 = vsub.f32 0.0, %v4120
        %v4193 = vsub.f32 0.0, %v4121
        %v4194 = vsub.f32 0.0, %v4122
        %v4195 = vsub.f32 0.0, %v4123
        %v4196 = vsub.f32 0.0, %v4124
        %v4197 = vsub.f32 0.0, %v4125
        %v4198 = vsub.f32 0.0, %v4126
        %v4199 = vsub.f32 0.0, %v4127
        %v4200 = vsub.f32 0.0, %v4128
        %v4201 = vsub.f32 0.0, %v4129
        %v4202 = vsub.f32 0.0, %v4130
        %v4203 = vsub.f32 0.0, %v4131
        %v4204 = vsub.f32 0.0, %v4132
        %v4205 = vsub.f32 0.0, %v4133
        %v4206 = vsub.f32 0.0, %v4134
        %v4207 = vsub.f32 0.0, %v4135
        %v4208 = vsub.f32 0.0, %v4136
        %v4209 = vsub.f32 0.0, %v4137
        %v4210 = vsub.f32 0.0, %v4138
        %v4211 = vsub.f32 0.0, %v4139
        %v4212 = vsub.f32 0.0, %v4140
        %v4213 = vsub.f32 0.0, %v4141
        %v4214 = vsub.f32 0.0, %v4142
        %v4215 = vsub.f32 0.0, %v4143
        %v4216 = vsub.f32 0.0, %v4144
        %v4217 = vsub.f32 0.0, %v4145
        %v4218 = vsub.f32 0.0, %v4146
        %v4219 = vsub.f32 0.0, %v4147
        %v4220 = vsub.f32 0.0, %v4148
        %v4221 = vsub.f32 0.0, %v4149
        %v4222 = vsub.f32 0.0, %v4150
        %v4223 = vsub.f32 0.0, %v4151
        %v4224 = vsub.f32 0.0, %v4152
        %v4225 = vsub.f32 0.0, %v4153
        %v4226 = vsub.f32 0.0, %v4154
        %v4227 = vsub.f32 0.0, %v4155
        %v4228 = vsub.f32 0.0, %v4156
        %v4229 = vsub.f32 0.0, %v4157
        %v4230 = vsub.f32 0.0, %v4158
        %v4231 = vsub.f32 0.0, %v4159
        %v4232 = vsub.f32 0.0, %v4160
        %v4233 = vsub.f32 0.0, %v4161
        %v4234 = vsub.f32 0.0, %v4162
        %v4235 = vsub.f32 0.0, %v4163
        %v4236 = vsub.f32 0.0, %v4164
        %v4237 = vsub.f32 0.0, %v4165
        %v4238 = vsub.f32 0.0, %v4166
        %v4239 = vsub.f32 0.0, %v4167
        %v4240 = vsub.f32 0.0, %v4168
        %v4241 = vsub.f32 0.0, %v4169
        %v4242 = vsub.f32 0.0, %v4170
        %v4243 = vsub.f32 0.0, %v4171
        %v4244 = vsub.f32 0.0, %v4172
        %v4245 = vsub.f32 0.0, %v4173
        %v4246 = vsub.f32 0.0, %v4174
        %v4247 = vsub.f32 0.0, %v4175
        %v4248 = vsub.f32 0.0, %v4176
        %v4249 = vsub.f32 0.0, %v4177
        %v4250 = vsub.f32 0.0, %v4178
        %v4251 = vsub.f32 0.0, %v4179
        %v4252 = vsub.f32 0.0, %v4180
        %v4253 = vsub.f32 0.0, %v4181
        %v4254 = vsub.f32 0.0, %v4182
        %v4255 = vsub.f32 0.0, %v4183
        %v4256 = vsel %vm4188, %v4192, %v4120
        %v4257 = vsel %vm4189, %v4193, %v4121
        %v4258 = vsel %vm4190, %v4194, %v4122
        %v4259 = vsel %vm4191, %v4195, %v4123
        %v4260 = vsel %vm4188, %v4196, %v4124
        %v4261 = vsel %vm4189, %v4197, %v4125
        %v4262 = vsel %vm4190, %v4198, %v4126
        %v4263 = vsel %vm4191, %v4199, %v4127
        %v4264 = vsel %vm4188, %v4200, %v4128
        %v4265 = vsel %vm4189, %v4201, %v4129
        %v4266 = vsel %vm4190, %v4202, %v4130
        %v4267 = vsel %vm4191, %v4203, %v4131
        %v4268 = vsel %vm4188, %v4204, %v4132
        %v4269 = vsel %vm4189, %v4205, %v4133
        %v4270 = vsel %vm4190, %v4206, %v4134
        %v4271 = vsel %vm4191, %v4207, %v4135
        %v4272 = vsel %vm4188, %v4208, %v4136
        %v4273 = vsel %vm4189, %v4209, %v4137
        %v4274 = vsel %vm4190, %v4210, %v4138
        %v4275 = vsel %vm4191, %v4211, %v4139
        %v4276 = vsel %vm4188, %v4212, %v4140
        %v4277 = vsel %vm4189, %v4213, %v4141
        %v4278 = vsel %vm4190, %v4214, %v4142
        %v4279 = vsel %vm4191, %v4215, %v4143
        %v4280 = vsel %vm4188, %v4216, %v4144
        %v4281 = vsel %vm4189, %v4217, %v4145
        %v4282 = vsel %vm4190, %v4218, %v4146
        %v4283 = vsel %vm4191, %v4219, %v4147
        %v4284 = vsel %vm4188, %v4220, %v4148
        %v4285 = vsel %vm4189, %v4221, %v4149
        %v4286 = vsel %vm4190, %v4222, %v4150
        %v4287 = vsel %vm4191, %v4223, %v4151
        %v4288 = vsel %vm4188, %v4224, %v4152
        %v4289 = vsel %vm4189, %v4225, %v4153
        %v4290 = vsel %vm4190, %v4226, %v4154
        %v4291 = vsel %vm4191, %v4227, %v4155
        %v4292 = vsel %vm4188, %v4228, %v4156
        %v4293 = vsel %vm4189, %v4229, %v4157
        %v4294 = vsel %vm4190, %v4230, %v4158
        %v4295 = vsel %vm4191, %v4231, %v4159
        %v4296 = vsel %vm4188, %v4232, %v4160
        %v4297 = vsel %vm4189, %v4233, %v4161
        %v4298 = vsel %vm4190, %v4234, %v4162
        %v4299 = vsel %vm4191, %v4235, %v4163
        %v4300 = vsel %vm4188, %v4236, %v4164
        %v4301 = vsel %vm4189, %v4237, %v4165
        %v4302 = vsel %vm4190, %v4238, %v4166
        %v4303 = vsel %vm4191, %v4239, %v4167
        %v4304 = vsel %vm4188, %v4240, %v4168
        %v4305 = vsel %vm4189, %v4241, %v4169
        %v4306 = vsel %vm4190, %v4242, %v4170
        %v4307 = vsel %vm4191, %v4243, %v4171
        %v4308 = vsel %vm4188, %v4244, %v4172
        %v4309 = vsel %vm4189, %v4245, %v4173
        %v4310 = vsel %vm4190, %v4246, %v4174
        %v4311 = vsel %vm4191, %v4247, %v4175
        %v4312 = vsel %vm4188, %v4248, %v4176
        %v4313 = vsel %vm4189, %v4249, %v4177
        %v4314 = vsel %vm4190, %v4250, %v4178
        %v4315 = vsel %vm4191, %v4251, %v4179
        %v4316 = vsel %vm4188, %v4252, %v4180
        %v4317 = vsel %vm4189, %v4253, %v4181
        %v4318 = vsel %vm4190, %v4254, %v4182
        %v4319 = vsel %vm4191, %v4255, %v4183
        %v4320 = vmul.f32 %v3645, %v435
        %v4321 = vmul.f32 %v3646, %v435
        %v4322 = vmul.f32 %v3647, %v435
        %v4323 = vmul.f32 %v3648, %v435
        %v4324 = vmul.f32 %v3649, %v538
        %v4325 = vmul.f32 %v3650, %v538
        %v4326 = vmul.f32 %v3651, %v538
        %v4327 = vmul.f32 %v3652, %v538
        %v4328 = vmul.f32 %v3653, %v641
        %v4329 = vmul.f32 %v3654, %v641
        %v4330 = vmul.f32 %v3655, %v641
        %v4331 = vmul.f32 %v3656, %v641
        %v4332 = vmul.f32 %v3657, %v744
        %v4333 = vmul.f32 %v3658, %v744
        %v4334 = vmul.f32 %v3659, %v744
        %v4335 = vmul.f32 %v3660, %v744
        %v4336 = vmul.f32 %v3661, %v847
        %v4337 = vmul.f32 %v3662, %v847
        %v4338 = vmul.f32 %v3663, %v847
        %v4339 = vmul.f32 %v3664, %v847
        %v4340 = vmul.f32 %v3665, %v950
        %v4341 = vmul.f32 %v3666, %v950
        %v4342 = vmul.f32 %v3667, %v950
        %v4343 = vmul.f32 %v3668, %v950
        %v4344 = vmul.f32 %v3669, %v1053
        %v4345 = vmul.f32 %v3670, %v1053
        %v4346 = vmul.f32 %v3671, %v1053
        %v4347 = vmul.f32 %v3672, %v1053
        %v4348 = vmul.f32 %v3673, %v1156
        %v4349 = vmul.f32 %v3674, %v1156
        %v4350 = vmul.f32 %v3675, %v1156
        %v4351 = vmul.f32 %v3676, %v1156
        %v4352 = vmul.f32 %v3677, %v1259
        %v4353 = vmul.f32 %v3678, %v1259
        %v4354 = vmul.f32 %v3679, %v1259
        %v4355 = vmul.f32 %v3680, %v1259
        %v4356 = vmul.f32 %v3681, %v1362
        %v4357 = vmul.f32 %v3682, %v1362
        %v4358 = vmul.f32 %v3683, %v1362
        %v4359 = vmul.f32 %v3684, %v1362
        %v4360 = vmul.f32 %v3685, %v1465
        %v4361 = vmul.f32 %v3686, %v1465
        %v4362 = vmul.f32 %v3687, %v1465
        %v4363 = vmul.f32 %v3688, %v1465
        %v4364 = vmul.f32 %v3689, %v1568
        %v4365 = vmul.f32 %v3690, %v1568
        %v4366 = vmul.f32 %v3691, %v1568
        %v4367 = vmul.f32 %v3692, %v1568
        %v4368 = vmul.f32 %v3693, %v1671
        %v4369 = vmul.f32 %v3694, %v1671
        %v4370 = vmul.f32 %v3695, %v1671
        %v4371 = vmul.f32 %v3696, %v1671
        %v4372 = vmul.f32 %v3697, %v1774
        %v4373 = vmul.f32 %v3698, %v1774
        %v4374 = vmul.f32 %v3699, %v1774
        %v4375 = vmul.f32 %v3700, %v1774
        %v4376 = vmul.f32 %v3701, %v1877
        %v4377 = vmul.f32 %v3702, %v1877
        %v4378 = vmul.f32 %v3703, %v1877
        %v4379 = vmul.f32 %v3704, %v1877
        %v4380 = vmul.f32 %v3705, %v1980
        %v4381 = vmul.f32 %v3706, %v1980
        %v4382 = vmul.f32 %v3707, %v1980
        %v4383 = vmul.f32 %v3708, %v1980
        %v4384 = vmul.f32 %v4256, %v2084
        %v4385 = vmul.f32 %v4257, %v2084
        %v4386 = vmul.f32 %v4258, %v2084
        %v4387 = vmul.f32 %v4259, %v2084
        %v4388 = vmul.f32 %v4260, %v2188
        %v4389 = vmul.f32 %v4261, %v2188
        %v4390 = vmul.f32 %v4262, %v2188
        %v4391 = vmul.f32 %v4263, %v2188
        %v4392 = vmul.f32 %v4264, %v2292
        %v4393 = vmul.f32 %v4265, %v2292
        %v4394 = vmul.f32 %v4266, %v2292
        %v4395 = vmul.f32 %v4267, %v2292
        %v4396 = vmul.f32 %v4268, %v2396
        %v4397 = vmul.f32 %v4269, %v2396
        %v4398 = vmul.f32 %v4270, %v2396
        %v4399 = vmul.f32 %v4271, %v2396
        %v4400 = vmul.f32 %v4272, %v2500
        %v4401 = vmul.f32 %v4273, %v2500
        %v4402 = vmul.f32 %v4274, %v2500
        %v4403 = vmul.f32 %v4275, %v2500
        %v4404 = vmul.f32 %v4276, %v2604
        %v4405 = vmul.f32 %v4277, %v2604
        %v4406 = vmul.f32 %v4278, %v2604
        %v4407 = vmul.f32 %v4279, %v2604
        %v4408 = vmul.f32 %v4280, %v2708
        %v4409 = vmul.f32 %v4281, %v2708
        %v4410 = vmul.f32 %v4282, %v2708
        %v4411 = vmul.f32 %v4283, %v2708
        %v4412 = vmul.f32 %v4284, %v2812
        %v4413 = vmul.f32 %v4285, %v2812
        %v4414 = vmul.f32 %v4286, %v2812
        %v4415 = vmul.f32 %v4287, %v2812
        %v4416 = vmul.f32 %v4288, %v2916
        %v4417 = vmul.f32 %v4289, %v2916
        %v4418 = vmul.f32 %v4290, %v2916
        %v4419 = vmul.f32 %v4291, %v2916
        %v4420 = vmul.f32 %v4292, %v3020
        %v4421 = vmul.f32 %v4293, %v3020
        %v4422 = vmul.f32 %v4294, %v3020
        %v4423 = vmul.f32 %v4295, %v3020
        %v4424 = vmul.f32 %v4296, %v3124
        %v4425 = vmul.f32 %v4297, %v3124
        %v4426 = vmul.f32 %v4298, %v3124
        %v4427 = vmul.f32 %v4299, %v3124
        %v4428 = vmul.f32 %v4300, %v3228
        %v4429 = vmul.f32 %v4301, %v3228
        %v4430 = vmul.f32 %v4302, %v3228
        %v4431 = vmul.f32 %v4303, %v3228
        %v4432 = vmul.f32 %v4304, %v3332
        %v4433 = vmul.f32 %v4305, %v3332
        %v4434 = vmul.f32 %v4306, %v3332
        %v4435 = vmul.f32 %v4307, %v3332
        %v4436 = vmul.f32 %v4308, %v3436
        %v4437 = vmul.f32 %v4309, %v3436
        %v4438 = vmul.f32 %v4310, %v3436
        %v4439 = vmul.f32 %v4311, %v3436
        %v4440 = vmul.f32 %v4312, %v3540
        %v4441 = vmul.f32 %v4313, %v3540
        %v4442 = vmul.f32 %v4314, %v3540
        %v4443 = vmul.f32 %v4315, %v3540
        %v4444 = vmul.f32 %v4316, %v3644
        %v4445 = vmul.f32 %v4317, %v3644
        %v4446 = vmul.f32 %v4318, %v3644
        %v4447 = vmul.f32 %v4319, %v3644
        %v4448 = vadd.f32 %v4320, %v4384
        %v4449 = vadd.f32 %v4321, %v4385
        %v4450 = vadd.f32 %v4322, %v4386
        %v4451 = vadd.f32 %v4323, %v4387
        %v4452 = vadd.f32 %v4324, %v4388
        %v4453 = vadd.f32 %v4325, %v4389
        %v4454 = vadd.f32 %v4326, %v4390
        %v4455 = vadd.f32 %v4327, %v4391
        %v4456 = vadd.f32 %v4328, %v4392
        %v4457 = vadd.f32 %v4329, %v4393
        %v4458 = vadd.f32 %v4330, %v4394
        %v4459 = vadd.f32 %v4331, %v4395
        %v4460 = vadd.f32 %v4332, %v4396
        %v4461 = vadd.f32 %v4333, %v4397
        %v4462 = vadd.f32 %v4334, %v4398
        %v4463 = vadd.f32 %v4335, %v4399
        %v4464 = vadd.f32 %v4336, %v4400
        %v4465 = vadd.f32 %v4337, %v4401
        %v4466 = vadd.f32 %v4338, %v4402
        %v4467 = vadd.f32 %v4339, %v4403
        %v4468 = vadd.f32 %v4340, %v4404
        %v4469 = vadd.f32 %v4341, %v4405
        %v4470 = vadd.f32 %v4342, %v4406
        %v4471 = vadd.f32 %v4343, %v4407
        %v4472 = vadd.f32 %v4344, %v4408
        %v4473 = vadd.f32 %v4345, %v4409
        %v4474 = vadd.f32 %v4346, %v4410
        %v4475 = vadd.f32 %v4347, %v4411
        %v4476 = vadd.f32 %v4348, %v4412
        %v4477 = vadd.f32 %v4349, %v4413
        %v4478 = vadd.f32 %v4350, %v4414
        %v4479 = vadd.f32 %v4351, %v4415
        %v4480 = vadd.f32 %v4352, %v4416
        %v4481 = vadd.f32 %v4353, %v4417
        %v4482 = vadd.f32 %v4354, %v4418
        %v4483 = vadd.f32 %v4355, %v4419
        %v4484 = vadd.f32 %v4356, %v4420
        %v4485 = vadd.f32 %v4357, %v4421
        %v4486 = vadd.f32 %v4358, %v4422
        %v4487 = vadd.f32 %v4359, %v4423
        %v4488 = vadd.f32 %v4360, %v4424
        %v4489 = vadd.f32 %v4361, %v4425
        %v4490 = vadd.f32 %v4362, %v4426
        %v4491 = vadd.f32 %v4363, %v4427
        %v4492 = vadd.f32 %v4364, %v4428
        %v4493 = vadd.f32 %v4365, %v4429
        %v4494 = vadd.f32 %v4366, %v4430
        %v4495 = vadd.f32 %v4367, %v4431
        %v4496 = vadd.f32 %v4368, %v4432
        %v4497 = vadd.f32 %v4369, %v4433
        %v4498 = vadd.f32 %v4370, %v4434
        %v4499 = vadd.f32 %v4371, %v4435
        %v4500 = vadd.f32 %v4372, %v4436
        %v4501 = vadd.f32 %v4373, %v4437
        %v4502 = vadd.f32 %v4374, %v4438
        %v4503 = vadd.f32 %v4375, %v4439
        %v4504 = vadd.f32 %v4376, %v4440
        %v4505 = vadd.f32 %v4377, %v4441
        %v4506 = vadd.f32 %v4378, %v4442
        %v4507 = vadd.f32 %v4379, %v4443
        %v4508 = vadd.f32 %v4380, %v4444
        %v4509 = vadd.f32 %v4381, %v4445
        %v4510 = vadd.f32 %v4382, %v4446
        %v4511 = vadd.f32 %v4383, %v4447
        %4512 = vst [vmem:[%s205] sm:$0xff] %v4448
        %4513 = vst [vmem:[%s205 + $0x8] sm:$0xff] %v4449
        %4514 = vst [vmem:[%s205 + $0x10] sm:$0xff] %v4450
        %4515 = vst [vmem:[%s205 + $0x18] sm:$0xff] %v4451
        %4516 = vst [vmem:[%s205 + $0x20] sm:$0xff] %v4452
        %4517 = vst [vmem:[%s205 + $0x28] sm:$0xff] %v4453
        %4518 = vst [vmem:[%s205 + $0x30] sm:$0xff] %v4454
        %4519 = vst [vmem:[%s205 + $0x38] sm:$0xff] %v4455
        %4520 = vst [vmem:[%s205 + $0x40] sm:$0xff] %v4456
        %4521 = vst [vmem:[%s205 + $0x48] sm:$0xff] %v4457
        %4522 = vst [vmem:[%s205 + $0x50] sm:$0xff] %v4458
        %4523 = vst [vmem:[%s205 + $0x58] sm:$0xff] %v4459
        %4524 = vst [vmem:[%s205 + $0x60] sm:$0xff] %v4460
        %4525 = vst [vmem:[%s205 + $0x68] sm:$0xff] %v4461
        %4526 = vst [vmem:[%s205 + $0x70] sm:$0xff] %v4462
        %4527 = vst [vmem:[%s205 + $0x78] sm:$0xff] %v4463
        %4528 = vst [vmem:[%s205 + $0x80] sm:$0xff] %v4464
        %4529 = vst [vmem:[%s205 + $0x88] sm:$0xff] %v4465
        %4530 = vst [vmem:[%s205 + $0x90] sm:$0xff] %v4466
        %4531 = vst [vmem:[%s205 + $0x98] sm:$0xff] %v4467
        %4532 = vst [vmem:[%s205 + $0xa0] sm:$0xff] %v4468
        %4533 = vst [vmem:[%s205 + $0xa8] sm:$0xff] %v4469
        %4534 = vst [vmem:[%s205 + $0xb0] sm:$0xff] %v4470
        %4535 = vst [vmem:[%s205 + $0xb8] sm:$0xff] %v4471
        %4536 = vst [vmem:[%s205 + $0xc0] sm:$0xff] %v4472
        %4537 = vst [vmem:[%s205 + $0xc8] sm:$0xff] %v4473
        %4538 = vst [vmem:[%s205 + $0xd0] sm:$0xff] %v4474
        %4539 = vst [vmem:[%s205 + $0xd8] sm:$0xff] %v4475
        %4540 = vst [vmem:[%s205 + $0xe0] sm:$0xff] %v4476
        %4541 = vst [vmem:[%s205 + $0xe8] sm:$0xff] %v4477
        %4542 = vst [vmem:[%s205 + $0xf0] sm:$0xff] %v4478
        %4543 = vst [vmem:[%s205 + $0xf8] sm:$0xff] %v4479
        %4544 = vst [vmem:[%s205 + $0x100] sm:$0xff] %v4480
        %4545 = vst [vmem:[%s205 + $0x108] sm:$0xff] %v4481
        %4546 = vst [vmem:[%s205 + $0x110] sm:$0xff] %v4482
        %4547 = vst [vmem:[%s205 + $0x118] sm:$0xff] %v4483
        %4548 = vst [vmem:[%s205 + $0x120] sm:$0xff] %v4484
        %4549 = vst [vmem:[%s205 + $0x128] sm:$0xff] %v4485
        %4550 = vst [vmem:[%s205 + $0x130] sm:$0xff] %v4486
        %4551 = vst [vmem:[%s205 + $0x138] sm:$0xff] %v4487
        %4552 = vst [vmem:[%s205 + $0x140] sm:$0xff] %v4488
        %4553 = vst [vmem:[%s205 + $0x148] sm:$0xff] %v4489
        %4554 = vst [vmem:[%s205 + $0x150] sm:$0xff] %v4490
        %4555 = vst [vmem:[%s205 + $0x158] sm:$0xff] %v4491
        %4556 = vst [vmem:[%s205 + $0x160] sm:$0xff] %v4492
        %4557 = vst [vmem:[%s205 + $0x168] sm:$0xff] %v4493
        %4558 = vst [vmem:[%s205 + $0x170] sm:$0xff] %v4494
        %4559 = vst [vmem:[%s205 + $0x178] sm:$0xff] %v4495
        %4560 = vst [vmem:[%s205 + $0x180] sm:$0xff] %v4496
        %4561 = vst [vmem:[%s205 + $0x188] sm:$0xff] %v4497
        %4562 = vst [vmem:[%s205 + $0x190] sm:$0xff] %v4498
        %4563 = vst [vmem:[%s205 + $0x198] sm:$0xff] %v4499
        %4564 = vst [vmem:[%s205 + $0x1a0] sm:$0xff] %v4500
        %4565 = vst [vmem:[%s205 + $0x1a8] sm:$0xff] %v4501
        %4566 = vst [vmem:[%s205 + $0x1b0] sm:$0xff] %v4502
        %4567 = vst [vmem:[%s205 + $0x1b8] sm:$0xff] %v4503
        %4568 = vst [vmem:[%s205 + $0x1c0] sm:$0xff] %v4504
        %4569 = vst [vmem:[%s205 + $0x1c8] sm:$0xff] %v4505
        %4570 = vst [vmem:[%s205 + $0x1d0] sm:$0xff] %v4506
        %4571 = vst [vmem:[%s205 + $0x1d8] sm:$0xff] %v4507
        %4572 = vst [vmem:[%s205 + $0x1e0] sm:$0xff] %v4508
        %4573 = vst [vmem:[%s205 + $0x1e8] sm:$0xff] %v4509
        %4574 = vst [vmem:[%s205 + $0x1f0] sm:$0xff] %v4510
        %4575 = vst [vmem:[%s205 + $0x1f8] sm:$0xff] %v4511
        %s4576 = sand.u32 %s101, 1
        %s4577 = scalar_lea.sflag [#allocation4], %s4576
        %s4578 = sand.u32 %s101, 1
        %s4579 = smul.addr %s4578, 512
        %s4580 = scalar_lea.vmem [#allocation5], %s4579
        // Predicated region
        $region37: #{tpu_custom_call.1} parent=31 // pred_check
          %p4581 = pneg %p111
        $region38: #{tpu_custom_call.1} parent=31 // pred_check_branch
          %4583 = sbr.rel (%p4581) target = $region40
        $region39: #{tpu_custom_call.1} parent=31 // pred_region
          %s4584 = smul.u32 16, %s20
          %s4586 = ssub.s32 8192, 8192
          %4587 = vsyncadd %s4577, %s4586
          %s4588 = smul.addr %s4584, 4
          %s4589 = smul.addr %s4588, 128
          %s4590 = scalar_lea.hbm %s3, %s4589
          %s4591 = sshll.u32 %s4580, 4
          %s4592 = int_to_ptr.vmem [resolvable:$true] %s4591
          %4597 = dma.vmem_to_hbm [thread:$0]  %s4592, 8192, %s4590, %s4577, 512, 512, 32
        $region40: #{tpu_custom_call.1} parent=31 // pred_fallthru
          _
      $region32: #{tpu_custom_call.1} parent=5 // pred_fallthru
        _
      %p4598 = scmp.le.s32.totalorder 2, %s15
      // Predicated region
      $region41: #{tpu_custom_call.1} parent=5 // pred_check
        %p4599 = pneg %p4598
      $region42: #{tpu_custom_call.1} parent=5 // pred_check_branch
        %4601 = sbr.rel (%p4599) target = $region44
      $region43: #{tpu_custom_call.1} parent=5 // pred_region
        %s4602 = ssub.s32 %s15, 2
        // Predicated region
        $region45: #{tpu_custom_call.1} parent=43 // pred_check
          %p4603 = pneg %p117
        $region46: #{tpu_custom_call.1} parent=43 // pred_check_branch
          %4605 = sbr.rel (%p4603) target = $region48
        $region47: #{tpu_custom_call.1} parent=43 // pred_region
          %s4606 = sand.u32 %s102, 1
          %s4607 = scalar_lea.sflag [#allocation4], %s4606
          %s4608 = sand.u32 %s102, 1
          %s4609 = smul.addr %s4608, 512
          %s4610 = scalar_lea.vmem [#allocation5], %s4609
          %4611 = dma.done %s4607, 8192
        $region48: #{tpu_custom_call.1} parent=43 // pred_fallthru
          _
      $region44: #{tpu_custom_call.1} parent=5 // pred_fallthru
        _
    $region6: #{tpu_custom_call.1} parent=1 // loop_footer
      %s19 = sadd.s32 1, %s15
    $region7: #{tpu_custom_call.1} parent=1 // loop_footer_branch
      %14 = sbr.rel target = $region3
    $region8: #{tpu_custom_call.1} parent=1 // loop_exit
      _
    %4612 = vsyncpa [#allocation3], 1
    %s4613 = scalar_lea.sflag [#allocation3], 1
    %4614 = vsyncpa %s4613, 1
    %4615 = vsyncpa [#allocation4], 1
    %s4616 = scalar_lea.sflag [#allocation4], 1
    %4617 = vsyncpa %s4616, 1

</llo_original>
